<compile_context>
chip_gen: v6e
topology: v6e:2x2x1
jax: 0.10.0
libtpu: 0.0.40
codegen_flags: <defaults>
</compile_context>

<pallas_src>
import jax
import jax.numpy as jnp
from jax import lax
from jax.experimental import pallas as pl
from jax.experimental.pallas import tpu as pltpu

K = 4            # every conv-transpose in the module uses a 4x4 kernel
BN_EPS = 1e-5    # torch.nn.BatchNorm2d default
LANES = 128      # pad matmul output width to a lane-dense multiple of 128


def _vspec():
    return pl.BlockSpec(memory_space=pltpu.MemorySpace.VMEM)


# ----------------------------- Pallas kernels ------------------------------ #

def _make_mm_bn_relu_kernel(n_blocks, cout, count):
    """Fused matmul + training-mode BatchNorm + ReLU.

    acc columns are `n_blocks` repeated blocks of `cout` channels (the 16 spatial
    taps for layer 1, the 2x2 sub-pixel phases for stride-2 layers) followed by an
    optional zero pad up to the lane-dense width.  BN statistics are reduced over
    rows AND over the channel blocks in a single pass (sum / sum-of-squares).
    """
    inv_count = 1.0 / float(count)

    def kernel(x_ref, w_ref, g_ref, b_ref, o_ref):
        acc = jnp.dot(x_ref[...], w_ref[...], preferred_element_type=jnp.float32)
        s1 = jnp.sum(acc, axis=0, keepdims=True)          # (1, width)
        s2 = jnp.sum(acc * acc, axis=0, keepdims=True)    # (1, width)
        csum = s1[:, 0:cout]
        csq = s2[:, 0:cout]
        for i in range(1, n_blocks):                      # fold phase/tap blocks
            csum = csum + s1[:, i * cout:(i + 1) * cout]
            csq = csq + s2[:, i * cout:(i + 1) * cout]
        mean = csum * inv_count
        var = csq * inv_count - mean * mean               # biased var, like PyTorch
        scale = g_ref[...] * lax.rsqrt(var + BN_EPS)      # (1, cout)
        shift = b_ref[...] - mean * scale
        pad = acc.shape[1] - n_blocks * cout
        scale_parts = [scale] * n_blocks
        shift_parts = [shift] * n_blocks
        if pad:
            scale_parts.append(jnp.zeros((1, pad), jnp.float32))
            shift_parts.append(jnp.zeros((1, pad), jnp.float32))
        full_scale = jnp.concatenate(scale_parts, axis=1)
        full_shift = jnp.concatenate(shift_parts, axis=1)
        y = acc * full_scale + full_shift
        o_ref[...] = jnp.maximum(y, 0.0).astype(o_ref.dtype)

    return kernel


def _mm_tanh_kernel(x_ref, w_ref, o_ref):
    acc = jnp.dot(x_ref[...], w_ref[...], preferred_element_type=jnp.float32)
    o_ref[...] = jnp.tanh(acc)


# --------------------------- pallas_call wrappers --------------------------- #

def _mm_bn_relu(x2d, wb, gamma, beta, *, n_blocks, cout, count):
    # Whole-array single invocation: BatchNorm batch statistics couple every row,
    # and the working set here is far below the scoped VMEM budget.
    # TODO(synk): for large batches, grid over M with sum/sumsq accumulation in a
    # VMEM scratch (pl.when init/finalize) instead of the whole-array call.
    m = x2d.shape[0]
    width = wb.shape[1]
    kernel = _make_mm_bn_relu_kernel(n_blocks, cout, count)
    return pl.pallas_call(
        kernel,
        out_shape=jax.ShapeDtypeStruct((m, width), jnp.bfloat16),
        in_specs=[_vspec()] * 4,
        out_specs=_vspec(),
        compiler_params=pltpu.CompilerParams(vmem_limit_bytes=32 * 1024 * 1024),
    )(x2d, wb, gamma, beta)


def _mm_tanh(x2d, wb, tile_m=512):
    # No batch coupling in the final layer -> tile M, pipeline HBM<->VMEM, and mark
    # the axis "parallel" so v7x can shard it across both TensorCores.
    m, kc = x2d.shape
    width = wb.shape[1]
    if m % tile_m != 0:
        tile_m = m
    return pl.pallas_call(
        _mm_tanh_kernel,
        out_shape=jax.ShapeDtypeStruct((m, width), jnp.float32),
        grid_spec=pltpu.PrefetchScalarGridSpec(
            num_scalar_prefetch=0,
            grid=(m // tile_m,),
            in_specs=[pl.BlockSpec((tile_m, kc), lambda i: (i, 0)),
                      pl.BlockSpec((kc, width), lambda i: (0, 0))],
            out_specs=pl.BlockSpec((tile_m, width), lambda i: (i, 0))),
        compiler_params=pltpu.CompilerParams(
            dimension_semantics=("parallel",),
            vmem_limit_bytes=32 * 1024 * 1024),
    )(x2d, wb)


# ------------------------------- JAX glue ---------------------------------- #

def _extract_patches_s2(x_nhwc):
    """Sub-pixel patches for ConvTranspose2d(k=4, s=2, p=1): pad by 1 and take the
    nine shifted 3x3-window views.  Each output pixel only uses the 2x2 subset of
    taps belonging to its phase; the packed weight holds zeros elsewhere."""
    n, h, w, c = x_nhwc.shape
    xp = jnp.pad(x_nhwc, ((0, 0), (1, 1), (1, 1), (0, 0)))
    views = [xp[:, u:u + h, v:v + w, :] for u in range(3) for v in range(3)]
    p = jnp.concatenate(views, axis=-1)                   # (N, H, W, 9*C)
    return p.reshape(n * h * w, 9 * c)


def _unphase(out2d, n, h, w, cout):
    """(N*H*W, 4*Cout) phase-major output -> (N, 2H, 2W, Cout) NHWC (pixel shuffle)."""
    y = out2d.reshape(n, h, w, 2, 2, cout)
    y = jnp.transpose(y, (0, 1, 3, 2, 4, 5))
    return y.reshape(n, 2 * h, 2 * w, cout)


def _pack_w_layer1(w_pt):
    """(Cin, Cout, 4, 4) -> (Cin, 16*Cout); columns ordered (y, x, cout)."""
    cin, cout = w_pt.shape[0], w_pt.shape[1]
    return jnp.transpose(w_pt, (0, 2, 3, 1)).reshape(cin, K * K * cout)


def _pack_w_s2(w_pt):
    """(Cin, Cout, 4, 4) -> (9*Cin, pad128(4*Cout)) sub-pixel packed weight.

    Rows ordered (u, v, cin) over the 3x3 patch window; columns ordered
    (phase_y, phase_x, cout).  Tap (u, v) feeds phase (ry, rx) through original
    kernel position (a, b) = (3 + ry - 2u, 3 + rx - 2v) when that is in range."""
    cin, cout = w_pt.shape[0], w_pt.shape[1]
    wb = jnp.zeros((3, 3, cin, 2, 2, cout), jnp.float32)
    for ry in range(2):
        for rx in range(2):
            for u in range(3):
                a = 3 + ry - 2 * u
                if not 0 <= a < K:
                    continue
                for v in range(3):
                    b = 3 + rx - 2 * v
                    if not 0 <= b < K:
                        continue
                    wb = wb.at[u, v, :, ry, rx, :].set(w_pt[:, :, a, b])
    wb = wb.reshape(9 * cin, 4 * cout)
    width = ((4 * cout + LANES - 1) // LANES) * LANES
    if width > 4 * cout:
        wb = jnp.pad(wb, ((0, 0), (0, width - 4 * cout)))
    return wb


def init_params(key, latent_dim, gen_init_channels, growth_rate, num_output_channels):
    chans = [latent_dim,
             gen_init_channels,
             gen_init_channels // growth_rate,
             gen_init_channels // growth_rate ** 2,
             gen_init_channels // growth_rate ** 3,
             num_output_channels]
    w_packed, w_raw, gammas, betas = [], [], [], []
    for li in range(5):
        key, sub = jax.random.split(key)
        cin, cout = chans[li], chans[li + 1]
        w_pt = 0.02 * jax.random.normal(sub, (cin, cout, K, K), jnp.float32)
        w_raw.append(w_pt)
        packed = _pack_w_layer1(w_pt) if li == 0 else _pack_w_s2(w_pt)
        w_packed.append(packed.astype(jnp.bfloat16))
        if li < 4:  # layers followed by BatchNorm (PyTorch default init: weight=1, bias=0)
            gammas.append(jnp.ones((1, cout), jnp.float32))
            betas.append(jnp.zeros((1, cout), jnp.float32))
    return {"w": w_packed, "w_raw": w_raw, "gamma": gammas, "beta": betas}


def generator_forward(x_nchw, params):
    """x_nchw: (N, latent_dim, 1, 1) -> (N, num_output_channels, 64, 64)."""
    n = x_nchw.shape[0]
    couts = [params["w_raw"][li].shape[1] for li in range(5)]

    # layer 1: ConvT(latent->C1, k4, s1, p0) on a 1x1 input == one dense matmul
    # (N, latent) x (latent, 16*C1), fused with BatchNorm + ReLU (lane-dense 1024).
    z = x_nchw.reshape(n, -1).astype(jnp.bfloat16)
    y = _mm_bn_relu(z, params["w"][0], params["gamma"][0], params["beta"][0],
                    n_blocks=K * K, cout=couts[0], count=n * K * K)
    x = y.reshape(n, K, K, couts[0])                       # NHWC, bf16

    # layers 2-4: ConvT(k4, s2, p1) + BatchNorm + ReLU via sub-pixel phases.
    for li in range(1, 4):
        _, h, w_sp, _ = x.shape
        cout = couts[li]
        pats = _extract_patches_s2(x)                      # (N*H*W, 9*Cin) bf16
        out2d = _mm_bn_relu(pats, params["w"][li],
                            params["gamma"][li], params["beta"][li],
                            n_blocks=4, cout=cout, count=4 * n * h * w_sp)
        x = _unphase(out2d[:, :4 * cout], n, h, w_sp, cout)

    # layer 5: ConvT(k4, s2, p1) + Tanh (M-tiled, pipelined, megacore-parallel).
    _, h, w_sp, _ = x.shape
    cout = couts[4]
    pats = _extract_patches_s2(x)
    out2d = _mm_tanh(pats, params["w"][4])                 # (N*H*W, 128) f32
    x = _unphase(out2d[:, :4 * cout], n, h, w_sp, cout)
    # TODO(synk): output_size equals the native 64x64 feature-extractor size, so the
    # optional bilinear Upsample + smoothing-conv branch of the PyTorch module is not
    # instantiated (same as PyTorch for this config).
    # TODO(synk): BatchNorm runs in training mode (batch statistics); eval-mode
    # running_mean/var are neither consumed nor updated.
    return jnp.transpose(x, (0, 3, 1, 2))                  # NHWC -> NCHW


# ------------------------- pure-JAX f32 reference --------------------------- #

def _convt_ref(x_nhwc, w_pt, stride, pad):
    """Direct (scatter-form) ConvTranspose2d reference, PyTorch semantics."""
    n, h, w, cin = x_nhwc.shape
    cout = w_pt.shape[1]
    hf = (h - 1) * stride + K
    wf = (w - 1) * stride + K
    out = jnp.zeros((n, hf, wf, cout), jnp.float32)
    for a in range(K):
        for b in range(K):
            contrib = jnp.einsum('nhwc,cd->nhwd', x_nhwc, w_pt[:, :, a, b])
            out = out.at[:, a:a + (h - 1) * stride + 1:stride,
                            b:b + (w - 1) * stride + 1:stride, :].add(contrib)
    return out[:, pad:hf - pad, pad:wf - pad, :]


def _reference_forward(x_nchw, params):
    x = jnp.transpose(x_nchw.astype(jnp.float32), (0, 2, 3, 1))
    cfg = [(1, 0), (2, 1), (2, 1), (2, 1), (2, 1)]
    for li, (s, p) in enumerate(cfg):
        y = _convt_ref(x, params["w_raw"][li], s, p)
        if li < 4:
            mean = jnp.mean(y, axis=(0, 1, 2), keepdims=True)
            var = jnp.mean((y - mean) ** 2, axis=(0, 1, 2), keepdims=True)
            y = (y - mean) * lax.rsqrt(var + BN_EPS)
            y = y * params["gamma"][li].reshape(1, 1, 1, -1) \
                + params["beta"][li].reshape(1, 1, 1, -1)
            y = jnp.maximum(y, 0.0)
        else:
            y = jnp.tanh(y)
        x = y
    return jnp.transpose(x, (0, 3, 1, 2))


# --------------------------------- main ------------------------------------ #

if __name__ == "__main__":
    latent_vector_dim = 32
    gen_init_channels = 64
    growth_rate = 2
    num_output_channels = 3
    batch = 2

    key = jax.random.PRNGKey(0)
    kp, kx = jax.random.split(key)
    params = init_params(kp, latent_vector_dim, gen_init_channels,
                         growth_rate, num_output_channels)
    x = jax.random.normal(kx, (batch, latent_vector_dim, 1, 1), jnp.float32)

    out = jax.jit(generator_forward)(x, params)
    out = jax.block_until_ready(out)

    assert out.shape == (batch, num_output_channels, 64, 64), out.shape
    assert bool(jnp.isfinite(out).all())
    assert bool((jnp.abs(out) <= 1.0).all())   # tanh output range

    # Numerics check against a pure-JAX f32 reference of the PyTorch module
    # (kernel path uses bf16 weights/activations with f32 accumulation + BN).
    ref = jax.block_until_ready(jax.jit(_reference_forward)(x, params))
    max_err = float(jnp.max(jnp.abs(out - ref)))
    assert max_err < 8e-2, max_err

    print("KERNEL_OK")
</pallas_src>

<mosaic_0001>
module attributes {stable_mosaic.version = 11 : i64} {
  func.func @kernel(%arg0: memref<2x32xbf16, #tpu.memory_space<vmem>>, %arg1: memref<32x1024xbf16, #tpu.memory_space<vmem>>, %arg2: memref<1x64xf32, #tpu.memory_space<vmem>>, %arg3: memref<1x64xf32, #tpu.memory_space<vmem>>, %arg4: memref<2x1024xbf16, #tpu.memory_space<vmem>>) attributes {dimension_semantics = [], scalar_prefetch = 0 : i64, scratch_operands = 0 : i64, tpu.core_type = #tpu.core_type<tc>} {
    %c0 = arith.constant 0 : index
    %c0_0 = arith.constant 0 : index
    %0 = vector.load %arg0[%c0, %c0_0] : memref<2x32xbf16, #tpu.memory_space<vmem>>, vector<2x32xbf16>
    %c0_1 = arith.constant 0 : index
    %c0_2 = arith.constant 0 : index
    %1 = vector.load %arg1[%c0_1, %c0_2] : memref<32x1024xbf16, #tpu.memory_space<vmem>>, vector<32x1024xbf16>
    %cst = arith.constant dense<0.000000e+00> : vector<2x1024xf32>
    %2 = tpu.matmul %0, %1, %cst {dimension_numbers = #tpu.dot_dimension_numbers<[1], [0], [0], [1], [0, 0, 1, 1], [], []>} : vector<2x32xbf16>, vector<32x1024xbf16>, vector<2x1024xf32> -> vector<2x1024xf32>
    %cst_3 = arith.constant dense<0.000000e+00> : vector<1024xf32>
    %3 = vector.multi_reduction <add>, %2, %cst_3 [0] : vector<2x1024xf32> to vector<1024xf32>
    %4 = vector.shape_cast %3 : vector<1024xf32> to vector<1x1024xf32>
    %5 = arith.mulf %2, %2 : vector<2x1024xf32>
    %cst_4 = arith.constant dense<0.000000e+00> : vector<1024xf32>
    %6 = vector.multi_reduction <add>, %5, %cst_4 [0] : vector<2x1024xf32> to vector<1024xf32>
    %7 = vector.shape_cast %6 : vector<1024xf32> to vector<1x1024xf32>
    %8 = vector.extract_strided_slice %4 {offsets = [0, 0], sizes = [1, 64], strides = [1, 1]} : vector<1x1024xf32> to vector<1x64xf32>
    %9 = vector.extract_strided_slice %7 {offsets = [0, 0], sizes = [1, 64], strides = [1, 1]} : vector<1x1024xf32> to vector<1x64xf32>
    %10 = vector.extract_strided_slice %4 {offsets = [0, 64], sizes = [1, 64], strides = [1, 1]} : vector<1x1024xf32> to vector<1x64xf32>
    %11 = arith.addf %8, %10 : vector<1x64xf32>
    %12 = vector.extract_strided_slice %7 {offsets = [0, 64], sizes = [1, 64], strides = [1, 1]} : vector<1x1024xf32> to vector<1x64xf32>
    %13 = arith.addf %9, %12 : vector<1x64xf32>
    %14 = vector.extract_strided_slice %4 {offsets = [0, 128], sizes = [1, 64], strides = [1, 1]} : vector<1x1024xf32> to vector<1x64xf32>
    %15 = arith.addf %11, %14 : vector<1x64xf32>
    %16 = vector.extract_strided_slice %7 {offsets = [0, 128], sizes = [1, 64], strides = [1, 1]} : vector<1x1024xf32> to vector<1x64xf32>
    %17 = arith.addf %13, %16 : vector<1x64xf32>
    %18 = vector.extract_strided_slice %4 {offsets = [0, 192], sizes = [1, 64], strides = [1, 1]} : vector<1x1024xf32> to vector<1x64xf32>
    %19 = arith.addf %15, %18 : vector<1x64xf32>
    %20 = vector.extract_strided_slice %7 {offsets = [0, 192], sizes = [1, 64], strides = [1, 1]} : vector<1x1024xf32> to vector<1x64xf32>
    %21 = arith.addf %17, %20 : vector<1x64xf32>
    %22 = vector.extract_strided_slice %4 {offsets = [0, 256], sizes = [1, 64], strides = [1, 1]} : vector<1x1024xf32> to vector<1x64xf32>
    %23 = arith.addf %19, %22 : vector<1x64xf32>
    %24 = vector.extract_strided_slice %7 {offsets = [0, 256], sizes = [1, 64], strides = [1, 1]} : vector<1x1024xf32> to vector<1x64xf32>
    %25 = arith.addf %21, %24 : vector<1x64xf32>
    %26 = vector.extract_strided_slice %4 {offsets = [0, 320], sizes = [1, 64], strides = [1, 1]} : vector<1x1024xf32> to vector<1x64xf32>
    %27 = arith.addf %23, %26 : vector<1x64xf32>
    %28 = vector.extract_strided_slice %7 {offsets = [0, 320], sizes = [1, 64], strides = [1, 1]} : vector<1x1024xf32> to vector<1x64xf32>
    %29 = arith.addf %25, %28 : vector<1x64xf32>
    %30 = vector.extract_strided_slice %4 {offsets = [0, 384], sizes = [1, 64], strides = [1, 1]} : vector<1x1024xf32> to vector<1x64xf32>
    %31 = arith.addf %27, %30 : vector<1x64xf32>
    %32 = vector.extract_strided_slice %7 {offsets = [0, 384], sizes = [1, 64], strides = [1, 1]} : vector<1x1024xf32> to vector<1x64xf32>
    %33 = arith.addf %29, %32 : vector<1x64xf32>
    %34 = vector.extract_strided_slice %4 {offsets = [0, 448], sizes = [1, 64], strides = [1, 1]} : vector<1x1024xf32> to vector<1x64xf32>
    %35 = arith.addf %31, %34 : vector<1x64xf32>
    %36 = vector.extract_strided_slice %7 {offsets = [0, 448], sizes = [1, 64], strides = [1, 1]} : vector<1x1024xf32> to vector<1x64xf32>
    %37 = arith.addf %33, %36 : vector<1x64xf32>
    %38 = vector.extract_strided_slice %4 {offsets = [0, 512], sizes = [1, 64], strides = [1, 1]} : vector<1x1024xf32> to vector<1x64xf32>
    %39 = arith.addf %35, %38 : vector<1x64xf32>
    %40 = vector.extract_strided_slice %7 {offsets = [0, 512], sizes = [1, 64], strides = [1, 1]} : vector<1x1024xf32> to vector<1x64xf32>
    %41 = arith.addf %37, %40 : vector<1x64xf32>
    %42 = vector.extract_strided_slice %4 {offsets = [0, 576], sizes = [1, 64], strides = [1, 1]} : vector<1x1024xf32> to vector<1x64xf32>
    %43 = arith.addf %39, %42 : vector<1x64xf32>
    %44 = vector.extract_strided_slice %7 {offsets = [0, 576], sizes = [1, 64], strides = [1, 1]} : vector<1x1024xf32> to vector<1x64xf32>
    %45 = arith.addf %41, %44 : vector<1x64xf32>
    %46 = vector.extract_strided_slice %4 {offsets = [0, 640], sizes = [1, 64], strides = [1, 1]} : vector<1x1024xf32> to vector<1x64xf32>
    %47 = arith.addf %43, %46 : vector<1x64xf32>
    %48 = vector.extract_strided_slice %7 {offsets = [0, 640], sizes = [1, 64], strides = [1, 1]} : vector<1x1024xf32> to vector<1x64xf32>
    %49 = arith.addf %45, %48 : vector<1x64xf32>
    %50 = vector.extract_strided_slice %4 {offsets = [0, 704], sizes = [1, 64], strides = [1, 1]} : vector<1x1024xf32> to vector<1x64xf32>
    %51 = arith.addf %47, %50 : vector<1x64xf32>
    %52 = vector.extract_strided_slice %7 {offsets = [0, 704], sizes = [1, 64], strides = [1, 1]} : vector<1x1024xf32> to vector<1x64xf32>
    %53 = arith.addf %49, %52 : vector<1x64xf32>
    %54 = vector.extract_strided_slice %4 {offsets = [0, 768], sizes = [1, 64], strides = [1, 1]} : vector<1x1024xf32> to vector<1x64xf32>
    %55 = arith.addf %51, %54 : vector<1x64xf32>
    %56 = vector.extract_strided_slice %7 {offsets = [0, 768], sizes = [1, 64], strides = [1, 1]} : vector<1x1024xf32> to vector<1x64xf32>
    %57 = arith.addf %53, %56 : vector<1x64xf32>
    %58 = vector.extract_strided_slice %4 {offsets = [0, 832], sizes = [1, 64], strides = [1, 1]} : vector<1x1024xf32> to vector<1x64xf32>
    %59 = arith.addf %55, %58 : vector<1x64xf32>
    %60 = vector.extract_strided_slice %7 {offsets = [0, 832], sizes = [1, 64], strides = [1, 1]} : vector<1x1024xf32> to vector<1x64xf32>
    %61 = arith.addf %57, %60 : vector<1x64xf32>
    %62 = vector.extract_strided_slice %4 {offsets = [0, 896], sizes = [1, 64], strides = [1, 1]} : vector<1x1024xf32> to vector<1x64xf32>
    %63 = arith.addf %59, %62 : vector<1x64xf32>
    %64 = vector.extract_strided_slice %7 {offsets = [0, 896], sizes = [1, 64], strides = [1, 1]} : vector<1x1024xf32> to vector<1x64xf32>
    %65 = arith.addf %61, %64 : vector<1x64xf32>
    %66 = vector.extract_strided_slice %4 {offsets = [0, 960], sizes = [1, 64], strides = [1, 1]} : vector<1x1024xf32> to vector<1x64xf32>
    %67 = arith.addf %63, %66 : vector<1x64xf32>
    %68 = vector.extract_strided_slice %7 {offsets = [0, 960], sizes = [1, 64], strides = [1, 1]} : vector<1x1024xf32> to vector<1x64xf32>
    %69 = arith.addf %65, %68 : vector<1x64xf32>
    %cst_5 = arith.constant 3.125000e-02 : f32
    %70 = vector.broadcast %cst_5 : f32 to vector<1x64xf32>
    %71 = arith.mulf %67, %70 : vector<1x64xf32>
    %cst_6 = arith.constant 3.125000e-02 : f32
    %72 = vector.broadcast %cst_6 : f32 to vector<1x64xf32>
    %73 = arith.mulf %69, %72 : vector<1x64xf32>
    %74 = arith.mulf %71, %71 : vector<1x64xf32>
    %75 = arith.subf %73, %74 : vector<1x64xf32>
    %c0_7 = arith.constant 0 : index
    %c0_8 = arith.constant 0 : index
    %76 = vector.load %arg2[%c0_7, %c0_8] : memref<1x64xf32, #tpu.memory_space<vmem>>, vector<1x64xf32>
    %cst_9 = arith.constant 9.99999974E-6 : f32
    %77 = vector.broadcast %cst_9 : f32 to vector<1x64xf32>
    %78 = arith.addf %75, %77 : vector<1x64xf32>
    %79 = math.rsqrt %78 : vector<1x64xf32>
    %80 = arith.mulf %76, %79 : vector<1x64xf32>
    %c0_10 = arith.constant 0 : index
    %c0_11 = arith.constant 0 : index
    %81 = vector.load %arg3[%c0_10, %c0_11] : memref<1x64xf32, #tpu.memory_space<vmem>>, vector<1x64xf32>
    %82 = arith.mulf %71, %80 : vector<1x64xf32>
    %83 = arith.subf %81, %82 : vector<1x64xf32>
    %84 = tpu.concatenate %80, %80, %80, %80, %80, %80, %80, %80, %80, %80, %80, %80, %80, %80, %80, %80 in 1 : vector<1x64xf32>, vector<1x64xf32>, vector<1x64xf32>, vector<1x64xf32>, vector<1x64xf32>, vector<1x64xf32>, vector<1x64xf32>, vector<1x64xf32>, vector<1x64xf32>, vector<1x64xf32>, vector<1x64xf32>, vector<1x64xf32>, vector<1x64xf32>, vector<1x64xf32>, vector<1x64xf32>, vector<1x64xf32> -> vector<1x1024xf32>
    %85 = tpu.concatenate %83, %83, %83, %83, %83, %83, %83, %83, %83, %83, %83, %83, %83, %83, %83, %83 in 1 : vector<1x64xf32>, vector<1x64xf32>, vector<1x64xf32>, vector<1x64xf32>, vector<1x64xf32>, vector<1x64xf32>, vector<1x64xf32>, vector<1x64xf32>, vector<1x64xf32>, vector<1x64xf32>, vector<1x64xf32>, vector<1x64xf32>, vector<1x64xf32>, vector<1x64xf32>, vector<1x64xf32>, vector<1x64xf32> -> vector<1x1024xf32>
    %86 = vector.broadcast %84 : vector<1x1024xf32> to vector<2x1024xf32>
    %87 = arith.mulf %2, %86 : vector<2x1024xf32>
    %88 = vector.broadcast %85 : vector<1x1024xf32> to vector<2x1024xf32>
    %89 = arith.addf %87, %88 : vector<2x1024xf32>
    %cst_12 = arith.constant 0.000000e+00 : f32
    %90 = vector.broadcast %cst_12 : f32 to vector<2x1024xf32>
    %91 = arith.maximumf %89, %90 : vector<2x1024xf32>
    %92 = arith.truncf %91 : vector<2x1024xf32> to vector<2x1024xbf16>
    %c0_13 = arith.constant 0 : index
    %c0_14 = arith.constant 0 : index
    %93 = vector.load %arg4[%c0_13, %c0_14] : memref<2x1024xbf16, #tpu.memory_space<vmem>>, vector<2x1024xbf16>
    tpu.vector_store %arg4[%c0_13, %c0_14], %92 {strides = array<i32>} : memref<2x1024xbf16, #tpu.memory_space<vmem>>, vector<2x1024xbf16>,
    return
  }
}

module attributes {stable_mosaic.version = 11 : i64} {
  func.func @kernel(%arg0: memref<32x576xbf16, #tpu.memory_space<vmem>>, %arg1: memref<576x128xbf16, #tpu.memory_space<vmem>>, %arg2: memref<1x32xf32, #tpu.memory_space<vmem>>, %arg3: memref<1x32xf32, #tpu.memory_space<vmem>>, %arg4: memref<32x128xbf16, #tpu.memory_space<vmem>>) attributes {dimension_semantics = [], scalar_prefetch = 0 : i64, scratch_operands = 0 : i64, tpu.core_type = #tpu.core_type<tc>} {
    %c0 = arith.constant 0 : index
    %c0_0 = arith.constant 0 : index
    %0 = vector.load %arg0[%c0, %c0_0] : memref<32x576xbf16, #tpu.memory_space<vmem>>, vector<32x576xbf16>
    %c0_1 = arith.constant 0 : index
    %c0_2 = arith.constant 0 : index
    %1 = vector.load %arg1[%c0_1, %c0_2] : memref<576x128xbf16, #tpu.memory_space<vmem>>, vector<576x128xbf16>
    %cst = arith.constant dense<0.000000e+00> : vector<32x128xf32>
    %2 = tpu.matmul %0, %1, %cst {dimension_numbers = #tpu.dot_dimension_numbers<[1], [0], [0], [1], [0, 0, 1, 1], [], []>} : vector<32x576xbf16>, vector<576x128xbf16>, vector<32x128xf32> -> vector<32x128xf32>
    %cst_3 = arith.constant dense<0.000000e+00> : vector<128xf32>
    %3 = vector.multi_reduction <add>, %2, %cst_3 [0] : vector<32x128xf32> to vector<128xf32>
    %4 = vector.shape_cast %3 : vector<128xf32> to vector<1x128xf32>
    %5 = arith.mulf %2, %2 : vector<32x128xf32>
    %cst_4 = arith.constant dense<0.000000e+00> : vector<128xf32>
    %6 = vector.multi_reduction <add>, %5, %cst_4 [0] : vector<32x128xf32> to vector<128xf32>
    %7 = vector.shape_cast %6 : vector<128xf32> to vector<1x128xf32>
    %8 = vector.extract_strided_slice %4 {offsets = [0, 0], sizes = [1, 32], strides = [1, 1]} : vector<1x128xf32> to vector<1x32xf32>
    %9 = vector.extract_strided_slice %7 {offsets = [0, 0], sizes = [1, 32], strides = [1, 1]} : vector<1x128xf32> to vector<1x32xf32>
    %10 = vector.extract_strided_slice %4 {offsets = [0, 32], sizes = [1, 32], strides = [1, 1]} : vector<1x128xf32> to vector<1x32xf32>
    %11 = arith.addf %8, %10 : vector<1x32xf32>
    %12 = vector.extract_strided_slice %7 {offsets = [0, 32], sizes = [1, 32], strides = [1, 1]} : vector<1x128xf32> to vector<1x32xf32>
    %13 = arith.addf %9, %12 : vector<1x32xf32>
    %14 = vector.extract_strided_slice %4 {offsets = [0, 64], sizes = [1, 32], strides = [1, 1]} : vector<1x128xf32> to vector<1x32xf32>
    %15 = arith.addf %11, %14 : vector<1x32xf32>
    %16 = vector.extract_strided_slice %7 {offsets = [0, 64], sizes = [1, 32], strides = [1, 1]} : vector<1x128xf32> to vector<1x32xf32>
    %17 = arith.addf %13, %16 : vector<1x32xf32>
    %18 = vector.extract_strided_slice %4 {offsets = [0, 96], sizes = [1, 32], strides = [1, 1]} : vector<1x128xf32> to vector<1x32xf32>
    %19 = arith.addf %15, %18 : vector<1x32xf32>
    %20 = vector.extract_strided_slice %7 {offsets = [0, 96], sizes = [1, 32], strides = [1, 1]} : vector<1x128xf32> to vector<1x32xf32>
    %21 = arith.addf %17, %20 : vector<1x32xf32>
    %cst_5 = arith.constant 7.812500e-03 : f32
    %22 = vector.broadcast %cst_5 : f32 to vector<1x32xf32>
    %23 = arith.mulf %19, %22 : vector<1x32xf32>
    %cst_6 = arith.constant 7.812500e-03 : f32
    %24 = vector.broadcast %cst_6 : f32 to vector<1x32xf32>
    %25 = arith.mulf %21, %24 : vector<1x32xf32>
    %26 = arith.mulf %23, %23 : vector<1x32xf32>
    %27 = arith.subf %25, %26 : vector<1x32xf32>
    %c0_7 = arith.constant 0 : index
    %c0_8 = arith.constant 0 : index
    %28 = vector.load %arg2[%c0_7, %c0_8] : memref<1x32xf32, #tpu.memory_space<vmem>>, vector<1x32xf32>
    %cst_9 = arith.constant 9.99999974E-6 : f32
    %29 = vector.broadcast %cst_9 : f32 to vector<1x32xf32>
    %30 = arith.addf %27, %29 : vector<1x32xf32>
    %31 = math.rsqrt %30 : vector<1x32xf32>
    %32 = arith.mulf %28, %31 : vector<1x32xf32>
    %c0_10 = arith.constant 0 : index
    %c0_11 = arith.constant 0 : index
    %33 = vector.load %arg3[%c0_10, %c0_11] : memref<1x32xf32, #tpu.memory_space<vmem>>, vector<1x32xf32>
    %34 = arith.mulf %23, %32 : vector<1x32xf32>
    %35 = arith.subf %33, %34 : vector<1x32xf32>
    %36 = tpu.concatenate %32, %32, %32, %32 in 1 : vector<1x32xf32>, vector<1x32xf32>, vector<1x32xf32>, vector<1x32xf32> -> vector<1x128xf32>
    %37 = tpu.concatenate %35, %35, %35, %35 in 1 : vector<1x32xf32>, vector<1x32xf32>, vector<1x32xf32>, vector<1x32xf32> -> vector<1x128xf32>
    %38 = vector.broadcast %36 : vector<1x128xf32> to vector<32x128xf32>
    %39 = arith.mulf %2, %38 : vector<32x128xf32>
    %40 = vector.broadcast %37 : vector<1x128xf32> to vector<32x128xf32>
    %41 = arith.addf %39, %40 : vector<32x128xf32>
    %cst_12 = arith.constant 0.000000e+00 : f32
    %42 = vector.broadcast %cst_12 : f32 to vector<32x128xf32>
    %43 = arith.maximumf %41, %42 : vector<32x128xf32>
    %44 = arith.truncf %43 : vector<32x128xf32> to vector<32x128xbf16>
    %c0_13 = arith.constant 0 : index
    %c0_14 = arith.constant 0 : index
    %45 = vector.load %arg4[%c0_13, %c0_14] : memref<32x128xbf16, #tpu.memory_space<vmem>>, vector<32x128xbf16>
    tpu.vector_store %arg4[%c0_13, %c0_14], %44 {strides = array<i32>} : memref<32x128xbf16, #tpu.memory_space<vmem>>, vector<32x128xbf16>,
    return
  }
}

module attributes {stable_mosaic.version = 11 : i64} {
  func.func @kernel(%arg0: memref<128x288xbf16, #tpu.memory_space<vmem>>, %arg1: memref<288x128xbf16, #tpu.memory_space<vmem>>, %arg2: memref<1x16xf32, #tpu.memory_space<vmem>>, %arg3: memref<1x16xf32, #tpu.memory_space<vmem>>, %arg4: memref<128x128xbf16, #tpu.memory_space<vmem>>) attributes {dimension_semantics = [], scalar_prefetch = 0 : i64, scratch_operands = 0 : i64, tpu.core_type = #tpu.core_type<tc>} {
    %c0 = arith.constant 0 : index
    %c0_0 = arith.constant 0 : index
    %0 = vector.load %arg0[%c0, %c0_0] : memref<128x288xbf16, #tpu.memory_space<vmem>>, vector<128x288xbf16>
    %c0_1 = arith.constant 0 : index
    %c0_2 = arith.constant 0 : index
    %1 = vector.load %arg1[%c0_1, %c0_2] : memref<288x128xbf16, #tpu.memory_space<vmem>>, vector<288x128xbf16>
    %cst = arith.constant dense<0.000000e+00> : vector<128x128xf32>
    %2 = tpu.matmul %0, %1, %cst {dimension_numbers = #tpu.dot_dimension_numbers<[1], [0], [0], [1], [0, 0, 1, 1], [], []>} : vector<128x288xbf16>, vector<288x128xbf16>, vector<128x128xf32> -> vector<128x128xf32>
    %cst_3 = arith.constant dense<0.000000e+00> : vector<128xf32>
    %3 = vector.multi_reduction <add>, %2, %cst_3 [0] : vector<128x128xf32> to vector<128xf32>
    %4 = vector.shape_cast %3 : vector<128xf32> to vector<1x128xf32>
    %5 = arith.mulf %2, %2 : vector<128x128xf32>
    %cst_4 = arith.constant dense<0.000000e+00> : vector<128xf32>
    %6 = vector.multi_reduction <add>, %5, %cst_4 [0] : vector<128x128xf32> to vector<128xf32>
    %7 = vector.shape_cast %6 : vector<128xf32> to vector<1x128xf32>
    %8 = vector.extract_strided_slice %4 {offsets = [0, 0], sizes = [1, 16], strides = [1, 1]} : vector<1x128xf32> to vector<1x16xf32>
    %9 = vector.extract_strided_slice %7 {offsets = [0, 0], sizes = [1, 16], strides = [1, 1]} : vector<1x128xf32> to vector<1x16xf32>
    %10 = vector.extract_strided_slice %4 {offsets = [0, 16], sizes = [1, 16], strides = [1, 1]} : vector<1x128xf32> to vector<1x16xf32>
    %11 = arith.addf %8, %10 : vector<1x16xf32>
    %12 = vector.extract_strided_slice %7 {offsets = [0, 16], sizes = [1, 16], strides = [1, 1]} : vector<1x128xf32> to vector<1x16xf32>
    %13 = arith.addf %9, %12 : vector<1x16xf32>
    %14 = vector.extract_strided_slice %4 {offsets = [0, 32], sizes = [1, 16], strides = [1, 1]} : vector<1x128xf32> to vector<1x16xf32>
    %15 = arith.addf %11, %14 : vector<1x16xf32>
    %16 = vector.extract_strided_slice %7 {offsets = [0, 32], sizes = [1, 16], strides = [1, 1]} : vector<1x128xf32> to vector<1x16xf32>
    %17 = arith.addf %13, %16 : vector<1x16xf32>
    %18 = vector.extract_strided_slice %4 {offsets = [0, 48], sizes = [1, 16], strides = [1, 1]} : vector<1x128xf32> to vector<1x16xf32>
    %19 = arith.addf %15, %18 : vector<1x16xf32>
    %20 = vector.extract_strided_slice %7 {offsets = [0, 48], sizes = [1, 16], strides = [1, 1]} : vector<1x128xf32> to vector<1x16xf32>
    %21 = arith.addf %17, %20 : vector<1x16xf32>
    %cst_5 = arith.constant 0.001953125 : f32
    %22 = vector.broadcast %cst_5 : f32 to vector<1x16xf32>
    %23 = arith.mulf %19, %22 : vector<1x16xf32>
    %cst_6 = arith.constant 0.001953125 : f32
    %24 = vector.broadcast %cst_6 : f32 to vector<1x16xf32>
    %25 = arith.mulf %21, %24 : vector<1x16xf32>
    %26 = arith.mulf %23, %23 : vector<1x16xf32>
    %27 = arith.subf %25, %26 : vector<1x16xf32>
    %c0_7 = arith.constant 0 : index
    %c0_8 = arith.constant 0 : index
    %28 = vector.load %arg2[%c0_7, %c0_8] : memref<1x16xf32, #tpu.memory_space<vmem>>, vector<1x16xf32>
    %cst_9 = arith.constant 9.99999974E-6 : f32
    %29 = vector.broadcast %cst_9 : f32 to vector<1x16xf32>
    %30 = arith.addf %27, %29 : vector<1x16xf32>
    %31 = math.rsqrt %30 : vector<1x16xf32>
    %32 = arith.mulf %28, %31 : vector<1x16xf32>
    %c0_10 = arith.constant 0 : index
    %c0_11 = arith.constant 0 : index
    %33 = vector.load %arg3[%c0_10, %c0_11] : memref<1x16xf32, #tpu.memory_space<vmem>>, vector<1x16xf32>
    %34 = arith.mulf %23, %32 : vector<1x16xf32>
    %35 = arith.subf %33, %34 : vector<1x16xf32>
    %cst_12 = arith.constant 0.000000e+00 : f32
    %36 = vector.broadcast %cst_12 : f32 to vector<1x64xf32>
    %cst_13 = arith.constant 0.000000e+00 : f32
    %37 = vector.broadcast %cst_13 : f32 to vector<1x64xf32>
    %38 = tpu.concatenate %32, %32, %32, %32, %36 in 1 : vector<1x16xf32>, vector<1x16xf32>, vector<1x16xf32>, vector<1x16xf32>, vector<1x64xf32> -> vector<1x128xf32>
    %39 = tpu.concatenate %35, %35, %35, %35, %37 in 1 : vector<1x16xf32>, vector<1x16xf32>, vector<1x16xf32>, vector<1x16xf32>, vector<1x64xf32> -> vector<1x128xf32>
    %40 = vector.broadcast %38 : vector<1x128xf32> to vector<128x128xf32>
    %41 = arith.mulf %2, %40 : vector<128x128xf32>
    %42 = vector.broadcast %39 : vector<1x128xf32> to vector<128x128xf32>
    %43 = arith.addf %41, %42 : vector<128x128xf32>
    %cst_14 = arith.constant 0.000000e+00 : f32
    %44 = vector.broadcast %cst_14 : f32 to vector<128x128xf32>
    %45 = arith.maximumf %43, %44 : vector<128x128xf32>
    %46 = arith.truncf %45 : vector<128x128xf32> to vector<128x128xbf16>
    %c0_15 = arith.constant 0 : index
    %c0_16 = arith.constant 0 : index
    %47 = vector.load %arg4[%c0_15, %c0_16] : memref<128x128xbf16, #tpu.memory_space<vmem>>, vector<128x128xbf16>
    tpu.vector_store %arg4[%c0_15, %c0_16], %46 {strides = array<i32>} : memref<128x128xbf16, #tpu.memory_space<vmem>>, vector<128x128xbf16>,
    return
  }
}

module attributes {stable_mosaic.version = 11 : i64} {
  func.func @kernel(%arg0: memref<512x144xbf16, #tpu.memory_space<vmem>>, %arg1: memref<144x128xbf16, #tpu.memory_space<vmem>>, %arg2: memref<1x8xf32, #tpu.memory_space<vmem>>, %arg3: memref<1x8xf32, #tpu.memory_space<vmem>>, %arg4: memref<512x128xbf16, #tpu.memory_space<vmem>>) attributes {dimension_semantics = [], scalar_prefetch = 0 : i64, scratch_operands = 0 : i64, tpu.core_type = #tpu.core_type<tc>} {
    %c0 = arith.constant 0 : index
    %c0_0 = arith.constant 0 : index
    %0 = vector.load %arg0[%c0, %c0_0] : memref<512x144xbf16, #tpu.memory_space<vmem>>, vector<512x144xbf16>
    %c0_1 = arith.constant 0 : index
    %c0_2 = arith.constant 0 : index
    %1 = vector.load %arg1[%c0_1, %c0_2] : memref<144x128xbf16, #tpu.memory_space<vmem>>, vector<144x128xbf16>
    %cst = arith.constant dense<0.000000e+00> : vector<512x128xf32>
    %2 = tpu.matmul %0, %1, %cst {dimension_numbers = #tpu.dot_dimension_numbers<[1], [0], [0], [1], [0, 0, 1, 1], [], []>} : vector<512x144xbf16>, vector<144x128xbf16>, vector<512x128xf32> -> vector<512x128xf32>
    %cst_3 = arith.constant dense<0.000000e+00> : vector<128xf32>
    %3 = vector.multi_reduction <add>, %2, %cst_3 [0] : vector<512x128xf32> to vector<128xf32>
    %4 = vector.shape_cast %3 : vector<128xf32> to vector<1x128xf32>
    %5 = arith.mulf %2, %2 : vector<512x128xf32>
    %cst_4 = arith.constant dense<0.000000e+00> : vector<128xf32>
    %6 = vector.multi_reduction <add>, %5, %cst_4 [0] : vector<512x128xf32> to vector<128xf32>
    %7 = vector.shape_cast %6 : vector<128xf32> to vector<1x128xf32>
    %8 = vector.extract_strided_slice %4 {offsets = [0, 0], sizes = [1, 8], strides = [1, 1]} : vector<1x128xf32> to vector<1x8xf32>
    %9 = vector.extract_strided_slice %7 {offsets = [0, 0], sizes = [1, 8], strides = [1, 1]} : vector<1x128xf32> to vector<1x8xf32>
    %10 = vector.extract_strided_slice %4 {offsets = [0, 8], sizes = [1, 8], strides = [1, 1]} : vector<1x128xf32> to vector<1x8xf32>
    %11 = arith.addf %8, %10 : vector<1x8xf32>
    %12 = vector.extract_strided_slice %7 {offsets = [0, 8], sizes = [1, 8], strides = [1, 1]} : vector<1x128xf32> to vector<1x8xf32>
    %13 = arith.addf %9, %12 : vector<1x8xf32>
    %14 = vector.extract_strided_slice %4 {offsets = [0, 16], sizes = [1, 8], strides = [1, 1]} : vector<1x128xf32> to vector<1x8xf32>
    %15 = arith.addf %11, %14 : vector<1x8xf32>
    %16 = vector.extract_strided_slice %7 {offsets = [0, 16], sizes = [1, 8], strides = [1, 1]} : vector<1x128xf32> to vector<1x8xf32>
    %17 = arith.addf %13, %16 : vector<1x8xf32>
    %18 = vector.extract_strided_slice %4 {offsets = [0, 24], sizes = [1, 8], strides = [1, 1]} : vector<1x128xf32> to vector<1x8xf32>
    %19 = arith.addf %15, %18 : vector<1x8xf32>
    %20 = vector.extract_strided_slice %7 {offsets = [0, 24], sizes = [1, 8], strides = [1, 1]} : vector<1x128xf32> to vector<1x8xf32>
    %21 = arith.addf %17, %20 : vector<1x8xf32>
    %cst_5 = arith.constant 4.8828125E-4 : f32
    %22 = vector.broadcast %cst_5 : f32 to vector<1x8xf32>
    %23 = arith.mulf %19, %22 : vector<1x8xf32>
    %cst_6 = arith.constant 4.8828125E-4 : f32
    %24 = vector.broadcast %cst_6 : f32 to vector<1x8xf32>
    %25 = arith.mulf %21, %24 : vector<1x8xf32>
    %26 = arith.mulf %23, %23 : vector<1x8xf32>
    %27 = arith.subf %25, %26 : vector<1x8xf32>
    %c0_7 = arith.constant 0 : index
    %c0_8 = arith.constant 0 : index
    %28 = vector.load %arg2[%c0_7, %c0_8] : memref<1x8xf32, #tpu.memory_space<vmem>>, vector<1x8xf32>
    %cst_9 = arith.constant 9.99999974E-6 : f32
    %29 = vector.broadcast %cst_9 : f32 to vector<1x8xf32>
    %30 = arith.addf %27, %29 : vector<1x8xf32>
    %31 = math.rsqrt %30 : vector<1x8xf32>
    %32 = arith.mulf %28, %31 : vector<1x8xf32>
    %c0_10 = arith.constant 0 : index
    %c0_11 = arith.constant 0 : index
    %33 = vector.load %arg3[%c0_10, %c0_11] : memref<1x8xf32, #tpu.memory_space<vmem>>, vector<1x8xf32>
    %34 = arith.mulf %23, %32 : vector<1x8xf32>
    %35 = arith.subf %33, %34 : vector<1x8xf32>
    %cst_12 = arith.constant 0.000000e+00 : f32
    %36 = vector.broadcast %cst_12 : f32 to vector<1x96xf32>
    %cst_13 = arith.constant 0.000000e+00 : f32
    %37 = vector.broadcast %cst_13 : f32 to vector<1x96xf32>
    %38 = tpu.concatenate %32, %32, %32, %32, %36 in 1 : vector<1x8xf32>, vector<1x8xf32>, vector<1x8xf32>, vector<1x8xf32>, vector<1x96xf32> -> vector<1x128xf32>
    %39 = tpu.concatenate %35, %35, %35, %35, %37 in 1 : vector<1x8xf32>, vector<1x8xf32>, vector<1x8xf32>, vector<1x8xf32>, vector<1x96xf32> -> vector<1x128xf32>
    %40 = vector.broadcast %38 : vector<1x128xf32> to vector<512x128xf32>
    %41 = arith.mulf %2, %40 : vector<512x128xf32>
    %42 = vector.broadcast %39 : vector<1x128xf32> to vector<512x128xf32>
    %43 = arith.addf %41, %42 : vector<512x128xf32>
    %cst_14 = arith.constant 0.000000e+00 : f32
    %44 = vector.broadcast %cst_14 : f32 to vector<512x128xf32>
    %45 = arith.maximumf %43, %44 : vector<512x128xf32>
    %46 = arith.truncf %45 : vector<512x128xf32> to vector<512x128xbf16>
    %c0_15 = arith.constant 0 : index
    %c0_16 = arith.constant 0 : index
    %47 = vector.load %arg4[%c0_15, %c0_16] : memref<512x128xbf16, #tpu.memory_space<vmem>>, vector<512x128xbf16>
    tpu.vector_store %arg4[%c0_15, %c0_16], %46 {strides = array<i32>} : memref<512x128xbf16, #tpu.memory_space<vmem>>, vector<512x128xbf16>,
    return
  }
}

module attributes {stable_mosaic.version = 11 : i64} {
  func.func @_mm_tanh_kernel(%arg0: i32, %arg1: memref<512x72xbf16, #tpu.memory_space<vmem>>, %arg2: memref<72x128xbf16, #tpu.memory_space<vmem>>, %arg3: memref<512x128xf32, #tpu.memory_space<vmem>>) attributes {dimension_semantics = [#tpu.dimension_semantics<parallel>], iteration_bounds = array<i64: 4>, scalar_prefetch = 0 : i64, scratch_operands = 0 : i64, tpu.core_type = #tpu.core_type<tc>, window_params = [{transform_indices = @transform_0, window_bounds = array<i64: 512, 72>}, {pipeline_mode = #tpu.pipeline_mode<synchronous>, transform_indices = @transform_1, window_bounds = array<i64: 72, 128>}, {transform_indices = @transform_2, window_bounds = array<i64: 512, 128>}]} {
    %c0 = arith.constant 0 : index
    %c0_0 = arith.constant 0 : index
    %0 = vector.load %arg1[%c0, %c0_0] : memref<512x72xbf16, #tpu.memory_space<vmem>>, vector<512x72xbf16>
    %c0_1 = arith.constant 0 : index
    %c0_2 = arith.constant 0 : index
    %1 = vector.load %arg2[%c0_1, %c0_2] : memref<72x128xbf16, #tpu.memory_space<vmem>>, vector<72x128xbf16>
    %cst = arith.constant dense<0.000000e+00> : vector<512x128xf32>
    %2 = tpu.matmul %0, %1, %cst {dimension_numbers = #tpu.dot_dimension_numbers<[1], [0], [0], [1], [0, 0, 1, 1], [], []>} : vector<512x72xbf16>, vector<72x128xbf16>, vector<512x128xf32> -> vector<512x128xf32>
    %3 = math.tanh %2 : vector<512x128xf32>
    %c0_3 = arith.constant 0 : index
    %c0_4 = arith.constant 0 : index
    %4 = vector.load %arg3[%c0_3, %c0_4] : memref<512x128xf32, #tpu.memory_space<vmem>>, vector<512x128xf32>
    tpu.vector_store %arg3[%c0_3, %c0_4], %3 {strides = array<i32>} : memref<512x128xf32, #tpu.memory_space<vmem>>, vector<512x128xf32>,
    return
  }
  func.func @transform_0(%arg0: i32) -> (i32, i32) {
    %c0_i32 = arith.constant 0 : i32
    %c0_i32_0 = arith.constant 0 : i32
    return %arg0, %c0_i32 : i32, i32
  }
  func.func @transform_1(%arg0: i32) -> (i32, i32) {
    %c0_i32 = arith.constant 0 : i32
    %c0_i32_0 = arith.constant 0 : i32
    %c0_i32_1 = arith.constant 0 : i32
    return %c0_i32, %c0_i32_0 : i32, i32
  }
  func.func @transform_2(%arg0: i32) -> (i32, i32) {
    %c0_i32 = arith.constant 0 : i32
    %c0_i32_0 = arith.constant 0 : i32
    return %arg0, %c0_i32 : i32, i32
  }
}

</mosaic_0001>

<llo_original>
// kernel: generator_forward.5
$region0: #{generator_forward.5}
  #allocation0 [shape = 'u32[]', space=smem, size = 0x4, offset = 0x4, fixed_abs, tag = 'smem constant byte address 0x4 - core index']
  #allocation1 [shape = 'u32[144,128]{1,0:T(1,128)}', space=vmem, size = 0x12000, scoped, tag = 'internal scratch']
  %s0 = inlined_call_operand.vmem [shape: bf16[2,32], index: 0, kind: input, shape index: {}]
  %s1 = inlined_call_operand.hbm [shape: bf16[32,1024], index: 1, kind: input, shape index: {}]
  %s2 = inlined_call_operand.hbm [shape: f32[1,64], index: 2, kind: input, shape index: {}]
  %s3 = inlined_call_operand.hbm [shape: f32[1,64], index: 3, kind: input, shape index: {}]
  %s4 = inlined_call_operand.vmem [shape: bf16[2,1024], index: 4, kind: output, shape index: {}]
  %s5 = sld [smem:[#allocation0]]
  $region38: #{generator_forward.5} parent=0
    _
  %s7 = ssub.s32 1, %s5
  %s8 = scalar_select 0, %s7, %s5
  $region1: #{generator_forward.5} parent=0
    #allocation2 [shape = 'u8[65536]{0}', space=vmem, size = 0x10000, scoped, tag = 'input window, operand 1, single buffered']
    #allocation3 [shape = 's32[1]{0}', space=sflag, size = 0x4, scoped, tag = 'scoped memory for generator_forward.5']
    #allocation4 [shape = 'u8[512]{0}', space=vmem, size = 0x400, scoped, tag = 'input window, operand 2, single buffered']
    #allocation5 [shape = 's32[1]{0}', space=sflag, size = 0x4, scoped, tag = 'scoped memory for generator_forward.5']
    #allocation6 [shape = 'u8[512]{0}', space=vmem, size = 0x400, scoped, tag = 'input window, operand 3, single buffered']
    %9 = vsyncpa [#allocation3], 0
    %10 = vsyncpa [#allocation5], 0
    // Predicated region
    $region2: #{generator_forward.5} parent=1 // pred_check
      _
    $region3: #{generator_forward.5} parent=1 // pred_check_branch
      %12 = sbr.rel (0) target = $region5
    $region4: #{generator_forward.5} parent=1 // pred_region
      _
    $region5: #{generator_forward.5} parent=1 // pred_fallthru
      _
    // Predicated region
    $region6: #{generator_forward.5} parent=1 // pred_check
      _
    $region7: #{generator_forward.5} parent=1 // pred_check_branch
      %14 = sbr.rel (0) target = $region9
    $region8: #{generator_forward.5} parent=1 // pred_region
      %s16 = ssub.s32 2048, 2048
      %17 = vsyncadd [#allocation3], %s16
      %s18 = sshll.u32 [#allocation2], 4
      %s19 = int_to_ptr.vmem [resolvable:$true] %s18
      %24 = dma.hbm_to_vmem [thread:$0]  %s1, 2048, %s19, [#allocation3], 512, 512, 32
    $region9: #{generator_forward.5} parent=1 // pred_fallthru
      _
    // Predicated region
    $region10: #{generator_forward.5} parent=1 // pred_check
      _
    $region11: #{generator_forward.5} parent=1 // pred_check_branch
      %26 = sbr.rel (0) target = $region13
    $region12: #{generator_forward.5} parent=1 // pred_region
      %s28 = ssub.s32 16, 16
      %29 = vsyncadd [#allocation5], %s28
      %s31 = sshll.u32 [#allocation4], 4
      %s32 = int_to_ptr.vmem [resolvable:$true] %s31
      %34 = dma.hbm_to_vmem [thread:$0]  %s2, 16, %s32, [#allocation5]
    $region13: #{generator_forward.5} parent=1 // pred_fallthru
      _
    // Predicated region
    $region14: #{generator_forward.5} parent=1 // pred_check
      _
    $region15: #{generator_forward.5} parent=1 // pred_check_branch
      %36 = sbr.rel (0) target = $region17
    $region16: #{generator_forward.5} parent=1 // pred_region
      %s38 = ssub.s32 16, 16
      %39 = vsyncadd [#allocation5], %s38
      %s41 = sshll.u32 [#allocation6], 4
      %s42 = int_to_ptr.vmem [resolvable:$true] %s41
      %44 = dma.hbm_to_vmem [thread:$0]  %s3, 16, %s42, [#allocation5]
    $region17: #{generator_forward.5} parent=1 // pred_fallthru
      _
    // Predicated region
    $region18: #{generator_forward.5} parent=1 // pred_check
      _
    $region19: #{generator_forward.5} parent=1 // pred_check_branch
      %46 = sbr.rel (0) target = $region21
    $region20: #{generator_forward.5} parent=1 // pred_region
      %47 = dma.done [#allocation3], 2048
    $region21: #{generator_forward.5} parent=1 // pred_fallthru
      _
    // Predicated region
    $region22: #{generator_forward.5} parent=1 // pred_check
      _
    $region23: #{generator_forward.5} parent=1 // pred_check_branch
      %49 = sbr.rel (0) target = $region25
    $region24: #{generator_forward.5} parent=1 // pred_region
      %50 = dma.done [#allocation5], 16
    $region25: #{generator_forward.5} parent=1 // pred_fallthru
      _
    // Predicated region
    $region26: #{generator_forward.5} parent=1 // pred_check
      _
    $region27: #{generator_forward.5} parent=1 // pred_check_branch
      %52 = sbr.rel (0) target = $region29
    $region28: #{generator_forward.5} parent=1 // pred_region
      %53 = dma.done [#allocation5], 16
    $region29: #{generator_forward.5} parent=1 // pred_fallthru
      _
    %v55 = vld [vmem:[%s0] sm:$0x1]
    %v56 = vld [vmem:[#allocation2] sm:$0xff]
    %v57 = vld [vmem:[#allocation2 + $0x8] sm:$0xff]
    %v58 = vld [vmem:[#allocation2 + $0x10] sm:$0xff]
    %v59 = vld [vmem:[#allocation2 + $0x18] sm:$0xff]
    %v60 = vld [vmem:[#allocation2 + $0x20] sm:$0xff]
    %v61 = vld [vmem:[#allocation2 + $0x28] sm:$0xff]
    %v62 = vld [vmem:[#allocation2 + $0x30] sm:$0xff]
    %v63 = vld [vmem:[#allocation2 + $0x38] sm:$0xff]
    %v64 = vld [vmem:[#allocation2 + $0x40] sm:$0xff]
    %v65 = vld [vmem:[#allocation2 + $0x48] sm:$0xff]
    %v66 = vld [vmem:[#allocation2 + $0x50] sm:$0xff]
    %v67 = vld [vmem:[#allocation2 + $0x58] sm:$0xff]
    %v68 = vld [vmem:[#allocation2 + $0x60] sm:$0xff]
    %v69 = vld [vmem:[#allocation2 + $0x68] sm:$0xff]
    %v70 = vld [vmem:[#allocation2 + $0x70] sm:$0xff]
    %v71 = vld [vmem:[#allocation2 + $0x78] sm:$0xff]
    %v88 = vunpack.c.l.b16 %v56
    %v89 = vunpack.c.h.b16 %v56
    %v90 = vunpack.c.l.b16 %v57
    %v91 = vunpack.c.h.b16 %v57
    %v92 = vunpack.c.l.b16 %v58
    %v93 = vunpack.c.h.b16 %v58
    %v94 = vunpack.c.l.b16 %v59
    %v95 = vunpack.c.h.b16 %v59
    %v96 = vunpack.c.l.b16 %v60
    %v97 = vunpack.c.h.b16 %v60
    %v98 = vunpack.c.l.b16 %v61
    %v99 = vunpack.c.h.b16 %v61
    %v100 = vunpack.c.l.b16 %v62
    %v101 = vunpack.c.h.b16 %v62
    %v102 = vunpack.c.l.b16 %v63
    %v103 = vunpack.c.h.b16 %v63
    %v104 = vunpack.c.l.b16 %v64
    %v105 = vunpack.c.h.b16 %v64
    %v106 = vunpack.c.l.b16 %v65
    %v107 = vunpack.c.h.b16 %v65
    %v108 = vunpack.c.l.b16 %v66
    %v109 = vunpack.c.h.b16 %v66
    %v110 = vunpack.c.l.b16 %v67
    %v111 = vunpack.c.h.b16 %v67
    %v112 = vunpack.c.l.b16 %v68
    %v113 = vunpack.c.h.b16 %v68
    %v114 = vunpack.c.l.b16 %v69
    %v115 = vunpack.c.h.b16 %v69
    %v116 = vunpack.c.l.b16 %v70
    %v117 = vunpack.c.h.b16 %v70
    %v118 = vunpack.c.l.b16 %v71
    %v119 = vunpack.c.h.b16 %v71
    %v120 = vpack.c.b16 %v96, %v88
    %v121 = vpack.c.b16 %v97, %v89
    %v122 = vpack.c.b16 %v98, %v90
    %v123 = vpack.c.b16 %v99, %v91
    %v124 = vpack.c.b16 %v100, %v92
    %v125 = vpack.c.b16 %v101, %v93
    %v126 = vpack.c.b16 %v102, %v94
    %v127 = vpack.c.b16 %v103, %v95
    %v128 = vpack.c.b16 %v112, %v104
    %v129 = vpack.c.b16 %v113, %v105
    %v130 = vpack.c.b16 %v114, %v106
    %v131 = vpack.c.b16 %v115, %v107
    %v132 = vpack.c.b16 %v116, %v108
    %v133 = vpack.c.b16 %v117, %v109
    %v134 = vpack.c.b16 %v118, %v110
    %v135 = vpack.c.b16 %v119, %v111
    %vm152 = vcmask 261120
    %v154 = vsel %vm152, %v55, 0
    %156 = vmatprep.subr.bf16.mxu0 0
    %157 = vmatpush1.bf16.msra.mxu0 0
    %158 = vmatprep.subr.bf16.mxu0 0
    %159 = vmatpush1.bf16.msra.mxu0 0
    %160 = vmatprep.subr.bf16.mxu0 0
    %161 = vmatpush1.bf16.msra.mxu0 0
    %162 = vmatprep.subr.bf16.mxu0 0
    %163 = vmatpush1.bf16.msra.mxu0 0
    %164 = vmatprep.subr.bf16.mxu0 0
    %165 = vmatpush1.bf16.msra.mxu0 0
    %166 = vmatprep.subr.bf16.mxu0 0
    %167 = vmatpush1.bf16.msra.mxu0 0
    %168 = vmatprep.subr.bf16.mxu0 %v129
    %169 = vmatpush1.bf16.msra.mxu0 %v128
    %170 = vmatprep.subr.bf16.mxu0 %v121
    %171 = vmatpush1.bf16.msra.mxu0 %v120
    %172 = vmatprep.subr.bf16.mxu0 0
    %173 = vmatpush2.bf16.msra.mxu0 0
    %174 = vmatprep.subr.bf16.mxu0 0
    %175 = vmatpush2.bf16.msra.mxu0 0
    %176 = vmatprep.subr.bf16.mxu0 0
    %177 = vmatpush2.bf16.msra.mxu0 0
    %178 = vmatprep.subr.bf16.mxu0 0
    %179 = vmatpush2.bf16.msra.mxu0 0
    %180 = vmatprep.subr.bf16.mxu0 0
    %181 = vmatpush2.bf16.msra.mxu0 0
    %182 = vmatprep.subr.bf16.mxu0 0
    %183 = vmatpush2.bf16.msra.mxu0 0
    %184 = vmatprep.subr.bf16.mxu0 0
    %185 = vmatpush2.bf16.msra.mxu0 0
    %186 = vmatprep.subr.bf16.mxu0 0
    %187 = vmatpush2.bf16.msra.mxu0 0
    %188 = vmatprep.mubr.bf16.mxu0 0
    %189 = vmatmul.mubr.bf16.gmra.mxu0 %v154
    %v190 = vpop.f32.mrf.mxu0
    %v191 = vadd.f32 0.0, %v190
    %v192 = vpop.f32.mrf.mxu0
    %v193 = vadd.f32 0.0, %v192
    %v194 = vpop.f32.mrf.mxu0
    %v195 = vpop.f32.mrf.mxu0
    %196 = vdwg.mxu0
    %197 = vmatprep.subr.bf16.mxu0 0
    %198 = vmatpush1.bf16.msra.mxu0 0
    %199 = vmatprep.subr.bf16.mxu0 0
    %200 = vmatpush1.bf16.msra.mxu0 0
    %201 = vmatprep.subr.bf16.mxu0 0
    %202 = vmatpush1.bf16.msra.mxu0 0
    %203 = vmatprep.subr.bf16.mxu0 0
    %204 = vmatpush1.bf16.msra.mxu0 0
    %205 = vmatprep.subr.bf16.mxu0 0
    %206 = vmatpush1.bf16.msra.mxu0 0
    %207 = vmatprep.subr.bf16.mxu0 0
    %208 = vmatpush1.bf16.msra.mxu0 0
    %209 = vmatprep.subr.bf16.mxu0 %v131
    %210 = vmatpush1.bf16.msra.mxu0 %v130
    %211 = vmatprep.subr.bf16.mxu0 %v123
    %212 = vmatpush1.bf16.msra.mxu0 %v122
    %213 = vmatprep.subr.bf16.mxu0 0
    %214 = vmatpush2.bf16.msra.mxu0 0
    %215 = vmatprep.subr.bf16.mxu0 0
    %216 = vmatpush2.bf16.msra.mxu0 0
    %217 = vmatprep.subr.bf16.mxu0 0
    %218 = vmatpush2.bf16.msra.mxu0 0
    %219 = vmatprep.subr.bf16.mxu0 0
    %220 = vmatpush2.bf16.msra.mxu0 0
    %221 = vmatprep.subr.bf16.mxu0 0
    %222 = vmatpush2.bf16.msra.mxu0 0
    %223 = vmatprep.subr.bf16.mxu0 0
    %224 = vmatpush2.bf16.msra.mxu0 0
    %225 = vmatprep.subr.bf16.mxu0 0
    %226 = vmatpush2.bf16.msra.mxu0 0
    %227 = vmatprep.subr.bf16.mxu0 0
    %228 = vmatpush2.bf16.msra.mxu0 0
    %229 = vmatprep.mubr.bf16.mxu0 0
    %230 = vmatmul.mubr.bf16.gmra.mxu0 %v154
    %v231 = vpop.f32.mrf.mxu0
    %v232 = vadd.f32 0.0, %v231
    %v233 = vpop.f32.mrf.mxu0
    %v234 = vadd.f32 0.0, %v233
    %v235 = vpop.f32.mrf.mxu0
    %v236 = vpop.f32.mrf.mxu0
    %237 = vdwg.mxu0
    %238 = vmatprep.subr.bf16.mxu0 0
    %239 = vmatpush1.bf16.msra.mxu0 0
    %240 = vmatprep.subr.bf16.mxu0 0
    %241 = vmatpush1.bf16.msra.mxu0 0
    %242 = vmatprep.subr.bf16.mxu0 0
    %243 = vmatpush1.bf16.msra.mxu0 0
    %244 = vmatprep.subr.bf16.mxu0 0
    %245 = vmatpush1.bf16.msra.mxu0 0
    %246 = vmatprep.subr.bf16.mxu0 0
    %247 = vmatpush1.bf16.msra.mxu0 0
    %248 = vmatprep.subr.bf16.mxu0 0
    %249 = vmatpush1.bf16.msra.mxu0 0
    %250 = vmatprep.subr.bf16.mxu0 %v133
    %251 = vmatpush1.bf16.msra.mxu0 %v132
    %252 = vmatprep.subr.bf16.mxu0 %v125
    %253 = vmatpush1.bf16.msra.mxu0 %v124
    %254 = vmatprep.subr.bf16.mxu0 0
    %255 = vmatpush2.bf16.msra.mxu0 0
    %256 = vmatprep.subr.bf16.mxu0 0
    %257 = vmatpush2.bf16.msra.mxu0 0
    %258 = vmatprep.subr.bf16.mxu0 0
    %259 = vmatpush2.bf16.msra.mxu0 0
    %260 = vmatprep.subr.bf16.mxu0 0
    %261 = vmatpush2.bf16.msra.mxu0 0
    %262 = vmatprep.subr.bf16.mxu0 0
    %263 = vmatpush2.bf16.msra.mxu0 0
    %264 = vmatprep.subr.bf16.mxu0 0
    %265 = vmatpush2.bf16.msra.mxu0 0
    %266 = vmatprep.subr.bf16.mxu0 0
    %267 = vmatpush2.bf16.msra.mxu0 0
    %268 = vmatprep.subr.bf16.mxu0 0
    %269 = vmatpush2.bf16.msra.mxu0 0
    %270 = vmatprep.mubr.bf16.mxu0 0
    %271 = vmatmul.mubr.bf16.gmra.mxu0 %v154
    %v272 = vpop.f32.mrf.mxu0
    %v273 = vadd.f32 0.0, %v272
    %v274 = vpop.f32.mrf.mxu0
    %v275 = vadd.f32 0.0, %v274
    %v276 = vpop.f32.mrf.mxu0
    %v277 = vpop.f32.mrf.mxu0
    %278 = vdwg.mxu0
    %279 = vmatprep.subr.bf16.mxu0 0
    %280 = vmatpush1.bf16.msra.mxu0 0
    %281 = vmatprep.subr.bf16.mxu0 0
    %282 = vmatpush1.bf16.msra.mxu0 0
    %283 = vmatprep.subr.bf16.mxu0 0
    %284 = vmatpush1.bf16.msra.mxu0 0
    %285 = vmatprep.subr.bf16.mxu0 0
    %286 = vmatpush1.bf16.msra.mxu0 0
    %287 = vmatprep.subr.bf16.mxu0 0
    %288 = vmatpush1.bf16.msra.mxu0 0
    %289 = vmatprep.subr.bf16.mxu0 0
    %290 = vmatpush1.bf16.msra.mxu0 0
    %291 = vmatprep.subr.bf16.mxu0 %v135
    %292 = vmatpush1.bf16.msra.mxu0 %v134
    %293 = vmatprep.subr.bf16.mxu0 %v127
    %294 = vmatpush1.bf16.msra.mxu0 %v126
    %295 = vmatprep.subr.bf16.mxu0 0
    %296 = vmatpush2.bf16.msra.mxu0 0
    %297 = vmatprep.subr.bf16.mxu0 0
    %298 = vmatpush2.bf16.msra.mxu0 0
    %299 = vmatprep.subr.bf16.mxu0 0
    %300 = vmatpush2.bf16.msra.mxu0 0
    %301 = vmatprep.subr.bf16.mxu0 0
    %302 = vmatpush2.bf16.msra.mxu0 0
    %303 = vmatprep.subr.bf16.mxu0 0
    %304 = vmatpush2.bf16.msra.mxu0 0
    %305 = vmatprep.subr.bf16.mxu0 0
    %306 = vmatpush2.bf16.msra.mxu0 0
    %307 = vmatprep.subr.bf16.mxu0 0
    %308 = vmatpush2.bf16.msra.mxu0 0
    %309 = vmatprep.subr.bf16.mxu0 0
    %310 = vmatpush2.bf16.msra.mxu0 0
    %311 = vmatprep.mubr.bf16.mxu0 0
    %312 = vmatmul.mubr.bf16.gmra.mxu0 %v154
    %v313 = vpop.f32.mrf.mxu0
    %v314 = vadd.f32 0.0, %v313
    %v315 = vpop.f32.mrf.mxu0
    %v316 = vadd.f32 0.0, %v315
    %v317 = vpop.f32.mrf.mxu0
    %v318 = vpop.f32.mrf.mxu0
    %319 = vdwg.mxu0
    %vm320 = vcmask 1041408
    %v321 = vsel %vm320, %v191, 0.0
    %v322 = vrot.slane %v321, 4
    %v323 = vadd.f32 %v321, %v322
    %v324 = vrot.slane %v323, 2
    %v325 = vadd.f32 %v323, %v324
    %v326 = vrot.slane %v325, 1
    %v327 = vadd.f32 %v325, %v326
    %v328 = vsel %vm320, %v193, 0.0
    %v329 = vrot.slane %v328, 4
    %v330 = vadd.f32 %v328, %v329
    %v331 = vrot.slane %v330, 2
    %v332 = vadd.f32 %v330, %v331
    %v333 = vrot.slane %v332, 1
    %v334 = vadd.f32 %v332, %v333
    %v335 = vsel %vm320, %v232, 0.0
    %v336 = vrot.slane %v335, 4
    %v337 = vadd.f32 %v335, %v336
    %v338 = vrot.slane %v337, 2
    %v339 = vadd.f32 %v337, %v338
    %v340 = vrot.slane %v339, 1
    %v341 = vadd.f32 %v339, %v340
    %v342 = vsel %vm320, %v234, 0.0
    %v343 = vrot.slane %v342, 4
    %v344 = vadd.f32 %v342, %v343
    %v345 = vrot.slane %v344, 2
    %v346 = vadd.f32 %v344, %v345
    %v347 = vrot.slane %v346, 1
    %v348 = vadd.f32 %v346, %v347
    %v349 = vsel %vm320, %v273, 0.0
    %v350 = vrot.slane %v349, 4
    %v351 = vadd.f32 %v349, %v350
    %v352 = vrot.slane %v351, 2
    %v353 = vadd.f32 %v351, %v352
    %v354 = vrot.slane %v353, 1
    %v355 = vadd.f32 %v353, %v354
    %v356 = vsel %vm320, %v275, 0.0
    %v357 = vrot.slane %v356, 4
    %v358 = vadd.f32 %v356, %v357
    %v359 = vrot.slane %v358, 2
    %v360 = vadd.f32 %v358, %v359
    %v361 = vrot.slane %v360, 1
    %v362 = vadd.f32 %v360, %v361
    %v363 = vsel %vm320, %v314, 0.0
    %v364 = vrot.slane %v363, 4
    %v365 = vadd.f32 %v363, %v364
    %v366 = vrot.slane %v365, 2
    %v367 = vadd.f32 %v365, %v366
    %v368 = vrot.slane %v367, 1
    %v369 = vadd.f32 %v367, %v368
    %v370 = vsel %vm320, %v316, 0.0
    %v371 = vrot.slane %v370, 4
    %v372 = vadd.f32 %v370, %v371
    %v373 = vrot.slane %v372, 2
    %v374 = vadd.f32 %v372, %v373
    %v375 = vrot.slane %v374, 1
    %v376 = vadd.f32 %v374, %v375
    %v377 = vmul.f32 %v191, %v191
    %v378 = vmul.f32 %v193, %v193
    %v379 = vmul.f32 %v232, %v232
    %v380 = vmul.f32 %v234, %v234
    %v381 = vmul.f32 %v273, %v273
    %v382 = vmul.f32 %v275, %v275
    %v383 = vmul.f32 %v314, %v314
    %v384 = vmul.f32 %v316, %v316
    %v385 = vsel %vm320, %v377, 0.0
    %v386 = vrot.slane %v385, 4
    %v387 = vadd.f32 %v385, %v386
    %v388 = vrot.slane %v387, 2
    %v389 = vadd.f32 %v387, %v388
    %v390 = vrot.slane %v389, 1
    %v391 = vadd.f32 %v389, %v390
    %v392 = vsel %vm320, %v378, 0.0
    %v393 = vrot.slane %v392, 4
    %v394 = vadd.f32 %v392, %v393
    %v395 = vrot.slane %v394, 2
    %v396 = vadd.f32 %v394, %v395
    %v397 = vrot.slane %v396, 1
    %v398 = vadd.f32 %v396, %v397
    %v399 = vsel %vm320, %v379, 0.0
    %v400 = vrot.slane %v399, 4
    %v401 = vadd.f32 %v399, %v400
    %v402 = vrot.slane %v401, 2
    %v403 = vadd.f32 %v401, %v402
    %v404 = vrot.slane %v403, 1
    %v405 = vadd.f32 %v403, %v404
    %v406 = vsel %vm320, %v380, 0.0
    %v407 = vrot.slane %v406, 4
    %v408 = vadd.f32 %v406, %v407
    %v409 = vrot.slane %v408, 2
    %v410 = vadd.f32 %v408, %v409
    %v411 = vrot.slane %v410, 1
    %v412 = vadd.f32 %v410, %v411
    %v413 = vsel %vm320, %v381, 0.0
    %v414 = vrot.slane %v413, 4
    %v415 = vadd.f32 %v413, %v414
    %v416 = vrot.slane %v415, 2
    %v417 = vadd.f32 %v415, %v416
    %v418 = vrot.slane %v417, 1
    %v419 = vadd.f32 %v417, %v418
    %v420 = vsel %vm320, %v382, 0.0
    %v421 = vrot.slane %v420, 4
    %v422 = vadd.f32 %v420, %v421
    %v423 = vrot.slane %v422, 2
    %v424 = vadd.f32 %v422, %v423
    %v425 = vrot.slane %v424, 1
    %v426 = vadd.f32 %v424, %v425
    %v427 = vsel %vm320, %v383, 0.0
    %v428 = vrot.slane %v427, 4
    %v429 = vadd.f32 %v427, %v428
    %v430 = vrot.slane %v429, 2
    %v431 = vadd.f32 %v429, %v430
    %v432 = vrot.slane %v431, 1
    %v433 = vadd.f32 %v431, %v432
    %v434 = vsel %vm320, %v384, 0.0
    %v435 = vrot.slane %v434, 4
    %v436 = vadd.f32 %v434, %v435
    %v437 = vrot.slane %v436, 2
    %v438 = vadd.f32 %v436, %v437
    %v439 = vrot.slane %v438, 1
    %v440 = vadd.f32 %v438, %v439
    %442 = vrot.lane.b32.xlu0 %v327, 64
    %v443 = vpop.permute.xlu0 %442
    %v445 = vadd.f32 %v327, %v443
    %447 = vrot.lane.b32.xlu0 %v391, 64
    %v448 = vpop.permute.xlu0 %447
    %v450 = vadd.f32 %v391, %v448
    %v451 = vadd.f32 %v445, %v334
    %v452 = vadd.f32 %v450, %v398
    %454 = vrot.lane.b32.xlu0 %v334, 64
    %v455 = vpop.permute.xlu0 %454
    %v457 = vadd.f32 %v451, %v455
    %459 = vrot.lane.b32.xlu0 %v398, 64
    %v460 = vpop.permute.xlu0 %459
    %v462 = vadd.f32 %v452, %v460
    %v463 = vadd.f32 %v457, %v341
    %v464 = vadd.f32 %v462, %v405
    %466 = vrot.lane.b32.xlu0 %v341, 64
    %v467 = vpop.permute.xlu0 %466
    %v469 = vadd.f32 %v463, %v467
    %471 = vrot.lane.b32.xlu0 %v405, 64
    %v472 = vpop.permute.xlu0 %471
    %v474 = vadd.f32 %v464, %v472
    %v475 = vadd.f32 %v469, %v348
    %v476 = vadd.f32 %v474, %v412
    %478 = vrot.lane.b32.xlu0 %v348, 64
    %v479 = vpop.permute.xlu0 %478
    %v481 = vadd.f32 %v475, %v479
    %483 = vrot.lane.b32.xlu0 %v412, 64
    %v484 = vpop.permute.xlu0 %483
    %v486 = vadd.f32 %v476, %v484
    %v487 = vadd.f32 %v481, %v355
    %v488 = vadd.f32 %v486, %v419
    %490 = vrot.lane.b32.xlu0 %v355, 64
    %v491 = vpop.permute.xlu0 %490
    %v493 = vadd.f32 %v487, %v491
    %495 = vrot.lane.b32.xlu0 %v419, 64
    %v496 = vpop.permute.xlu0 %495
    %v498 = vadd.f32 %v488, %v496
    %v499 = vadd.f32 %v493, %v362
    %v500 = vadd.f32 %v498, %v426
    %502 = vrot.lane.b32.xlu0 %v362, 64
    %v503 = vpop.permute.xlu0 %502
    %v505 = vadd.f32 %v499, %v503
    %507 = vrot.lane.b32.xlu0 %v426, 64
    %v508 = vpop.permute.xlu0 %507
    %v510 = vadd.f32 %v500, %v508
    %v511 = vadd.f32 %v505, %v369
    %v512 = vadd.f32 %v510, %v433
    %514 = vrot.lane.b32.xlu0 %v369, 64
    %v515 = vpop.permute.xlu0 %514
    %v517 = vadd.f32 %v511, %v515
    %519 = vrot.lane.b32.xlu0 %v433, 64
    %v520 = vpop.permute.xlu0 %519
    %v522 = vadd.f32 %v512, %v520
    %v523 = vadd.f32 %v517, %v376
    %v524 = vadd.f32 %v522, %v440
    %526 = vrot.lane.b32.xlu0 %v376, 64
    %v527 = vpop.permute.xlu0 %526
    %v529 = vadd.f32 %v523, %v527
    %531 = vrot.lane.b32.xlu0 %v440, 64
    %v532 = vpop.permute.xlu0 %531
    %v534 = vadd.f32 %v524, %v532
    %v535 = vmul.f32 %v529, 0.03125
    %v536 = vmul.f32 %v534, 0.03125
    %v537 = vmul.f32 %v535, %v535
    %v538 = vsub.f32 %v536, %v537
    %v539 = vld [vmem:[#allocation4] sm:$0x1]
    %v540 = vadd.f32 %v538, 1e-05
    %v541 = vrsqrt.pop %v540
    %v542 = vmul.f32 %v539, %v541
    %v543 = vld [vmem:[#allocation6] sm:$0x1]
    %v544 = vmul.f32 %v535, %v542
    %v545 = vsub.f32 %v543, %v544
    %v547 = vlaneseq
    %v548 = vshrl.u32 %v547, 7
    %v549 = vsub.s32 0, %v548
    %v550 = vrot.slane %v542, %v549
    %551 = vrot.lane.b32.xlu0 %v550, 64
    %v552 = vpop.permute.xlu0 %551
    %vm554 = vcmask 523264
    %v555 = vsel %vm554, %v542, %v552
    %v557 = vlaneseq
    %v558 = vshrl.u32 %v557, 7
    %v559 = vsub.s32 0, %v558
    %v560 = vrot.slane %v545, %v559
    %561 = vrot.lane.b32.xlu0 %v560, 64
    %v562 = vpop.permute.xlu0 %561
    %v564 = vsel %vm554, %v545, %v562
    %v565 = vlaneseq
    %v566 = vshrl.u32 %v565, 7
    %v567 = vsub.s32 0, %v566
    %v568 = vrot.slane %v555, %v567
    %v569 = vmul.f32 %v191, %v568
    %v570 = vmul.f32 %v193, %v568
    %v571 = vmul.f32 %v232, %v568
    %v572 = vmul.f32 %v234, %v568
    %v573 = vmul.f32 %v273, %v568
    %v574 = vmul.f32 %v275, %v568
    %v575 = vmul.f32 %v314, %v568
    %v576 = vmul.f32 %v316, %v568
    %v577 = vlaneseq
    %v578 = vshrl.u32 %v577, 7
    %v579 = vsub.s32 0, %v578
    %v580 = vrot.slane %v564, %v579
    %v581 = vadd.f32 %v569, %v580
    %v582 = vadd.f32 %v570, %v580
    %v583 = vadd.f32 %v571, %v580
    %v584 = vadd.f32 %v572, %v580
    %v585 = vadd.f32 %v573, %v580
    %v586 = vadd.f32 %v574, %v580
    %v587 = vadd.f32 %v575, %v580
    %v588 = vadd.f32 %v576, %v580
    %v589 = vmax.f32 %v581, 0.0
    %v590 = vmax.f32 %v582, 0.0
    %v591 = vmax.f32 %v583, 0.0
    %v592 = vmax.f32 %v584, 0.0
    %v593 = vmax.f32 %v585, 0.0
    %v594 = vmax.f32 %v586, 0.0
    %v595 = vmax.f32 %v587, 0.0
    %v596 = vmax.f32 %v588, 0.0
    %v597 = vpack.c.bf16 %v589, %v589
    %v598 = vpack.c.bf16 %v590, %v590
    %v599 = vpack.c.bf16 %v591, %v591
    %v600 = vpack.c.bf16 %v592, %v592
    %v601 = vpack.c.bf16 %v593, %v593
    %v602 = vpack.c.bf16 %v594, %v594
    %v603 = vpack.c.bf16 %v595, %v595
    %v604 = vpack.c.bf16 %v596, %v596
    %v613 = vcombine.low %v597, %v598
    %v614 = vcombine.low %v599, %v600
    %v615 = vcombine.low %v601, %v602
    %v616 = vcombine.low %v603, %v604
    %v618 = vunpack.c.l.s4 1966171168
    %v619 = vunpack.c.0.s8 %v618
    %v620 = vlaneseq
    %v621 = vshrl.u32 %v620, 7
    %v622 = vsub.s32 %v619, %v621
    %v623 = vrot.slane %v613, %v622
    %v625 = vunpack.c.l.s4 1966171168
    %v626 = vunpack.c.0.s8 %v625
    %v627 = vlaneseq
    %v628 = vshrl.u32 %v627, 7
    %v629 = vsub.s32 %v626, %v628
    %v630 = vrot.slane %v614, %v629
    %v632 = vunpack.c.l.s4 1966171168
    %v633 = vunpack.c.0.s8 %v632
    %v634 = vlaneseq
    %v635 = vshrl.u32 %v634, 7
    %v636 = vsub.s32 %v633, %v635
    %v637 = vrot.slane %v615, %v636
    %v639 = vunpack.c.l.s4 1966171168
    %v640 = vunpack.c.0.s8 %v639
    %v641 = vlaneseq
    %v642 = vshrl.u32 %v641, 7
    %v643 = vsub.s32 %v640, %v642
    %v644 = vrot.slane %v616, %v643
    %v645 = vcombine.low %v623, %v630
    %v646 = vcombine.low %v637, %v644
    %v648 = vunpack.c.l.s4 1966171168
    %v649 = vunpack.c.0.s8 %v648
    %v650 = vlaneseq
    %v651 = vshrl.u32 %v650, 7
    %v652 = vsub.s32 %v649, %v651
    %v653 = vrot.slane %v645, %v652
    %v655 = vunpack.c.l.s4 1966171168
    %v656 = vunpack.c.0.s8 %v655
    %v657 = vlaneseq
    %v658 = vshrl.u32 %v657, 7
    %v659 = vsub.s32 %v656, %v658
    %v660 = vrot.slane %v646, %v659
    %v661 = vcombine.low %v653, %v660
    %663 = vst [vmem:[%s4] sm:$0xff] %v661
    // Predicated region
    $region30: #{generator_forward.5} parent=1 // pred_check
      _
    $region31: #{generator_forward.5} parent=1 // pred_check_branch
      %665 = sbr.rel (0) target = $region33
    $region32: #{generator_forward.5} parent=1 // pred_region
      _
    $region33: #{generator_forward.5} parent=1 // pred_fallthru
      _
    // Predicated region
    $region34: #{generator_forward.5} parent=1 // pred_check
      _
    $region35: #{generator_forward.5} parent=1 // pred_check_branch
      %667 = sbr.rel (0) target = $region37
    $region36: #{generator_forward.5} parent=1 // pred_region
      _
    $region37: #{generator_forward.5} parent=1 // pred_fallthru
      _
    %668 = vsyncpa [#allocation3], 1
    %669 = vsyncpa [#allocation5], 1

// kernel: generator_forward.6
$region0: #{generator_forward.6}
  #allocation0 [shape = 'u32[]', space=smem, size = 0x4, offset = 0x4, fixed_abs, tag = 'smem constant byte address 0x4 - core index']
  #allocation1 [shape = 'u32[144,128]{1,0:T(1,128)}', space=vmem, size = 0x12000, scoped, tag = 'internal scratch']
  %s0 = inlined_call_operand.vmem [shape: bf16[32,576], index: 0, kind: input, shape index: {}]
  %s1 = inlined_call_operand.hbm [shape: bf16[576,128], index: 1, kind: input, shape index: {}]
  %s2 = inlined_call_operand.hbm [shape: f32[1,32], index: 2, kind: input, shape index: {}]
  %s3 = inlined_call_operand.hbm [shape: f32[1,32], index: 3, kind: input, shape index: {}]
  %s4 = inlined_call_operand.vmem [shape: bf16[32,128], index: 4, kind: output, shape index: {}]
  %s5 = sld [smem:[#allocation0]]
  $region38: #{generator_forward.6} parent=0
    _
  %s7 = ssub.s32 1, %s5
  %s8 = scalar_select 0, %s7, %s5
  $region1: #{generator_forward.6} parent=0
    #allocation2 [shape = 'u8[147456]{0}', space=vmem, size = 0x24000, scoped, tag = 'input window, operand 1, single buffered']
    #allocation3 [shape = 's32[1]{0}', space=sflag, size = 0x4, scoped, tag = 'scoped memory for generator_forward.6']
    #allocation4 [shape = 'u8[512]{0}', space=vmem, size = 0x400, scoped, tag = 'input window, operand 2, single buffered']
    #allocation5 [shape = 's32[1]{0}', space=sflag, size = 0x4, scoped, tag = 'scoped memory for generator_forward.6']
    #allocation6 [shape = 'u8[512]{0}', space=vmem, size = 0x400, scoped, tag = 'input window, operand 3, single buffered']
    %9 = vsyncpa [#allocation3], 0
    %10 = vsyncpa [#allocation5], 0
    // Predicated region
    $region2: #{generator_forward.6} parent=1 // pred_check
      _
    $region3: #{generator_forward.6} parent=1 // pred_check_branch
      %12 = sbr.rel (0) target = $region5
    $region4: #{generator_forward.6} parent=1 // pred_region
      _
    $region5: #{generator_forward.6} parent=1 // pred_fallthru
      _
    // Predicated region
    $region6: #{generator_forward.6} parent=1 // pred_check
      _
    $region7: #{generator_forward.6} parent=1 // pred_check_branch
      %14 = sbr.rel (0) target = $region9
    $region8: #{generator_forward.6} parent=1 // pred_region
      %s16 = ssub.s32 4608, 4608
      %17 = vsyncadd [#allocation3], %s16
      %s18 = sshll.u32 [#allocation2], 4
      %s19 = int_to_ptr.vmem [resolvable:$true] %s18
      %24 = dma.hbm_to_vmem [thread:$0]  %s1, 4608, %s19, [#allocation3], 64, 64, 4
    $region9: #{generator_forward.6} parent=1 // pred_fallthru
      _
    // Predicated region
    $region10: #{generator_forward.6} parent=1 // pred_check
      _
    $region11: #{generator_forward.6} parent=1 // pred_check_branch
      %26 = sbr.rel (0) target = $region13
    $region12: #{generator_forward.6} parent=1 // pred_region
      %s28 = ssub.s32 16, 16
      %29 = vsyncadd [#allocation5], %s28
      %s31 = sshll.u32 [#allocation4], 4
      %s32 = int_to_ptr.vmem [resolvable:$true] %s31
      %34 = dma.hbm_to_vmem [thread:$0]  %s2, 16, %s32, [#allocation5]
    $region13: #{generator_forward.6} parent=1 // pred_fallthru
      _
    // Predicated region
    $region14: #{generator_forward.6} parent=1 // pred_check
      _
    $region15: #{generator_forward.6} parent=1 // pred_check_branch
      %36 = sbr.rel (0) target = $region17
    $region16: #{generator_forward.6} parent=1 // pred_region
      %s38 = ssub.s32 16, 16
      %39 = vsyncadd [#allocation5], %s38
      %s41 = sshll.u32 [#allocation6], 4
      %s42 = int_to_ptr.vmem [resolvable:$true] %s41
      %44 = dma.hbm_to_vmem [thread:$0]  %s3, 16, %s42, [#allocation5]
    $region17: #{generator_forward.6} parent=1 // pred_fallthru
      _
    // Predicated region
    $region18: #{generator_forward.6} parent=1 // pred_check
      _
    $region19: #{generator_forward.6} parent=1 // pred_check_branch
      %46 = sbr.rel (0) target = $region21
    $region20: #{generator_forward.6} parent=1 // pred_region
      %47 = dma.done [#allocation3], 4608
    $region21: #{generator_forward.6} parent=1 // pred_fallthru
      _
    // Predicated region
    $region22: #{generator_forward.6} parent=1 // pred_check
      _
    $region23: #{generator_forward.6} parent=1 // pred_check_branch
      %49 = sbr.rel (0) target = $region25
    $region24: #{generator_forward.6} parent=1 // pred_region
      %50 = dma.done [#allocation5], 16
    $region25: #{generator_forward.6} parent=1 // pred_fallthru
      _
    // Predicated region
    $region26: #{generator_forward.6} parent=1 // pred_check
      _
    $region27: #{generator_forward.6} parent=1 // pred_check_branch
      %52 = sbr.rel (0) target = $region29
    $region28: #{generator_forward.6} parent=1 // pred_region
      %53 = dma.done [#allocation5], 16
    $region29: #{generator_forward.6} parent=1 // pred_fallthru
      _
    %v55 = vld [vmem:[%s0] sm:$0xff]
    %v56 = vld [vmem:[%s0 + $0x8] sm:$0xff]
    %v57 = vld [vmem:[%s0 + $0x10] sm:$0xf]
    %v58 = vld [vmem:[%s0 + $0x14] sm:$0xff]
    %v59 = vld [vmem:[%s0 + $0x1c] sm:$0xff]
    %v60 = vld [vmem:[%s0 + $0x24] sm:$0xf]
    %v61 = vld [vmem:[%s0 + $0x28] sm:$0xff]
    %v62 = vld [vmem:[%s0 + $0x30] sm:$0xff]
    %v63 = vld [vmem:[%s0 + $0x38] sm:$0xf]
    %v64 = vld [vmem:[%s0 + $0x3c] sm:$0xff]
    %v65 = vld [vmem:[%s0 + $0x44] sm:$0xff]
    %v66 = vld [vmem:[%s0 + $0x4c] sm:$0xf]
    %v67 = vld [vmem:[#allocation2] sm:$0xf]
    %v68 = vld [vmem:[#allocation2 + $0x4] sm:$0xf]
    %v69 = vld [vmem:[#allocation2 + $0x8] sm:$0xf]
    %v70 = vld [vmem:[#allocation2 + $0xc] sm:$0xf]
    %v71 = vld [vmem:[#allocation2 + $0x10] sm:$0xf]
    %v72 = vld [vmem:[#allocation2 + $0x14] sm:$0xf]
    %v73 = vld [vmem:[#allocation2 + $0x18] sm:$0xf]
    %v74 = vld [vmem:[#allocation2 + $0x1c] sm:$0xf]
    %v75 = vld [vmem:[#allocation2 + $0x20] sm:$0xf]
    %v76 = vld [vmem:[#allocation2 + $0x24] sm:$0xf]
    %v77 = vld [vmem:[#allocation2 + $0x28] sm:$0xf]
    %v78 = vld [vmem:[#allocation2 + $0x2c] sm:$0xf]
    %v79 = vld [vmem:[#allocation2 + $0x30] sm:$0xf]
    %v80 = vld [vmem:[#allocation2 + $0x34] sm:$0xf]
    %v81 = vld [vmem:[#allocation2 + $0x38] sm:$0xf]
    %v82 = vld [vmem:[#allocation2 + $0x3c] sm:$0xf]
    %v83 = vld [vmem:[#allocation2 + $0x40] sm:$0xf]
    %v84 = vld [vmem:[#allocation2 + $0x44] sm:$0xf]
    %v85 = vld [vmem:[#allocation2 + $0x48] sm:$0xf]
    %v86 = vld [vmem:[#allocation2 + $0x4c] sm:$0xf]
    %v87 = vld [vmem:[#allocation2 + $0x50] sm:$0xf]
    %v88 = vld [vmem:[#allocation2 + $0x54] sm:$0xf]
    %v89 = vld [vmem:[#allocation2 + $0x58] sm:$0xf]
    %v90 = vld [vmem:[#allocation2 + $0x5c] sm:$0xf]
    %v91 = vld [vmem:[#allocation2 + $0x60] sm:$0xf]
    %v92 = vld [vmem:[#allocation2 + $0x64] sm:$0xf]
    %v93 = vld [vmem:[#allocation2 + $0x68] sm:$0xf]
    %v94 = vld [vmem:[#allocation2 + $0x6c] sm:$0xf]
    %v95 = vld [vmem:[#allocation2 + $0x70] sm:$0xf]
    %v96 = vld [vmem:[#allocation2 + $0x74] sm:$0xf]
    %v97 = vld [vmem:[#allocation2 + $0x78] sm:$0xf]
    %v98 = vld [vmem:[#allocation2 + $0x7c] sm:$0xf]
    %v99 = vld [vmem:[#allocation2 + $0x80] sm:$0xf]
    %v100 = vld [vmem:[#allocation2 + $0x84] sm:$0xf]
    %v101 = vld [vmem:[#allocation2 + $0x88] sm:$0xf]
    %v102 = vld [vmem:[#allocation2 + $0x8c] sm:$0xf]
    %v103 = vld [vmem:[#allocation2 + $0x90] sm:$0xf]
    %v104 = vld [vmem:[#allocation2 + $0x94] sm:$0xf]
    %v105 = vld [vmem:[#allocation2 + $0x98] sm:$0xf]
    %v106 = vld [vmem:[#allocation2 + $0x9c] sm:$0xf]
    %v107 = vld [vmem:[#allocation2 + $0xa0] sm:$0xf]
    %v108 = vld [vmem:[#allocation2 + $0xa4] sm:$0xf]
    %v109 = vld [vmem:[#allocation2 + $0xa8] sm:$0xf]
    %v110 = vld [vmem:[#allocation2 + $0xac] sm:$0xf]
    %v111 = vld [vmem:[#allocation2 + $0xb0] sm:$0xf]
    %v112 = vld [vmem:[#allocation2 + $0xb4] sm:$0xf]
    %v113 = vld [vmem:[#allocation2 + $0xb8] sm:$0xf]
    %v114 = vld [vmem:[#allocation2 + $0xbc] sm:$0xf]
    %v115 = vld [vmem:[#allocation2 + $0xc0] sm:$0xf]
    %v116 = vld [vmem:[#allocation2 + $0xc4] sm:$0xf]
    %v117 = vld [vmem:[#allocation2 + $0xc8] sm:$0xf]
    %v118 = vld [vmem:[#allocation2 + $0xcc] sm:$0xf]
    %v119 = vld [vmem:[#allocation2 + $0xd0] sm:$0xf]
    %v120 = vld [vmem:[#allocation2 + $0xd4] sm:$0xf]
    %v121 = vld [vmem:[#allocation2 + $0xd8] sm:$0xf]
    %v122 = vld [vmem:[#allocation2 + $0xdc] sm:$0xf]
    %v123 = vld [vmem:[#allocation2 + $0xe0] sm:$0xf]
    %v124 = vld [vmem:[#allocation2 + $0xe4] sm:$0xf]
    %v125 = vld [vmem:[#allocation2 + $0xe8] sm:$0xf]
    %v126 = vld [vmem:[#allocation2 + $0xec] sm:$0xf]
    %v127 = vld [vmem:[#allocation2 + $0xf0] sm:$0xf]
    %v128 = vld [vmem:[#allocation2 + $0xf4] sm:$0xf]
    %v129 = vld [vmem:[#allocation2 + $0xf8] sm:$0xf]
    %v130 = vld [vmem:[#allocation2 + $0xfc] sm:$0xf]
    %v131 = vld [vmem:[#allocation2 + $0x100] sm:$0xf]
    %v132 = vld [vmem:[#allocation2 + $0x104] sm:$0xf]
    %v133 = vld [vmem:[#allocation2 + $0x108] sm:$0xf]
    %v134 = vld [vmem:[#allocation2 + $0x10c] sm:$0xf]
    %v135 = vld [vmem:[#allocation2 + $0x110] sm:$0xf]
    %v136 = vld [vmem:[#allocation2 + $0x114] sm:$0xf]
    %v137 = vld [vmem:[#allocation2 + $0x118] sm:$0xf]
    %v138 = vld [vmem:[#allocation2 + $0x11c] sm:$0xf]
    %v151 = vunpack.c.l.b16 %v55
    %v152 = vunpack.c.h.b16 %v55
    %v153 = vunpack.c.l.b16 %v56
    %v154 = vunpack.c.h.b16 %v56
    %v155 = vunpack.c.l.b16 %v57
    %v156 = vunpack.c.l.b16 %v58
    %v157 = vunpack.c.h.b16 %v58
    %v158 = vunpack.c.l.b16 %v59
    %v159 = vunpack.c.h.b16 %v59
    %v160 = vunpack.c.l.b16 %v60
    %v161 = vunpack.c.l.b16 %v61
    %v162 = vunpack.c.h.b16 %v61
    %v163 = vunpack.c.l.b16 %v62
    %v164 = vunpack.c.h.b16 %v62
    %v165 = vunpack.c.l.b16 %v63
    %v166 = vunpack.c.l.b16 %v64
    %v167 = vunpack.c.h.b16 %v64
    %v168 = vunpack.c.l.b16 %v65
    %v169 = vunpack.c.h.b16 %v65
    %v170 = vunpack.c.l.b16 %v66
    %v171 = vpack.c.b16 %v156, %v151
    %v172 = vpack.c.b16 %v157, %v152
    %v173 = vpack.c.b16 %v158, %v153
    %v174 = vpack.c.b16 %v159, %v154
    %v175 = vpack.c.b16 %v160, %v155
    %v176 = vpack.c.b16 %v166, %v161
    %v177 = vpack.c.b16 %v167, %v162
    %v178 = vpack.c.b16 %v168, %v163
    %v179 = vpack.c.b16 %v169, %v164
    %v180 = vpack.c.b16 %v170, %v165
    %v261 = vunpack.c.l.b16 %v67
    %v262 = vunpack.c.l.b16 %v68
    %v263 = vunpack.c.l.b16 %v69
    %v264 = vunpack.c.l.b16 %v70
    %v265 = vunpack.c.l.b16 %v71
    %v266 = vunpack.c.l.b16 %v72
    %v267 = vunpack.c.l.b16 %v73
    %v268 = vunpack.c.l.b16 %v74
    %v269 = vunpack.c.l.b16 %v75
    %v270 = vunpack.c.l.b16 %v76
    %v271 = vunpack.c.l.b16 %v77
    %v272 = vunpack.c.l.b16 %v78
    %v273 = vunpack.c.l.b16 %v79
    %v274 = vunpack.c.l.b16 %v80
    %v275 = vunpack.c.l.b16 %v81
    %v276 = vunpack.c.l.b16 %v82
    %v277 = vunpack.c.l.b16 %v83
    %v278 = vunpack.c.l.b16 %v84
    %v279 = vunpack.c.l.b16 %v85
    %v280 = vunpack.c.l.b16 %v86
    %v281 = vunpack.c.l.b16 %v87
    %v282 = vunpack.c.l.b16 %v88
    %v283 = vunpack.c.l.b16 %v89
    %v284 = vunpack.c.l.b16 %v90
    %v285 = vunpack.c.l.b16 %v91
    %v286 = vunpack.c.l.b16 %v92
    %v287 = vunpack.c.l.b16 %v93
    %v288 = vunpack.c.l.b16 %v94
    %v289 = vunpack.c.l.b16 %v95
    %v290 = vunpack.c.l.b16 %v96
    %v291 = vunpack.c.l.b16 %v97
    %v292 = vunpack.c.l.b16 %v98
    %v293 = vunpack.c.l.b16 %v99
    %v294 = vunpack.c.l.b16 %v100
    %v295 = vunpack.c.l.b16 %v101
    %v296 = vunpack.c.l.b16 %v102
    %v297 = vunpack.c.l.b16 %v103
    %v298 = vunpack.c.l.b16 %v104
    %v299 = vunpack.c.l.b16 %v105
    %v300 = vunpack.c.l.b16 %v106
    %v301 = vunpack.c.l.b16 %v107
    %v302 = vunpack.c.l.b16 %v108
    %v303 = vunpack.c.l.b16 %v109
    %v304 = vunpack.c.l.b16 %v110
    %v305 = vunpack.c.l.b16 %v111
    %v306 = vunpack.c.l.b16 %v112
    %v307 = vunpack.c.l.b16 %v113
    %v308 = vunpack.c.l.b16 %v114
    %v309 = vunpack.c.l.b16 %v115
    %v310 = vunpack.c.l.b16 %v116
    %v311 = vunpack.c.l.b16 %v117
    %v312 = vunpack.c.l.b16 %v118
    %v313 = vunpack.c.l.b16 %v119
    %v314 = vunpack.c.l.b16 %v120
    %v315 = vunpack.c.l.b16 %v121
    %v316 = vunpack.c.l.b16 %v122
    %v317 = vunpack.c.l.b16 %v123
    %v318 = vunpack.c.l.b16 %v124
    %v319 = vunpack.c.l.b16 %v125
    %v320 = vunpack.c.l.b16 %v126
    %v321 = vunpack.c.l.b16 %v127
    %v322 = vunpack.c.l.b16 %v128
    %v323 = vunpack.c.l.b16 %v129
    %v324 = vunpack.c.l.b16 %v130
    %v325 = vunpack.c.l.b16 %v131
    %v326 = vunpack.c.l.b16 %v132
    %v327 = vunpack.c.l.b16 %v133
    %v328 = vunpack.c.l.b16 %v134
    %v329 = vunpack.c.l.b16 %v135
    %v330 = vunpack.c.l.b16 %v136
    %v331 = vunpack.c.l.b16 %v137
    %v332 = vunpack.c.l.b16 %v138
    %v333 = vpack.c.b16 %v262, %v261
    %v334 = vpack.c.b16 %v264, %v263
    %v335 = vpack.c.b16 %v266, %v265
    %v336 = vpack.c.b16 %v268, %v267
    %v337 = vpack.c.b16 %v270, %v269
    %v338 = vpack.c.b16 %v272, %v271
    %v339 = vpack.c.b16 %v274, %v273
    %v340 = vpack.c.b16 %v276, %v275
    %v341 = vpack.c.b16 %v278, %v277
    %v342 = vpack.c.b16 %v280, %v279
    %v343 = vpack.c.b16 %v282, %v281
    %v344 = vpack.c.b16 %v284, %v283
    %v345 = vpack.c.b16 %v286, %v285
    %v346 = vpack.c.b16 %v288, %v287
    %v347 = vpack.c.b16 %v290, %v289
    %v348 = vpack.c.b16 %v292, %v291
    %v349 = vpack.c.b16 %v294, %v293
    %v350 = vpack.c.b16 %v296, %v295
    %v351 = vpack.c.b16 %v298, %v297
    %v352 = vpack.c.b16 %v300, %v299
    %v353 = vpack.c.b16 %v302, %v301
    %v354 = vpack.c.b16 %v304, %v303
    %v355 = vpack.c.b16 %v306, %v305
    %v356 = vpack.c.b16 %v308, %v307
    %v357 = vpack.c.b16 %v310, %v309
    %v358 = vpack.c.b16 %v312, %v311
    %v359 = vpack.c.b16 %v314, %v313
    %v360 = vpack.c.b16 %v316, %v315
    %v361 = vpack.c.b16 %v318, %v317
    %v362 = vpack.c.b16 %v320, %v319
    %v363 = vpack.c.b16 %v322, %v321
    %v364 = vpack.c.b16 %v324, %v323
    %v365 = vpack.c.b16 %v326, %v325
    %v366 = vpack.c.b16 %v328, %v327
    %v367 = vpack.c.b16 %v330, %v329
    %v368 = vpack.c.b16 %v332, %v331
    %vm405 = vcmask 523264
    %v407 = vsel %vm405, %v175, 0
    %v410 = vsel %vm405, %v180, 0
    %412 = vmatprep.subr.bf16.mxu0 0
    %413 = vmatpush1.bf16.msra.mxu0 %v340
    %414 = vmatprep.subr.bf16.mxu0 0
    %415 = vmatpush1.bf16.msra.mxu0 %v339
    %416 = vmatprep.subr.bf16.mxu0 0
    %417 = vmatpush1.bf16.msra.mxu0 %v338
    %418 = vmatprep.subr.bf16.mxu0 0
    %419 = vmatpush1.bf16.msra.mxu0 %v337
    %420 = vmatprep.subr.bf16.mxu0 0
    %421 = vmatpush1.bf16.msra.mxu0 %v336
    %422 = vmatprep.subr.bf16.mxu0 0
    %423 = vmatpush1.bf16.msra.mxu0 %v335
    %424 = vmatprep.subr.bf16.mxu0 0
    %425 = vmatpush1.bf16.msra.mxu0 %v334
    %426 = vmatprep.subr.bf16.mxu0 0
    %427 = vmatpush1.bf16.msra.mxu0 %v333
    %428 = vmatprep.subr.bf16.mxu0 0
    %429 = vmatpush2.bf16.msra.mxu0 %v348
    %430 = vmatprep.subr.bf16.mxu0 0
    %431 = vmatpush2.bf16.msra.mxu0 %v347
    %432 = vmatprep.subr.bf16.mxu0 0
    %433 = vmatpush2.bf16.msra.mxu0 %v346
    %434 = vmatprep.subr.bf16.mxu0 0
    %435 = vmatpush2.bf16.msra.mxu0 %v345
    %436 = vmatprep.subr.bf16.mxu0 0
    %437 = vmatpush2.bf16.msra.mxu0 %v344
    %438 = vmatprep.subr.bf16.mxu0 0
    %439 = vmatpush2.bf16.msra.mxu0 %v343
    %440 = vmatprep.subr.bf16.mxu0 0
    %441 = vmatpush2.bf16.msra.mxu0 %v342
    %442 = vmatprep.subr.bf16.mxu0 0
    %443 = vmatpush2.bf16.msra.mxu0 %v341
    %444 = vmatprep.mubr.bf16.mxu0 %v172
    %445 = vmatmul.mubr.bf16.gmra.mxu0 %v171
    %v446 = vpop.f32.mrf.mxu0
    %v447 = vadd.f32 0.0, %v446
    %v448 = vpop.f32.mrf.mxu0
    %v449 = vpop.f32.mrf.mxu0
    %v450 = vadd.f32 0.0, %v449
    %v451 = vpop.f32.mrf.mxu0
    %452 = vmatprep.mubr.bf16.mxu0 %v177
    %453 = vmatmul.mubr.bf16.gmra.mxu0 %v176
    %v454 = vpop.f32.mrf.mxu0
    %v455 = vadd.f32 0.0, %v454
    %v456 = vpop.f32.mrf.mxu0
    %v457 = vpop.f32.mrf.mxu0
    %v458 = vadd.f32 0.0, %v457
    %v459 = vpop.f32.mrf.mxu0
    %460 = vdwg.mxu0
    %461 = vmatprep.subr.bf16.mxu0 0
    %462 = vmatpush1.bf16.msra.mxu0 %v356
    %463 = vmatprep.subr.bf16.mxu0 0
    %464 = vmatpush1.bf16.msra.mxu0 %v355
    %465 = vmatprep.subr.bf16.mxu0 0
    %466 = vmatpush1.bf16.msra.mxu0 %v354
    %467 = vmatprep.subr.bf16.mxu0 0
    %468 = vmatpush1.bf16.msra.mxu0 %v353
    %469 = vmatprep.subr.bf16.mxu0 0
    %470 = vmatpush1.bf16.msra.mxu0 %v352
    %471 = vmatprep.subr.bf16.mxu0 0
    %472 = vmatpush1.bf16.msra.mxu0 %v351
    %473 = vmatprep.subr.bf16.mxu0 0
    %474 = vmatpush1.bf16.msra.mxu0 %v350
    %475 = vmatprep.subr.bf16.mxu0 0
    %476 = vmatpush1.bf16.msra.mxu0 %v349
    %477 = vmatprep.subr.bf16.mxu0 0
    %478 = vmatpush2.bf16.msra.mxu0 %v364
    %479 = vmatprep.subr.bf16.mxu0 0
    %480 = vmatpush2.bf16.msra.mxu0 %v363
    %481 = vmatprep.subr.bf16.mxu0 0
    %482 = vmatpush2.bf16.msra.mxu0 %v362
    %483 = vmatprep.subr.bf16.mxu0 0
    %484 = vmatpush2.bf16.msra.mxu0 %v361
    %485 = vmatprep.subr.bf16.mxu0 0
    %486 = vmatpush2.bf16.msra.mxu0 %v360
    %487 = vmatprep.subr.bf16.mxu0 0
    %488 = vmatpush2.bf16.msra.mxu0 %v359
    %489 = vmatprep.subr.bf16.mxu0 0
    %490 = vmatpush2.bf16.msra.mxu0 %v358
    %491 = vmatprep.subr.bf16.mxu0 0
    %492 = vmatpush2.bf16.msra.mxu0 %v357
    %493 = vmatprep.mubr.bf16.mxu0 %v174
    %494 = vmatmul.mubr.bf16.gmra.mxu0 %v173
    %v495 = vpop.f32.mrf.mxu0
    %v496 = vadd.f32 %v447, %v495
    %v497 = vpop.f32.mrf.mxu0
    %v498 = vpop.f32.mrf.mxu0
    %v499 = vadd.f32 %v450, %v498
    %v500 = vpop.f32.mrf.mxu0
    %501 = vmatprep.mubr.bf16.mxu0 %v179
    %502 = vmatmul.mubr.bf16.gmra.mxu0 %v178
    %v503 = vpop.f32.mrf.mxu0
    %v504 = vadd.f32 %v455, %v503
    %v505 = vpop.f32.mrf.mxu0
    %v506 = vpop.f32.mrf.mxu0
    %v507 = vadd.f32 %v458, %v506
    %v508 = vpop.f32.mrf.mxu0
    %509 = vdwg.mxu0
    %510 = vmatprep.subr.bf16.mxu0 0
    %511 = vmatpush1.bf16.msra.mxu0 0
    %512 = vmatprep.subr.bf16.mxu0 0
    %513 = vmatpush1.bf16.msra.mxu0 0
    %514 = vmatprep.subr.bf16.mxu0 0
    %515 = vmatpush1.bf16.msra.mxu0 0
    %516 = vmatprep.subr.bf16.mxu0 0
    %517 = vmatpush1.bf16.msra.mxu0 0
    %518 = vmatprep.subr.bf16.mxu0 0
    %519 = vmatpush1.bf16.msra.mxu0 %v368
    %520 = vmatprep.subr.bf16.mxu0 0
    %521 = vmatpush1.bf16.msra.mxu0 %v367
    %522 = vmatprep.subr.bf16.mxu0 0
    %523 = vmatpush1.bf16.msra.mxu0 %v366
    %524 = vmatprep.subr.bf16.mxu0 0
    %525 = vmatpush1.bf16.msra.mxu0 %v365
    %526 = vmatprep.subr.bf16.mxu0 0
    %527 = vmatpush2.bf16.msra.mxu0 0
    %528 = vmatprep.subr.bf16.mxu0 0
    %529 = vmatpush2.bf16.msra.mxu0 0
    %530 = vmatprep.subr.bf16.mxu0 0
    %531 = vmatpush2.bf16.msra.mxu0 0
    %532 = vmatprep.subr.bf16.mxu0 0
    %533 = vmatpush2.bf16.msra.mxu0 0
    %534 = vmatprep.subr.bf16.mxu0 0
    %535 = vmatpush2.bf16.msra.mxu0 0
    %536 = vmatprep.subr.bf16.mxu0 0
    %537 = vmatpush2.bf16.msra.mxu0 0
    %538 = vmatprep.subr.bf16.mxu0 0
    %539 = vmatpush2.bf16.msra.mxu0 0
    %540 = vmatprep.subr.bf16.mxu0 0
    %541 = vmatpush2.bf16.msra.mxu0 0
    %542 = vmatprep.mubr.bf16.mxu0 0
    %543 = vmatmul.mubr.bf16.gmra.mxu0 %v407
    %v544 = vpop.f32.mrf.mxu0
    %v545 = vadd.f32 %v496, %v544
    %v546 = vpop.f32.mrf.mxu0
    %v547 = vpop.f32.mrf.mxu0
    %v548 = vadd.f32 %v499, %v547
    %v549 = vpop.f32.mrf.mxu0
    %550 = vmatprep.mubr.bf16.mxu0 0
    %551 = vmatmul.mubr.bf16.gmra.mxu0 %v410
    %v552 = vpop.f32.mrf.mxu0
    %v553 = vadd.f32 %v504, %v552
    %v554 = vpop.f32.mrf.mxu0
    %v555 = vpop.f32.mrf.mxu0
    %v556 = vadd.f32 %v507, %v555
    %v557 = vpop.f32.mrf.mxu0
    %558 = vdwg.mxu0
    %v559 = vadd.f32 %v545, %v548
    %v560 = vadd.f32 %v559, %v553
    %v561 = vadd.f32 %v560, %v556
    %v562 = vrot.slane %v561, 4
    %v563 = vadd.f32 %v561, %v562
    %v564 = vrot.slane %v563, 2
    %v565 = vadd.f32 %v563, %v564
    %v566 = vrot.slane %v565, 1
    %v567 = vadd.f32 %v565, %v566
    %v568 = vmul.f32 %v545, %v545
    %v569 = vmul.f32 %v548, %v548
    %v570 = vmul.f32 %v553, %v553
    %v571 = vmul.f32 %v556, %v556
    %v572 = vadd.f32 %v568, %v569
    %v573 = vadd.f32 %v572, %v570
    %v574 = vadd.f32 %v573, %v571
    %v575 = vrot.slane %v574, 4
    %v576 = vadd.f32 %v574, %v575
    %v577 = vrot.slane %v576, 2
    %v578 = vadd.f32 %v576, %v577
    %v579 = vrot.slane %v578, 1
    %v580 = vadd.f32 %v578, %v579
    %582 = vrot.lane.b32.xlu0 %v567, 96
    %v583 = vpop.permute.xlu0 %582
    %v585 = vadd.f32 %v567, %v583
    %587 = vrot.lane.b32.xlu0 %v580, 96
    %v588 = vpop.permute.xlu0 %587
    %v590 = vadd.f32 %v580, %v588
    %591 = vrot.lane.b32.xlu0 %v567, 64
    %v592 = vpop.permute.xlu0 %591
    %v594 = vadd.f32 %v585, %v592
    %595 = vrot.lane.b32.xlu0 %v580, 64
    %v596 = vpop.permute.xlu0 %595
    %v598 = vadd.f32 %v590, %v596
    %599 = vrot.lane.b32.xlu0 %v567, 32
    %v600 = vpop.permute.xlu0 %599
    %v602 = vadd.f32 %v594, %v600
    %603 = vrot.lane.b32.xlu0 %v580, 32
    %v604 = vpop.permute.xlu0 %603
    %v606 = vadd.f32 %v598, %v604
    %v607 = vmul.f32 %v602, 0.0078125
    %v608 = vmul.f32 %v606, 0.0078125
    %v609 = vmul.f32 %v607, %v607
    %v610 = vsub.f32 %v608, %v609
    %v611 = vld [vmem:[#allocation4] sm:$0x1]
    %v612 = vadd.f32 %v610, 1e-05
    %v613 = vrsqrt.pop %v612
    %v614 = vmul.f32 %v611, %v613
    %v615 = vld [vmem:[#allocation6] sm:$0x1]
    %v616 = vmul.f32 %v607, %v614
    %v617 = vsub.f32 %v615, %v616
    %v619 = vlaneseq
    %v620 = vshrl.u32 %v619, 7
    %v621 = vsub.s32 0, %v620
    %v622 = vrot.slane %v614, %v621
    %623 = vrot.lane.b32.xlu0 %v622, 32
    %v624 = vpop.permute.xlu0 %623
    %626 = vrot.lane.b32.xlu0 %v622, 64
    %v627 = vpop.permute.xlu0 %626
    %629 = vrot.lane.b32.xlu0 %v622, 96
    %v630 = vpop.permute.xlu0 %629
    %vm632 = vcmask 261120
    %v633 = vsel %vm632, %v614, %v624
    %v634 = vsel %vm405, %v633, %v627
    %vm635 = vcmask 785408
    %v636 = vsel %vm635, %v634, %v630
    %v638 = vlaneseq
    %v639 = vshrl.u32 %v638, 7
    %v640 = vsub.s32 0, %v639
    %v641 = vrot.slane %v617, %v640
    %642 = vrot.lane.b32.xlu0 %v641, 32
    %v643 = vpop.permute.xlu0 %642
    %645 = vrot.lane.b32.xlu0 %v641, 64
    %v646 = vpop.permute.xlu0 %645
    %648 = vrot.lane.b32.xlu0 %v641, 96
    %v649 = vpop.permute.xlu0 %648
    %v651 = vsel %vm632, %v617, %v643
    %v652 = vsel %vm405, %v651, %v646
    %v653 = vsel %vm635, %v652, %v649
    %v654 = vlaneseq
    %v655 = vshrl.u32 %v654, 7
    %v656 = vsub.s32 0, %v655
    %v657 = vrot.slane %v636, %v656
    %v658 = vmul.f32 %v545, %v657
    %v659 = vmul.f32 %v548, %v657
    %v660 = vmul.f32 %v553, %v657
    %v661 = vmul.f32 %v556, %v657
    %v662 = vlaneseq
    %v663 = vshrl.u32 %v662, 7
    %v664 = vsub.s32 0, %v663
    %v665 = vrot.slane %v653, %v664
    %v666 = vadd.f32 %v658, %v665
    %v667 = vadd.f32 %v659, %v665
    %v668 = vadd.f32 %v660, %v665
    %v669 = vadd.f32 %v661, %v665
    %v670 = vmax.f32 %v666, 0.0
    %v671 = vmax.f32 %v667, 0.0
    %v672 = vmax.f32 %v668, 0.0
    %v673 = vmax.f32 %v669, 0.0
    %v674 = vpack.c.bf16 %v671, %v670
    %v675 = vpack.c.bf16 %v673, %v672
    %v678 = vunpack.c.l.b16 %v674
    %v679 = vunpack.c.h.b16 %v674
    %v680 = vunpack.c.l.b16 %v675
    %v681 = vunpack.c.h.b16 %v675
    %v682 = vpack.c.b16 %v678, %v678
    %v683 = vpack.c.b16 %v679, %v679
    %v684 = vpack.c.b16 %v680, %v680
    %v685 = vpack.c.b16 %v681, %v681
    %690 = vst [vmem:[%s4] sm:$0xf] %v682
    %691 = vst [vmem:[%s4 + $0x4] sm:$0xf] %v683
    %692 = vst [vmem:[%s4 + $0x8] sm:$0xf] %v684
    %693 = vst [vmem:[%s4 + $0xc] sm:$0xf] %v685
    // Predicated region
    $region30: #{generator_forward.6} parent=1 // pred_check
      _
    $region31: #{generator_forward.6} parent=1 // pred_check_branch
      %695 = sbr.rel (0) target = $region33
    $region32: #{generator_forward.6} parent=1 // pred_region
      _
    $region33: #{generator_forward.6} parent=1 // pred_fallthru
      _
    // Predicated region
    $region34: #{generator_forward.6} parent=1 // pred_check
      _
    $region35: #{generator_forward.6} parent=1 // pred_check_branch
      %697 = sbr.rel (0) target = $region37
    $region36: #{generator_forward.6} parent=1 // pred_region
      _
    $region37: #{generator_forward.6} parent=1 // pred_fallthru
      _
    %698 = vsyncpa [#allocation3], 1
    %699 = vsyncpa [#allocation5], 1

// kernel: generator_forward.7
$region0: #{generator_forward.7}
  #allocation0 [shape = 'u32[]', space=smem, size = 0x4, offset = 0x4, fixed_abs, tag = 'smem constant byte address 0x4 - core index']
  #allocation1 [shape = 'u32[144,128]{1,0:T(1,128)}', space=vmem, size = 0x12000, scoped, tag = 'internal scratch']
  %s0 = inlined_call_operand.vmem [shape: bf16[128,288], index: 0, kind: input, shape index: {}]
  %s1 = inlined_call_operand.hbm [shape: bf16[288,128], index: 1, kind: input, shape index: {}]
  %s2 = inlined_call_operand.hbm [shape: f32[1,16], index: 2, kind: input, shape index: {}]
  %s3 = inlined_call_operand.hbm [shape: f32[1,16], index: 3, kind: input, shape index: {}]
  %s4 = inlined_call_operand.vmem [shape: bf16[128,128], index: 4, kind: output, shape index: {}]
  %s5 = sld [smem:[#allocation0]]
  $region38: #{generator_forward.7} parent=0
    _
  %s7 = ssub.s32 1, %s5
  %s8 = scalar_select 0, %s7, %s5
  $region1: #{generator_forward.7} parent=0
    #allocation2 [shape = 'u8[73728]{0}', space=vmem, size = 0x12000, scoped, tag = 'input window, operand 1, single buffered']
    #allocation3 [shape = 's32[1]{0}', space=sflag, size = 0x4, scoped, tag = 'scoped memory for generator_forward.7']
    #allocation4 [shape = 'u8[512]{0}', space=vmem, size = 0x400, scoped, tag = 'input window, operand 2, single buffered']
    #allocation5 [shape = 's32[1]{0}', space=sflag, size = 0x4, scoped, tag = 'scoped memory for generator_forward.7']
    #allocation6 [shape = 'u8[512]{0}', space=vmem, size = 0x400, scoped, tag = 'input window, operand 3, single buffered']
    %9 = vsyncpa [#allocation3], 0
    %10 = vsyncpa [#allocation5], 0
    // Predicated region
    $region2: #{generator_forward.7} parent=1 // pred_check
      _
    $region3: #{generator_forward.7} parent=1 // pred_check_branch
      %12 = sbr.rel (0) target = $region5
    $region4: #{generator_forward.7} parent=1 // pred_region
      _
    $region5: #{generator_forward.7} parent=1 // pred_fallthru
      _
    // Predicated region
    $region6: #{generator_forward.7} parent=1 // pred_check
      _
    $region7: #{generator_forward.7} parent=1 // pred_check_branch
      %14 = sbr.rel (0) target = $region9
    $region8: #{generator_forward.7} parent=1 // pred_region
      %s16 = ssub.s32 2304, 2304
      %17 = vsyncadd [#allocation3], %s16
      %s18 = sshll.u32 [#allocation2], 4
      %s19 = int_to_ptr.vmem [resolvable:$true] %s18
      %24 = dma.hbm_to_vmem [thread:$0]  %s1, 2304, %s19, [#allocation3], 64, 64, 4
    $region9: #{generator_forward.7} parent=1 // pred_fallthru
      _
    // Predicated region
    $region10: #{generator_forward.7} parent=1 // pred_check
      _
    $region11: #{generator_forward.7} parent=1 // pred_check_branch
      %26 = sbr.rel (0) target = $region13
    $region12: #{generator_forward.7} parent=1 // pred_region
      %s28 = ssub.s32 16, 16
      %29 = vsyncadd [#allocation5], %s28
      %s31 = sshll.u32 [#allocation4], 4
      %s32 = int_to_ptr.vmem [resolvable:$true] %s31
      %34 = dma.hbm_to_vmem [thread:$0]  %s2, 16, %s32, [#allocation5]
    $region13: #{generator_forward.7} parent=1 // pred_fallthru
      _
    // Predicated region
    $region14: #{generator_forward.7} parent=1 // pred_check
      _
    $region15: #{generator_forward.7} parent=1 // pred_check_branch
      %36 = sbr.rel (0) target = $region17
    $region16: #{generator_forward.7} parent=1 // pred_region
      %s38 = ssub.s32 16, 16
      %39 = vsyncadd [#allocation5], %s38
      %s41 = sshll.u32 [#allocation6], 4
      %s42 = int_to_ptr.vmem [resolvable:$true] %s41
      %44 = dma.hbm_to_vmem [thread:$0]  %s3, 16, %s42, [#allocation5]
    $region17: #{generator_forward.7} parent=1 // pred_fallthru
      _
    // Predicated region
    $region18: #{generator_forward.7} parent=1 // pred_check
      _
    $region19: #{generator_forward.7} parent=1 // pred_check_branch
      %46 = sbr.rel (0) target = $region21
    $region20: #{generator_forward.7} parent=1 // pred_region
      %47 = dma.done [#allocation3], 2304
    $region21: #{generator_forward.7} parent=1 // pred_fallthru
      _
    // Predicated region
    $region22: #{generator_forward.7} parent=1 // pred_check
      _
    $region23: #{generator_forward.7} parent=1 // pred_check_branch
      %49 = sbr.rel (0) target = $region25
    $region24: #{generator_forward.7} parent=1 // pred_region
      %50 = dma.done [#allocation5], 16
    $region25: #{generator_forward.7} parent=1 // pred_fallthru
      _
    // Predicated region
    $region26: #{generator_forward.7} parent=1 // pred_check
      _
    $region27: #{generator_forward.7} parent=1 // pred_check_branch
      %52 = sbr.rel (0) target = $region29
    $region28: #{generator_forward.7} parent=1 // pred_region
      %53 = dma.done [#allocation5], 16
    $region29: #{generator_forward.7} parent=1 // pred_fallthru
      _
    %v55 = vld [vmem:[%s0] sm:$0xff]
    %v56 = vld [vmem:[%s0 + $0x8] sm:$0xf]
    %v57 = vld [vmem:[%s0 + $0xc] sm:$0xff]
    %v58 = vld [vmem:[%s0 + $0x14] sm:$0xf]
    %v59 = vld [vmem:[%s0 + $0x18] sm:$0xff]
    %v60 = vld [vmem:[%s0 + $0x20] sm:$0xf]
    %v61 = vld [vmem:[%s0 + $0x24] sm:$0xff]
    %v62 = vld [vmem:[%s0 + $0x2c] sm:$0xf]
    %v63 = vld [vmem:[%s0 + $0x30] sm:$0xff]
    %v64 = vld [vmem:[%s0 + $0x38] sm:$0xf]
    %v65 = vld [vmem:[%s0 + $0x3c] sm:$0xff]
    %v66 = vld [vmem:[%s0 + $0x44] sm:$0xf]
    %v67 = vld [vmem:[%s0 + $0x48] sm:$0xff]
    %v68 = vld [vmem:[%s0 + $0x50] sm:$0xf]
    %v69 = vld [vmem:[%s0 + $0x54] sm:$0xff]
    %v70 = vld [vmem:[%s0 + $0x5c] sm:$0xf]
    %v71 = vld [vmem:[%s0 + $0x60] sm:$0xff]
    %v72 = vld [vmem:[%s0 + $0x68] sm:$0xf]
    %v73 = vld [vmem:[%s0 + $0x6c] sm:$0xff]
    %v74 = vld [vmem:[%s0 + $0x74] sm:$0xf]
    %v75 = vld [vmem:[%s0 + $0x78] sm:$0xff]
    %v76 = vld [vmem:[%s0 + $0x80] sm:$0xf]
    %v77 = vld [vmem:[%s0 + $0x84] sm:$0xff]
    %v78 = vld [vmem:[%s0 + $0x8c] sm:$0xf]
    %v79 = vld [vmem:[%s0 + $0x90] sm:$0xff]
    %v80 = vld [vmem:[%s0 + $0x98] sm:$0xf]
    %v81 = vld [vmem:[%s0 + $0x9c] sm:$0xff]
    %v82 = vld [vmem:[%s0 + $0xa4] sm:$0xf]
    %v83 = vld [vmem:[%s0 + $0xa8] sm:$0xff]
    %v84 = vld [vmem:[%s0 + $0xb0] sm:$0xf]
    %v85 = vld [vmem:[%s0 + $0xb4] sm:$0xff]
    %v86 = vld [vmem:[%s0 + $0xbc] sm:$0xf]
    %v87 = vld [vmem:[#allocation2] sm:$0xf]
    %v88 = vld [vmem:[#allocation2 + $0x4] sm:$0xf]
    %v89 = vld [vmem:[#allocation2 + $0x8] sm:$0xf]
    %v90 = vld [vmem:[#allocation2 + $0xc] sm:$0xf]
    %v91 = vld [vmem:[#allocation2 + $0x10] sm:$0xf]
    %v92 = vld [vmem:[#allocation2 + $0x14] sm:$0xf]
    %v93 = vld [vmem:[#allocation2 + $0x18] sm:$0xf]
    %v94 = vld [vmem:[#allocation2 + $0x1c] sm:$0xf]
    %v95 = vld [vmem:[#allocation2 + $0x20] sm:$0xf]
    %v96 = vld [vmem:[#allocation2 + $0x24] sm:$0xf]
    %v97 = vld [vmem:[#allocation2 + $0x28] sm:$0xf]
    %v98 = vld [vmem:[#allocation2 + $0x2c] sm:$0xf]
    %v99 = vld [vmem:[#allocation2 + $0x30] sm:$0xf]
    %v100 = vld [vmem:[#allocation2 + $0x34] sm:$0xf]
    %v101 = vld [vmem:[#allocation2 + $0x38] sm:$0xf]
    %v102 = vld [vmem:[#allocation2 + $0x3c] sm:$0xf]
    %v103 = vld [vmem:[#allocation2 + $0x40] sm:$0xf]
    %v104 = vld [vmem:[#allocation2 + $0x44] sm:$0xf]
    %v105 = vld [vmem:[#allocation2 + $0x48] sm:$0xf]
    %v106 = vld [vmem:[#allocation2 + $0x4c] sm:$0xf]
    %v107 = vld [vmem:[#allocation2 + $0x50] sm:$0xf]
    %v108 = vld [vmem:[#allocation2 + $0x54] sm:$0xf]
    %v109 = vld [vmem:[#allocation2 + $0x58] sm:$0xf]
    %v110 = vld [vmem:[#allocation2 + $0x5c] sm:$0xf]
    %v111 = vld [vmem:[#allocation2 + $0x60] sm:$0xf]
    %v112 = vld [vmem:[#allocation2 + $0x64] sm:$0xf]
    %v113 = vld [vmem:[#allocation2 + $0x68] sm:$0xf]
    %v114 = vld [vmem:[#allocation2 + $0x6c] sm:$0xf]
    %v115 = vld [vmem:[#allocation2 + $0x70] sm:$0xf]
    %v116 = vld [vmem:[#allocation2 + $0x74] sm:$0xf]
    %v117 = vld [vmem:[#allocation2 + $0x78] sm:$0xf]
    %v118 = vld [vmem:[#allocation2 + $0x7c] sm:$0xf]
    %v119 = vld [vmem:[#allocation2 + $0x80] sm:$0xf]
    %v120 = vld [vmem:[#allocation2 + $0x84] sm:$0xf]
    %v121 = vld [vmem:[#allocation2 + $0x88] sm:$0xf]
    %v122 = vld [vmem:[#allocation2 + $0x8c] sm:$0xf]
    %v155 = vunpack.c.l.b16 %v55
    %v156 = vunpack.c.h.b16 %v55
    %v157 = vunpack.c.l.b16 %v56
    %v158 = vunpack.c.l.b16 %v57
    %v159 = vunpack.c.h.b16 %v57
    %v160 = vunpack.c.l.b16 %v58
    %v161 = vunpack.c.l.b16 %v59
    %v162 = vunpack.c.h.b16 %v59
    %v163 = vunpack.c.l.b16 %v60
    %v164 = vunpack.c.l.b16 %v61
    %v165 = vunpack.c.h.b16 %v61
    %v166 = vunpack.c.l.b16 %v62
    %v167 = vunpack.c.l.b16 %v63
    %v168 = vunpack.c.h.b16 %v63
    %v169 = vunpack.c.l.b16 %v64
    %v170 = vunpack.c.l.b16 %v65
    %v171 = vunpack.c.h.b16 %v65
    %v172 = vunpack.c.l.b16 %v66
    %v173 = vunpack.c.l.b16 %v67
    %v174 = vunpack.c.h.b16 %v67
    %v175 = vunpack.c.l.b16 %v68
    %v176 = vunpack.c.l.b16 %v69
    %v177 = vunpack.c.h.b16 %v69
    %v178 = vunpack.c.l.b16 %v70
    %v179 = vunpack.c.l.b16 %v71
    %v180 = vunpack.c.h.b16 %v71
    %v181 = vunpack.c.l.b16 %v72
    %v182 = vunpack.c.l.b16 %v73
    %v183 = vunpack.c.h.b16 %v73
    %v184 = vunpack.c.l.b16 %v74
    %v185 = vunpack.c.l.b16 %v75
    %v186 = vunpack.c.h.b16 %v75
    %v187 = vunpack.c.l.b16 %v76
    %v188 = vunpack.c.l.b16 %v77
    %v189 = vunpack.c.h.b16 %v77
    %v190 = vunpack.c.l.b16 %v78
    %v191 = vunpack.c.l.b16 %v79
    %v192 = vunpack.c.h.b16 %v79
    %v193 = vunpack.c.l.b16 %v80
    %v194 = vunpack.c.l.b16 %v81
    %v195 = vunpack.c.h.b16 %v81
    %v196 = vunpack.c.l.b16 %v82
    %v197 = vunpack.c.l.b16 %v83
    %v198 = vunpack.c.h.b16 %v83
    %v199 = vunpack.c.l.b16 %v84
    %v200 = vunpack.c.l.b16 %v85
    %v201 = vunpack.c.h.b16 %v85
    %v202 = vunpack.c.l.b16 %v86
    %v203 = vpack.c.b16 %v158, %v155
    %v204 = vpack.c.b16 %v159, %v156
    %v205 = vpack.c.b16 %v160, %v157
    %v206 = vpack.c.b16 %v164, %v161
    %v207 = vpack.c.b16 %v165, %v162
    %v208 = vpack.c.b16 %v166, %v163
    %v209 = vpack.c.b16 %v170, %v167
    %v210 = vpack.c.b16 %v171, %v168
    %v211 = vpack.c.b16 %v172, %v169
    %v212 = vpack.c.b16 %v176, %v173
    %v213 = vpack.c.b16 %v177, %v174
    %v214 = vpack.c.b16 %v178, %v175
    %v215 = vpack.c.b16 %v182, %v179
    %v216 = vpack.c.b16 %v183, %v180
    %v217 = vpack.c.b16 %v184, %v181
    %v218 = vpack.c.b16 %v188, %v185
    %v219 = vpack.c.b16 %v189, %v186
    %v220 = vpack.c.b16 %v190, %v187
    %v221 = vpack.c.b16 %v194, %v191
    %v222 = vpack.c.b16 %v195, %v192
    %v223 = vpack.c.b16 %v196, %v193
    %v224 = vpack.c.b16 %v200, %v197
    %v225 = vpack.c.b16 %v201, %v198
    %v226 = vpack.c.b16 %v202, %v199
    %v279 = vunpack.c.l.b16 %v87
    %v280 = vunpack.c.l.b16 %v88
    %v281 = vunpack.c.l.b16 %v89
    %v282 = vunpack.c.l.b16 %v90
    %v283 = vunpack.c.l.b16 %v91
    %v284 = vunpack.c.l.b16 %v92
    %v285 = vunpack.c.l.b16 %v93
    %v286 = vunpack.c.l.b16 %v94
    %v287 = vunpack.c.l.b16 %v95
    %v288 = vunpack.c.l.b16 %v96
    %v289 = vunpack.c.l.b16 %v97
    %v290 = vunpack.c.l.b16 %v98
    %v291 = vunpack.c.l.b16 %v99
    %v292 = vunpack.c.l.b16 %v100
    %v293 = vunpack.c.l.b16 %v101
    %v294 = vunpack.c.l.b16 %v102
    %v295 = vunpack.c.l.b16 %v103
    %v296 = vunpack.c.l.b16 %v104
    %v297 = vunpack.c.l.b16 %v105
    %v298 = vunpack.c.l.b16 %v106
    %v299 = vunpack.c.l.b16 %v107
    %v300 = vunpack.c.l.b16 %v108
    %v301 = vunpack.c.l.b16 %v109
    %v302 = vunpack.c.l.b16 %v110
    %v303 = vunpack.c.l.b16 %v111
    %v304 = vunpack.c.l.b16 %v112
    %v305 = vunpack.c.l.b16 %v113
    %v306 = vunpack.c.l.b16 %v114
    %v307 = vunpack.c.l.b16 %v115
    %v308 = vunpack.c.l.b16 %v116
    %v309 = vunpack.c.l.b16 %v117
    %v310 = vunpack.c.l.b16 %v118
    %v311 = vunpack.c.l.b16 %v119
    %v312 = vunpack.c.l.b16 %v120
    %v313 = vunpack.c.l.b16 %v121
    %v314 = vunpack.c.l.b16 %v122
    %v315 = vpack.c.b16 %v280, %v279
    %v316 = vpack.c.b16 %v282, %v281
    %v317 = vpack.c.b16 %v284, %v283
    %v318 = vpack.c.b16 %v286, %v285
    %v319 = vpack.c.b16 %v288, %v287
    %v320 = vpack.c.b16 %v290, %v289
    %v321 = vpack.c.b16 %v292, %v291
    %v322 = vpack.c.b16 %v294, %v293
    %v323 = vpack.c.b16 %v296, %v295
    %v324 = vpack.c.b16 %v298, %v297
    %v325 = vpack.c.b16 %v300, %v299
    %v326 = vpack.c.b16 %v302, %v301
    %v327 = vpack.c.b16 %v304, %v303
    %v328 = vpack.c.b16 %v306, %v305
    %v329 = vpack.c.b16 %v308, %v307
    %v330 = vpack.c.b16 %v310, %v309
    %v331 = vpack.c.b16 %v312, %v311
    %v332 = vpack.c.b16 %v314, %v313
    %vm351 = vcmask 261120
    %v353 = vsel %vm351, %v205, 0
    %v356 = vsel %vm351, %v208, 0
    %v359 = vsel %vm351, %v211, 0
    %v362 = vsel %vm351, %v214, 0
    %v365 = vsel %vm351, %v217, 0
    %v368 = vsel %vm351, %v220, 0
    %v371 = vsel %vm351, %v223, 0
    %v374 = vsel %vm351, %v226, 0
    %376 = vmatprep.subr.bf16.mxu0 0
    %377 = vmatpush1.bf16.msra.mxu0 %v322
    %378 = vmatprep.subr.bf16.mxu0 0
    %379 = vmatpush1.bf16.msra.mxu0 %v321
    %380 = vmatprep.subr.bf16.mxu0 0
    %381 = vmatpush1.bf16.msra.mxu0 %v320
    %382 = vmatprep.subr.bf16.mxu0 0
    %383 = vmatpush1.bf16.msra.mxu0 %v319
    %384 = vmatprep.subr.bf16.mxu0 0
    %385 = vmatpush1.bf16.msra.mxu0 %v318
    %386 = vmatprep.subr.bf16.mxu0 0
    %387 = vmatpush1.bf16.msra.mxu0 %v317
    %388 = vmatprep.subr.bf16.mxu0 0
    %389 = vmatpush1.bf16.msra.mxu0 %v316
    %390 = vmatprep.subr.bf16.mxu0 0
    %391 = vmatpush1.bf16.msra.mxu0 %v315
    %392 = vmatprep.subr.bf16.mxu0 0
    %393 = vmatpush2.bf16.msra.mxu0 %v330
    %394 = vmatprep.subr.bf16.mxu0 0
    %395 = vmatpush2.bf16.msra.mxu0 %v329
    %396 = vmatprep.subr.bf16.mxu0 0
    %397 = vmatpush2.bf16.msra.mxu0 %v328
    %398 = vmatprep.subr.bf16.mxu0 0
    %399 = vmatpush2.bf16.msra.mxu0 %v327
    %400 = vmatprep.subr.bf16.mxu0 0
    %401 = vmatpush2.bf16.msra.mxu0 %v326
    %402 = vmatprep.subr.bf16.mxu0 0
    %403 = vmatpush2.bf16.msra.mxu0 %v325
    %404 = vmatprep.subr.bf16.mxu0 0
    %405 = vmatpush2.bf16.msra.mxu0 %v324
    %406 = vmatprep.subr.bf16.mxu0 0
    %407 = vmatpush2.bf16.msra.mxu0 %v323
    %408 = vmatprep.mubr.bf16.mxu0 %v204
    %409 = vmatmul.mubr.bf16.gmra.mxu0 %v203
    %v410 = vpop.f32.mrf.mxu0
    %v411 = vadd.f32 0.0, %v410
    %v412 = vpop.f32.mrf.mxu0
    %v413 = vpop.f32.mrf.mxu0
    %v414 = vadd.f32 0.0, %v413
    %v415 = vpop.f32.mrf.mxu0
    %416 = vmatprep.mubr.bf16.mxu0 %v207
    %417 = vmatmul.mubr.bf16.gmra.mxu0 %v206
    %v418 = vpop.f32.mrf.mxu0
    %v419 = vadd.f32 0.0, %v418
    %v420 = vpop.f32.mrf.mxu0
    %v421 = vpop.f32.mrf.mxu0
    %v422 = vadd.f32 0.0, %v421
    %v423 = vpop.f32.mrf.mxu0
    %424 = vmatprep.mubr.bf16.mxu0 %v210
    %425 = vmatmul.mubr.bf16.gmra.mxu0 %v209
    %v426 = vpop.f32.mrf.mxu0
    %v427 = vadd.f32 0.0, %v426
    %v428 = vpop.f32.mrf.mxu0
    %v429 = vpop.f32.mrf.mxu0
    %v430 = vadd.f32 0.0, %v429
    %v431 = vpop.f32.mrf.mxu0
    %432 = vmatprep.mubr.bf16.mxu0 %v213
    %433 = vmatmul.mubr.bf16.gmra.mxu0 %v212
    %v434 = vpop.f32.mrf.mxu0
    %v435 = vadd.f32 0.0, %v434
    %v436 = vpop.f32.mrf.mxu0
    %v437 = vpop.f32.mrf.mxu0
    %v438 = vadd.f32 0.0, %v437
    %v439 = vpop.f32.mrf.mxu0
    %440 = vmatprep.mubr.bf16.mxu0 %v216
    %441 = vmatmul.mubr.bf16.gmra.mxu0 %v215
    %v442 = vpop.f32.mrf.mxu0
    %v443 = vadd.f32 0.0, %v442
    %v444 = vpop.f32.mrf.mxu0
    %v445 = vpop.f32.mrf.mxu0
    %v446 = vadd.f32 0.0, %v445
    %v447 = vpop.f32.mrf.mxu0
    %448 = vmatprep.mubr.bf16.mxu0 %v219
    %449 = vmatmul.mubr.bf16.gmra.mxu0 %v218
    %v450 = vpop.f32.mrf.mxu0
    %v451 = vadd.f32 0.0, %v450
    %v452 = vpop.f32.mrf.mxu0
    %v453 = vpop.f32.mrf.mxu0
    %v454 = vadd.f32 0.0, %v453
    %v455 = vpop.f32.mrf.mxu0
    %456 = vmatprep.mubr.bf16.mxu0 %v222
    %457 = vmatmul.mubr.bf16.gmra.mxu0 %v221
    %v458 = vpop.f32.mrf.mxu0
    %v459 = vadd.f32 0.0, %v458
    %v460 = vpop.f32.mrf.mxu0
    %v461 = vpop.f32.mrf.mxu0
    %v462 = vadd.f32 0.0, %v461
    %v463 = vpop.f32.mrf.mxu0
    %464 = vmatprep.mubr.bf16.mxu0 %v225
    %465 = vmatmul.mubr.bf16.gmra.mxu0 %v224
    %v466 = vpop.f32.mrf.mxu0
    %v467 = vadd.f32 0.0, %v466
    %v468 = vpop.f32.mrf.mxu0
    %v469 = vpop.f32.mrf.mxu0
    %v470 = vadd.f32 0.0, %v469
    %v471 = vpop.f32.mrf.mxu0
    %472 = vdwg.mxu0
    %473 = vmatprep.subr.bf16.mxu0 0
    %474 = vmatpush1.bf16.msra.mxu0 0
    %475 = vmatprep.subr.bf16.mxu0 0
    %476 = vmatpush1.bf16.msra.mxu0 0
    %477 = vmatprep.subr.bf16.mxu0 0
    %478 = vmatpush1.bf16.msra.mxu0 0
    %479 = vmatprep.subr.bf16.mxu0 0
    %480 = vmatpush1.bf16.msra.mxu0 0
    %481 = vmatprep.subr.bf16.mxu0 0
    %482 = vmatpush1.bf16.msra.mxu0 0
    %483 = vmatprep.subr.bf16.mxu0 0
    %484 = vmatpush1.bf16.msra.mxu0 0
    %485 = vmatprep.subr.bf16.mxu0 0
    %486 = vmatpush1.bf16.msra.mxu0 %v332
    %487 = vmatprep.subr.bf16.mxu0 0
    %488 = vmatpush1.bf16.msra.mxu0 %v331
    %489 = vmatprep.subr.bf16.mxu0 0
    %490 = vmatpush2.bf16.msra.mxu0 0
    %491 = vmatprep.subr.bf16.mxu0 0
    %492 = vmatpush2.bf16.msra.mxu0 0
    %493 = vmatprep.subr.bf16.mxu0 0
    %494 = vmatpush2.bf16.msra.mxu0 0
    %495 = vmatprep.subr.bf16.mxu0 0
    %496 = vmatpush2.bf16.msra.mxu0 0
    %497 = vmatprep.subr.bf16.mxu0 0
    %498 = vmatpush2.bf16.msra.mxu0 0
    %499 = vmatprep.subr.bf16.mxu0 0
    %500 = vmatpush2.bf16.msra.mxu0 0
    %501 = vmatprep.subr.bf16.mxu0 0
    %502 = vmatpush2.bf16.msra.mxu0 0
    %503 = vmatprep.subr.bf16.mxu0 0
    %504 = vmatpush2.bf16.msra.mxu0 0
    %505 = vmatprep.mubr.bf16.mxu0 0
    %506 = vmatmul.mubr.bf16.gmra.mxu0 %v353
    %v507 = vpop.f32.mrf.mxu0
    %v508 = vadd.f32 %v411, %v507
    %v509 = vpop.f32.mrf.mxu0
    %v510 = vpop.f32.mrf.mxu0
    %v511 = vadd.f32 %v414, %v510
    %v512 = vpop.f32.mrf.mxu0
    %513 = vmatprep.mubr.bf16.mxu0 0
    %514 = vmatmul.mubr.bf16.gmra.mxu0 %v356
    %v515 = vpop.f32.mrf.mxu0
    %v516 = vadd.f32 %v419, %v515
    %v517 = vpop.f32.mrf.mxu0
    %v518 = vpop.f32.mrf.mxu0
    %v519 = vadd.f32 %v422, %v518
    %v520 = vpop.f32.mrf.mxu0
    %521 = vmatprep.mubr.bf16.mxu0 0
    %522 = vmatmul.mubr.bf16.gmra.mxu0 %v359
    %v523 = vpop.f32.mrf.mxu0
    %v524 = vadd.f32 %v427, %v523
    %v525 = vpop.f32.mrf.mxu0
    %v526 = vpop.f32.mrf.mxu0
    %v527 = vadd.f32 %v430, %v526
    %v528 = vpop.f32.mrf.mxu0
    %529 = vmatprep.mubr.bf16.mxu0 0
    %530 = vmatmul.mubr.bf16.gmra.mxu0 %v362
    %v531 = vpop.f32.mrf.mxu0
    %v532 = vadd.f32 %v435, %v531
    %v533 = vpop.f32.mrf.mxu0
    %v534 = vpop.f32.mrf.mxu0
    %v535 = vadd.f32 %v438, %v534
    %v536 = vpop.f32.mrf.mxu0
    %537 = vmatprep.mubr.bf16.mxu0 0
    %538 = vmatmul.mubr.bf16.gmra.mxu0 %v365
    %v539 = vpop.f32.mrf.mxu0
    %v540 = vadd.f32 %v443, %v539
    %v541 = vpop.f32.mrf.mxu0
    %v542 = vpop.f32.mrf.mxu0
    %v543 = vadd.f32 %v446, %v542
    %v544 = vpop.f32.mrf.mxu0
    %545 = vmatprep.mubr.bf16.mxu0 0
    %546 = vmatmul.mubr.bf16.gmra.mxu0 %v368
    %v547 = vpop.f32.mrf.mxu0
    %v548 = vadd.f32 %v451, %v547
    %v549 = vpop.f32.mrf.mxu0
    %v550 = vpop.f32.mrf.mxu0
    %v551 = vadd.f32 %v454, %v550
    %v552 = vpop.f32.mrf.mxu0
    %553 = vmatprep.mubr.bf16.mxu0 0
    %554 = vmatmul.mubr.bf16.gmra.mxu0 %v371
    %v555 = vpop.f32.mrf.mxu0
    %v556 = vadd.f32 %v459, %v555
    %v557 = vpop.f32.mrf.mxu0
    %v558 = vpop.f32.mrf.mxu0
    %v559 = vadd.f32 %v462, %v558
    %v560 = vpop.f32.mrf.mxu0
    %561 = vmatprep.mubr.bf16.mxu0 0
    %562 = vmatmul.mubr.bf16.gmra.mxu0 %v374
    %v563 = vpop.f32.mrf.mxu0
    %v564 = vadd.f32 %v467, %v563
    %v565 = vpop.f32.mrf.mxu0
    %v566 = vpop.f32.mrf.mxu0
    %v567 = vadd.f32 %v470, %v566
    %v568 = vpop.f32.mrf.mxu0
    %569 = vdwg.mxu0
    %v570 = vadd.f32 %v508, %v511
    %v571 = vadd.f32 %v570, %v516
    %v572 = vadd.f32 %v571, %v519
    %v573 = vadd.f32 %v572, %v524
    %v574 = vadd.f32 %v573, %v527
    %v575 = vadd.f32 %v574, %v532
    %v576 = vadd.f32 %v575, %v535
    %v577 = vadd.f32 %v576, %v540
    %v578 = vadd.f32 %v577, %v543
    %v579 = vadd.f32 %v578, %v548
    %v580 = vadd.f32 %v579, %v551
    %v581 = vadd.f32 %v580, %v556
    %v582 = vadd.f32 %v581, %v559
    %v583 = vadd.f32 %v582, %v564
    %v584 = vadd.f32 %v583, %v567
    %v585 = vrot.slane %v584, 4
    %v586 = vadd.f32 %v584, %v585
    %v587 = vrot.slane %v586, 2
    %v588 = vadd.f32 %v586, %v587
    %v589 = vrot.slane %v588, 1
    %v590 = vadd.f32 %v588, %v589
    %v591 = vmul.f32 %v508, %v508
    %v592 = vmul.f32 %v511, %v511
    %v593 = vmul.f32 %v516, %v516
    %v594 = vmul.f32 %v519, %v519
    %v595 = vmul.f32 %v524, %v524
    %v596 = vmul.f32 %v527, %v527
    %v597 = vmul.f32 %v532, %v532
    %v598 = vmul.f32 %v535, %v535
    %v599 = vmul.f32 %v540, %v540
    %v600 = vmul.f32 %v543, %v543
    %v601 = vmul.f32 %v548, %v548
    %v602 = vmul.f32 %v551, %v551
    %v603 = vmul.f32 %v556, %v556
    %v604 = vmul.f32 %v559, %v559
    %v605 = vmul.f32 %v564, %v564
    %v606 = vmul.f32 %v567, %v567
    %v607 = vadd.f32 %v591, %v592
    %v608 = vadd.f32 %v607, %v593
    %v609 = vadd.f32 %v608, %v594
    %v610 = vadd.f32 %v609, %v595
    %v611 = vadd.f32 %v610, %v596
    %v612 = vadd.f32 %v611, %v597
    %v613 = vadd.f32 %v612, %v598
    %v614 = vadd.f32 %v613, %v599
    %v615 = vadd.f32 %v614, %v600
    %v616 = vadd.f32 %v615, %v601
    %v617 = vadd.f32 %v616, %v602
    %v618 = vadd.f32 %v617, %v603
    %v619 = vadd.f32 %v618, %v604
    %v620 = vadd.f32 %v619, %v605
    %v621 = vadd.f32 %v620, %v606
    %v622 = vrot.slane %v621, 4
    %v623 = vadd.f32 %v621, %v622
    %v624 = vrot.slane %v623, 2
    %v625 = vadd.f32 %v623, %v624
    %v626 = vrot.slane %v625, 1
    %v627 = vadd.f32 %v625, %v626
    %629 = vrot.lane.b32.xlu0 %v590, 112
    %v630 = vpop.permute.xlu0 %629
    %v632 = vadd.f32 %v590, %v630
    %634 = vrot.lane.b32.xlu0 %v627, 112
    %v635 = vpop.permute.xlu0 %634
    %v637 = vadd.f32 %v627, %v635
    %638 = vrot.lane.b32.xlu0 %v590, 96
    %v639 = vpop.permute.xlu0 %638
    %v641 = vadd.f32 %v632, %v639
    %642 = vrot.lane.b32.xlu0 %v627, 96
    %v643 = vpop.permute.xlu0 %642
    %v645 = vadd.f32 %v637, %v643
    %646 = vrot.lane.b32.xlu0 %v590, 80
    %v647 = vpop.permute.xlu0 %646
    %v649 = vadd.f32 %v641, %v647
    %650 = vrot.lane.b32.xlu0 %v627, 80
    %v651 = vpop.permute.xlu0 %650
    %v653 = vadd.f32 %v645, %v651
    %v654 = vmul.f32 %v649, 0.001953125
    %v655 = vmul.f32 %v653, 0.001953125
    %v656 = vmul.f32 %v654, %v654
    %v657 = vsub.f32 %v655, %v656
    %v658 = vld [vmem:[#allocation4] sm:$0x1]
    %v659 = vadd.f32 %v657, 1e-05
    %v660 = vrsqrt.pop %v659
    %v661 = vmul.f32 %v658, %v660
    %v662 = vld [vmem:[#allocation6] sm:$0x1]
    %v663 = vmul.f32 %v654, %v661
    %v664 = vsub.f32 %v662, %v663
    %v666 = vlaneseq
    %v667 = vshrl.u32 %v666, 7
    %v668 = vsub.s32 0, %v667
    %v669 = vrot.slane %v661, %v668
    %670 = vrot.lane.b32.xlu0 %v669, 16
    %v671 = vpop.permute.xlu0 %670
    %673 = vrot.lane.b32.xlu0 %v669, 32
    %v674 = vpop.permute.xlu0 %673
    %676 = vrot.lane.b32.xlu0 %v669, 48
    %v677 = vpop.permute.xlu0 %676
    %vm679 = vcmask 130048
    %v680 = vsel %vm679, %v661, %v671
    %v681 = vsel %vm351, %v680, %v674
    %vm682 = vcmask 392192
    %v683 = vsel %vm682, %v681, %v677
    %vm684 = vcmask 523264
    %v685 = vsel %vm684, %v683, 0.0
    %v687 = vlaneseq
    %v688 = vshrl.u32 %v687, 7
    %v689 = vsub.s32 0, %v688
    %v690 = vrot.slane %v664, %v689
    %691 = vrot.lane.b32.xlu0 %v690, 16
    %v692 = vpop.permute.xlu0 %691
    %694 = vrot.lane.b32.xlu0 %v690, 32
    %v695 = vpop.permute.xlu0 %694
    %697 = vrot.lane.b32.xlu0 %v690, 48
    %v698 = vpop.permute.xlu0 %697
    %v700 = vsel %vm679, %v664, %v692
    %v701 = vsel %vm351, %v700, %v695
    %v702 = vsel %vm682, %v701, %v698
    %v703 = vsel %vm684, %v702, 0.0
    %v704 = vlaneseq
    %v705 = vshrl.u32 %v704, 7
    %v706 = vsub.s32 0, %v705
    %v707 = vrot.slane %v685, %v706
    %v708 = vmul.f32 %v508, %v707
    %v709 = vmul.f32 %v511, %v707
    %v710 = vmul.f32 %v516, %v707
    %v711 = vmul.f32 %v519, %v707
    %v712 = vmul.f32 %v524, %v707
    %v713 = vmul.f32 %v527, %v707
    %v714 = vmul.f32 %v532, %v707
    %v715 = vmul.f32 %v535, %v707
    %v716 = vmul.f32 %v540, %v707
    %v717 = vmul.f32 %v543, %v707
    %v718 = vmul.f32 %v548, %v707
    %v719 = vmul.f32 %v551, %v707
    %v720 = vmul.f32 %v556, %v707
    %v721 = vmul.f32 %v559, %v707
    %v722 = vmul.f32 %v564, %v707
    %v723 = vmul.f32 %v567, %v707
    %v724 = vlaneseq
    %v725 = vshrl.u32 %v724, 7
    %v726 = vsub.s32 0, %v725
    %v727 = vrot.slane %v703, %v726
    %v728 = vadd.f32 %v708, %v727
    %v729 = vadd.f32 %v709, %v727
    %v730 = vadd.f32 %v710, %v727
    %v731 = vadd.f32 %v711, %v727
    %v732 = vadd.f32 %v712, %v727
    %v733 = vadd.f32 %v713, %v727
    %v734 = vadd.f32 %v714, %v727
    %v735 = vadd.f32 %v715, %v727
    %v736 = vadd.f32 %v716, %v727
    %v737 = vadd.f32 %v717, %v727
    %v738 = vadd.f32 %v718, %v727
    %v739 = vadd.f32 %v719, %v727
    %v740 = vadd.f32 %v720, %v727
    %v741 = vadd.f32 %v721, %v727
    %v742 = vadd.f32 %v722, %v727
    %v743 = vadd.f32 %v723, %v727
    %v744 = vmax.f32 %v728, 0.0
    %v745 = vmax.f32 %v729, 0.0
    %v746 = vmax.f32 %v730, 0.0
    %v747 = vmax.f32 %v731, 0.0
    %v748 = vmax.f32 %v732, 0.0
    %v749 = vmax.f32 %v733, 0.0
    %v750 = vmax.f32 %v734, 0.0
    %v751 = vmax.f32 %v735, 0.0
    %v752 = vmax.f32 %v736, 0.0
    %v753 = vmax.f32 %v737, 0.0
    %v754 = vmax.f32 %v738, 0.0
    %v755 = vmax.f32 %v739, 0.0
    %v756 = vmax.f32 %v740, 0.0
    %v757 = vmax.f32 %v741, 0.0
    %v758 = vmax.f32 %v742, 0.0
    %v759 = vmax.f32 %v743, 0.0
    %v760 = vpack.c.bf16 %v745, %v744
    %v761 = vpack.c.bf16 %v747, %v746
    %v762 = vpack.c.bf16 %v749, %v748
    %v763 = vpack.c.bf16 %v751, %v750
    %v764 = vpack.c.bf16 %v753, %v752
    %v765 = vpack.c.bf16 %v755, %v754
    %v766 = vpack.c.bf16 %v757, %v756
    %v767 = vpack.c.bf16 %v759, %v758
    %v776 = vunpack.c.l.b16 %v760
    %v777 = vunpack.c.h.b16 %v760
    %v778 = vunpack.c.l.b16 %v761
    %v779 = vunpack.c.h.b16 %v761
    %v780 = vunpack.c.l.b16 %v762
    %v781 = vunpack.c.h.b16 %v762
    %v782 = vunpack.c.l.b16 %v763
    %v783 = vunpack.c.h.b16 %v763
    %v784 = vunpack.c.l.b16 %v764
    %v785 = vunpack.c.h.b16 %v764
    %v786 = vunpack.c.l.b16 %v765
    %v787 = vunpack.c.h.b16 %v765
    %v788 = vunpack.c.l.b16 %v766
    %v789 = vunpack.c.h.b16 %v766
    %v790 = vunpack.c.l.b16 %v767
    %v791 = vunpack.c.h.b16 %v767
    %v792 = vpack.c.b16 %v776, %v776
    %v793 = vpack.c.b16 %v777, %v777
    %v794 = vpack.c.b16 %v778, %v778
    %v795 = vpack.c.b16 %v779, %v779
    %v796 = vpack.c.b16 %v780, %v780
    %v797 = vpack.c.b16 %v781, %v781
    %v798 = vpack.c.b16 %v782, %v782
    %v799 = vpack.c.b16 %v783, %v783
    %v800 = vpack.c.b16 %v784, %v784
    %v801 = vpack.c.b16 %v785, %v785
    %v802 = vpack.c.b16 %v786, %v786
    %v803 = vpack.c.b16 %v787, %v787
    %v804 = vpack.c.b16 %v788, %v788
    %v805 = vpack.c.b16 %v789, %v789
    %v806 = vpack.c.b16 %v790, %v790
    %v807 = vpack.c.b16 %v791, %v791
    %824 = vst [vmem:[%s4] sm:$0xf] %v792
    %825 = vst [vmem:[%s4 + $0x4] sm:$0xf] %v793
    %826 = vst [vmem:[%s4 + $0x8] sm:$0xf] %v794
    %827 = vst [vmem:[%s4 + $0xc] sm:$0xf] %v795
    %828 = vst [vmem:[%s4 + $0x10] sm:$0xf] %v796
    %829 = vst [vmem:[%s4 + $0x14] sm:$0xf] %v797
    %830 = vst [vmem:[%s4 + $0x18] sm:$0xf] %v798
    %831 = vst [vmem:[%s4 + $0x1c] sm:$0xf] %v799
    %832 = vst [vmem:[%s4 + $0x20] sm:$0xf] %v800
    %833 = vst [vmem:[%s4 + $0x24] sm:$0xf] %v801
    %834 = vst [vmem:[%s4 + $0x28] sm:$0xf] %v802
    %835 = vst [vmem:[%s4 + $0x2c] sm:$0xf] %v803
    %836 = vst [vmem:[%s4 + $0x30] sm:$0xf] %v804
    %837 = vst [vmem:[%s4 + $0x34] sm:$0xf] %v805
    %838 = vst [vmem:[%s4 + $0x38] sm:$0xf] %v806
    %839 = vst [vmem:[%s4 + $0x3c] sm:$0xf] %v807
    // Predicated region
    $region30: #{generator_forward.7} parent=1 // pred_check
      _
    $region31: #{generator_forward.7} parent=1 // pred_check_branch
      %841 = sbr.rel (0) target = $region33
    $region32: #{generator_forward.7} parent=1 // pred_region
      _
    $region33: #{generator_forward.7} parent=1 // pred_fallthru
      _
    // Predicated region
    $region34: #{generator_forward.7} parent=1 // pred_check
      _
    $region35: #{generator_forward.7} parent=1 // pred_check_branch
      %843 = sbr.rel (0) target = $region37
    $region36: #{generator_forward.7} parent=1 // pred_region
      _
    $region37: #{generator_forward.7} parent=1 // pred_fallthru
      _
    %844 = vsyncpa [#allocation3], 1
    %845 = vsyncpa [#allocation5], 1

// kernel: generator_forward.8
$region0: #{generator_forward.8}
  #allocation0 [shape = 'u32[]', space=smem, size = 0x4, offset = 0x4, fixed_abs, tag = 'smem constant byte address 0x4 - core index']
  #allocation1 [shape = 'u32[144,128]{1,0:T(1,128)}', space=vmem, size = 0x12000, scoped, tag = 'internal scratch']
  %s0 = inlined_call_operand.vmem [shape: bf16[512,144], index: 0, kind: input, shape index: {}]
  %s1 = inlined_call_operand.hbm [shape: bf16[144,128], index: 1, kind: input, shape index: {}]
  %s2 = inlined_call_operand.hbm [shape: f32[1,8], index: 2, kind: input, shape index: {}]
  %s3 = inlined_call_operand.hbm [shape: f32[1,8], index: 3, kind: input, shape index: {}]
  %s4 = inlined_call_operand.vmem [shape: bf16[512,128], index: 4, kind: output, shape index: {}]
  %s5 = sld [smem:[#allocation0]]
  $region38: #{generator_forward.8} parent=0
    _
  %s7 = ssub.s32 1, %s5
  %s8 = scalar_select 0, %s7, %s5
  $region1: #{generator_forward.8} parent=0
    #allocation2 [shape = 'u8[36864]{0}', space=vmem, size = 0x9000, scoped, tag = 'input window, operand 1, single buffered']
    #allocation3 [shape = 's32[1]{0}', space=sflag, size = 0x4, scoped, tag = 'scoped memory for generator_forward.8']
    #allocation4 [shape = 'u8[512]{0}', space=vmem, size = 0x400, scoped, tag = 'input window, operand 2, single buffered']
    #allocation5 [shape = 's32[1]{0}', space=sflag, size = 0x4, scoped, tag = 'scoped memory for generator_forward.8']
    #allocation6 [shape = 'u8[512]{0}', space=vmem, size = 0x400, scoped, tag = 'input window, operand 3, single buffered']
    %9 = vsyncpa [#allocation3], 0
    %10 = vsyncpa [#allocation5], 0
    // Predicated region
    $region2: #{generator_forward.8} parent=1 // pred_check
      _
    $region3: #{generator_forward.8} parent=1 // pred_check_branch
      %12 = sbr.rel (0) target = $region5
    $region4: #{generator_forward.8} parent=1 // pred_region
      _
    $region5: #{generator_forward.8} parent=1 // pred_fallthru
      _
    // Predicated region
    $region6: #{generator_forward.8} parent=1 // pred_check
      _
    $region7: #{generator_forward.8} parent=1 // pred_check_branch
      %14 = sbr.rel (0) target = $region9
    $region8: #{generator_forward.8} parent=1 // pred_region
      %s16 = ssub.s32 1152, 1152
      %17 = vsyncadd [#allocation3], %s16
      %s18 = sshll.u32 [#allocation2], 4
      %s19 = int_to_ptr.vmem [resolvable:$true] %s18
      %24 = dma.hbm_to_vmem [thread:$0]  %s1, 1152, %s19, [#allocation3], 64, 64, 4
    $region9: #{generator_forward.8} parent=1 // pred_fallthru
      _
    // Predicated region
    $region10: #{generator_forward.8} parent=1 // pred_check
      _
    $region11: #{generator_forward.8} parent=1 // pred_check_branch
      %26 = sbr.rel (0) target = $region13
    $region12: #{generator_forward.8} parent=1 // pred_region
      %s28 = ssub.s32 16, 16
      %29 = vsyncadd [#allocation5], %s28
      %s31 = sshll.u32 [#allocation4], 4
      %s32 = int_to_ptr.vmem [resolvable:$true] %s31
      %34 = dma.hbm_to_vmem [thread:$0]  %s2, 16, %s32, [#allocation5]
    $region13: #{generator_forward.8} parent=1 // pred_fallthru
      _
    // Predicated region
    $region14: #{generator_forward.8} parent=1 // pred_check
      _
    $region15: #{generator_forward.8} parent=1 // pred_check_branch
      %36 = sbr.rel (0) target = $region17
    $region16: #{generator_forward.8} parent=1 // pred_region
      %s38 = ssub.s32 16, 16
      %39 = vsyncadd [#allocation5], %s38
      %s41 = sshll.u32 [#allocation6], 4
      %s42 = int_to_ptr.vmem [resolvable:$true] %s41
      %44 = dma.hbm_to_vmem [thread:$0]  %s3, 16, %s42, [#allocation5]
    $region17: #{generator_forward.8} parent=1 // pred_fallthru
      _
    // Predicated region
    $region18: #{generator_forward.8} parent=1 // pred_check
      _
    $region19: #{generator_forward.8} parent=1 // pred_check_branch
      %46 = sbr.rel (0) target = $region21
    $region20: #{generator_forward.8} parent=1 // pred_region
      %47 = dma.done [#allocation3], 1152
    $region21: #{generator_forward.8} parent=1 // pred_fallthru
      _
    // Predicated region
    $region22: #{generator_forward.8} parent=1 // pred_check
      _
    $region23: #{generator_forward.8} parent=1 // pred_check_branch
      %49 = sbr.rel (0) target = $region25
    $region24: #{generator_forward.8} parent=1 // pred_region
      %50 = dma.done [#allocation5], 16
    $region25: #{generator_forward.8} parent=1 // pred_fallthru
      _
    // Predicated region
    $region26: #{generator_forward.8} parent=1 // pred_check
      _
    $region27: #{generator_forward.8} parent=1 // pred_check_branch
      %52 = sbr.rel (0) target = $region29
    $region28: #{generator_forward.8} parent=1 // pred_region
      %53 = dma.done [#allocation5], 16
    $region29: #{generator_forward.8} parent=1 // pred_fallthru
      _
    %v55 = vld [vmem:[%s0] sm:$0xff]
    %v56 = vld [vmem:[%s0 + $0x8] sm:$0xff]
    %v57 = vld [vmem:[%s0 + $0x10] sm:$0xff]
    %v58 = vld [vmem:[%s0 + $0x18] sm:$0xff]
    %v59 = vld [vmem:[%s0 + $0x20] sm:$0xff]
    %v60 = vld [vmem:[%s0 + $0x28] sm:$0xff]
    %v61 = vld [vmem:[%s0 + $0x30] sm:$0xff]
    %v62 = vld [vmem:[%s0 + $0x38] sm:$0xff]
    %v63 = vld [vmem:[%s0 + $0x40] sm:$0xff]
    %v64 = vld [vmem:[%s0 + $0x48] sm:$0xff]
    %v65 = vld [vmem:[%s0 + $0x50] sm:$0xff]
    %v66 = vld [vmem:[%s0 + $0x58] sm:$0xff]
    %v67 = vld [vmem:[%s0 + $0x60] sm:$0xff]
    %v68 = vld [vmem:[%s0 + $0x68] sm:$0xff]
    %v69 = vld [vmem:[%s0 + $0x70] sm:$0xff]
    %v70 = vld [vmem:[%s0 + $0x78] sm:$0xff]
    %v71 = vld [vmem:[%s0 + $0x80] sm:$0xff]
    %v72 = vld [vmem:[%s0 + $0x88] sm:$0xff]
    %v73 = vld [vmem:[%s0 + $0x90] sm:$0xff]
    %v74 = vld [vmem:[%s0 + $0x98] sm:$0xff]
    %v75 = vld [vmem:[%s0 + $0xa0] sm:$0xff]
    %v76 = vld [vmem:[%s0 + $0xa8] sm:$0xff]
    %v77 = vld [vmem:[%s0 + $0xb0] sm:$0xff]
    %v78 = vld [vmem:[%s0 + $0xb8] sm:$0xff]
    %v79 = vld [vmem:[%s0 + $0xc0] sm:$0xff]
    %v80 = vld [vmem:[%s0 + $0xc8] sm:$0xff]
    %v81 = vld [vmem:[%s0 + $0xd0] sm:$0xff]
    %v82 = vld [vmem:[%s0 + $0xd8] sm:$0xff]
    %v83 = vld [vmem:[%s0 + $0xe0] sm:$0xff]
    %v84 = vld [vmem:[%s0 + $0xe8] sm:$0xff]
    %v85 = vld [vmem:[%s0 + $0xf0] sm:$0xff]
    %v86 = vld [vmem:[%s0 + $0xf8] sm:$0xff]
    %v87 = vld [vmem:[%s0 + $0x100] sm:$0xff]
    %v88 = vld [vmem:[%s0 + $0x108] sm:$0xff]
    %v89 = vld [vmem:[%s0 + $0x110] sm:$0xff]
    %v90 = vld [vmem:[%s0 + $0x118] sm:$0xff]
    %v91 = vld [vmem:[%s0 + $0x120] sm:$0xff]
    %v92 = vld [vmem:[%s0 + $0x128] sm:$0xff]
    %v93 = vld [vmem:[%s0 + $0x130] sm:$0xff]
    %v94 = vld [vmem:[%s0 + $0x138] sm:$0xff]
    %v95 = vld [vmem:[%s0 + $0x140] sm:$0xff]
    %v96 = vld [vmem:[%s0 + $0x148] sm:$0xff]
    %v97 = vld [vmem:[%s0 + $0x150] sm:$0xff]
    %v98 = vld [vmem:[%s0 + $0x158] sm:$0xff]
    %v99 = vld [vmem:[%s0 + $0x160] sm:$0xff]
    %v100 = vld [vmem:[%s0 + $0x168] sm:$0xff]
    %v101 = vld [vmem:[%s0 + $0x170] sm:$0xff]
    %v102 = vld [vmem:[%s0 + $0x178] sm:$0xff]
    %v103 = vld [vmem:[%s0 + $0x180] sm:$0xff]
    %v104 = vld [vmem:[%s0 + $0x188] sm:$0xff]
    %v105 = vld [vmem:[%s0 + $0x190] sm:$0xff]
    %v106 = vld [vmem:[%s0 + $0x198] sm:$0xff]
    %v107 = vld [vmem:[%s0 + $0x1a0] sm:$0xff]
    %v108 = vld [vmem:[%s0 + $0x1a8] sm:$0xff]
    %v109 = vld [vmem:[%s0 + $0x1b0] sm:$0xff]
    %v110 = vld [vmem:[%s0 + $0x1b8] sm:$0xff]
    %v111 = vld [vmem:[%s0 + $0x1c0] sm:$0xff]
    %v112 = vld [vmem:[%s0 + $0x1c8] sm:$0xff]
    %v113 = vld [vmem:[%s0 + $0x1d0] sm:$0xff]
    %v114 = vld [vmem:[%s0 + $0x1d8] sm:$0xff]
    %v115 = vld [vmem:[%s0 + $0x1e0] sm:$0xff]
    %v116 = vld [vmem:[%s0 + $0x1e8] sm:$0xff]
    %v117 = vld [vmem:[%s0 + $0x1f0] sm:$0xff]
    %v118 = vld [vmem:[%s0 + $0x1f8] sm:$0xff]
    %v119 = vld [vmem:[#allocation2] sm:$0xf]
    %v120 = vld [vmem:[#allocation2 + $0x4] sm:$0xf]
    %v121 = vld [vmem:[#allocation2 + $0x8] sm:$0xf]
    %v122 = vld [vmem:[#allocation2 + $0xc] sm:$0xf]
    %v123 = vld [vmem:[#allocation2 + $0x10] sm:$0xf]
    %v124 = vld [vmem:[#allocation2 + $0x14] sm:$0xf]
    %v125 = vld [vmem:[#allocation2 + $0x18] sm:$0xf]
    %v126 = vld [vmem:[#allocation2 + $0x1c] sm:$0xf]
    %v127 = vld [vmem:[#allocation2 + $0x20] sm:$0xf]
    %v128 = vld [vmem:[#allocation2 + $0x24] sm:$0xf]
    %v129 = vld [vmem:[#allocation2 + $0x28] sm:$0xf]
    %v130 = vld [vmem:[#allocation2 + $0x2c] sm:$0xf]
    %v131 = vld [vmem:[#allocation2 + $0x30] sm:$0xf]
    %v132 = vld [vmem:[#allocation2 + $0x34] sm:$0xf]
    %v133 = vld [vmem:[#allocation2 + $0x38] sm:$0xf]
    %v134 = vld [vmem:[#allocation2 + $0x3c] sm:$0xf]
    %v135 = vld [vmem:[#allocation2 + $0x40] sm:$0xf]
    %v136 = vld [vmem:[#allocation2 + $0x44] sm:$0xf]
    %v201 = vunpack.c.l.b16 %v55
    %v202 = vunpack.c.h.b16 %v55
    %v203 = vunpack.c.l.b16 %v56
    %v204 = vunpack.c.h.b16 %v56
    %v205 = vunpack.c.l.b16 %v57
    %v206 = vunpack.c.h.b16 %v57
    %v207 = vunpack.c.l.b16 %v58
    %v208 = vunpack.c.h.b16 %v58
    %v209 = vunpack.c.l.b16 %v59
    %v210 = vunpack.c.h.b16 %v59
    %v211 = vunpack.c.l.b16 %v60
    %v212 = vunpack.c.h.b16 %v60
    %v213 = vunpack.c.l.b16 %v61
    %v214 = vunpack.c.h.b16 %v61
    %v215 = vunpack.c.l.b16 %v62
    %v216 = vunpack.c.h.b16 %v62
    %v217 = vunpack.c.l.b16 %v63
    %v218 = vunpack.c.h.b16 %v63
    %v219 = vunpack.c.l.b16 %v64
    %v220 = vunpack.c.h.b16 %v64
    %v221 = vunpack.c.l.b16 %v65
    %v222 = vunpack.c.h.b16 %v65
    %v223 = vunpack.c.l.b16 %v66
    %v224 = vunpack.c.h.b16 %v66
    %v225 = vunpack.c.l.b16 %v67
    %v226 = vunpack.c.h.b16 %v67
    %v227 = vunpack.c.l.b16 %v68
    %v228 = vunpack.c.h.b16 %v68
    %v229 = vunpack.c.l.b16 %v69
    %v230 = vunpack.c.h.b16 %v69
    %v231 = vunpack.c.l.b16 %v70
    %v232 = vunpack.c.h.b16 %v70
    %v233 = vunpack.c.l.b16 %v71
    %v234 = vunpack.c.h.b16 %v71
    %v235 = vunpack.c.l.b16 %v72
    %v236 = vunpack.c.h.b16 %v72
    %v237 = vunpack.c.l.b16 %v73
    %v238 = vunpack.c.h.b16 %v73
    %v239 = vunpack.c.l.b16 %v74
    %v240 = vunpack.c.h.b16 %v74
    %v241 = vunpack.c.l.b16 %v75
    %v242 = vunpack.c.h.b16 %v75
    %v243 = vunpack.c.l.b16 %v76
    %v244 = vunpack.c.h.b16 %v76
    %v245 = vunpack.c.l.b16 %v77
    %v246 = vunpack.c.h.b16 %v77
    %v247 = vunpack.c.l.b16 %v78
    %v248 = vunpack.c.h.b16 %v78
    %v249 = vunpack.c.l.b16 %v79
    %v250 = vunpack.c.h.b16 %v79
    %v251 = vunpack.c.l.b16 %v80
    %v252 = vunpack.c.h.b16 %v80
    %v253 = vunpack.c.l.b16 %v81
    %v254 = vunpack.c.h.b16 %v81
    %v255 = vunpack.c.l.b16 %v82
    %v256 = vunpack.c.h.b16 %v82
    %v257 = vunpack.c.l.b16 %v83
    %v258 = vunpack.c.h.b16 %v83
    %v259 = vunpack.c.l.b16 %v84
    %v260 = vunpack.c.h.b16 %v84
    %v261 = vunpack.c.l.b16 %v85
    %v262 = vunpack.c.h.b16 %v85
    %v263 = vunpack.c.l.b16 %v86
    %v264 = vunpack.c.h.b16 %v86
    %v265 = vunpack.c.l.b16 %v87
    %v266 = vunpack.c.h.b16 %v87
    %v267 = vunpack.c.l.b16 %v88
    %v268 = vunpack.c.h.b16 %v88
    %v269 = vunpack.c.l.b16 %v89
    %v270 = vunpack.c.h.b16 %v89
    %v271 = vunpack.c.l.b16 %v90
    %v272 = vunpack.c.h.b16 %v90
    %v273 = vunpack.c.l.b16 %v91
    %v274 = vunpack.c.h.b16 %v91
    %v275 = vunpack.c.l.b16 %v92
    %v276 = vunpack.c.h.b16 %v92
    %v277 = vunpack.c.l.b16 %v93
    %v278 = vunpack.c.h.b16 %v93
    %v279 = vunpack.c.l.b16 %v94
    %v280 = vunpack.c.h.b16 %v94
    %v281 = vunpack.c.l.b16 %v95
    %v282 = vunpack.c.h.b16 %v95
    %v283 = vunpack.c.l.b16 %v96
    %v284 = vunpack.c.h.b16 %v96
    %v285 = vunpack.c.l.b16 %v97
    %v286 = vunpack.c.h.b16 %v97
    %v287 = vunpack.c.l.b16 %v98
    %v288 = vunpack.c.h.b16 %v98
    %v289 = vunpack.c.l.b16 %v99
    %v290 = vunpack.c.h.b16 %v99
    %v291 = vunpack.c.l.b16 %v100
    %v292 = vunpack.c.h.b16 %v100
    %v293 = vunpack.c.l.b16 %v101
    %v294 = vunpack.c.h.b16 %v101
    %v295 = vunpack.c.l.b16 %v102
    %v296 = vunpack.c.h.b16 %v102
    %v297 = vunpack.c.l.b16 %v103
    %v298 = vunpack.c.h.b16 %v103
    %v299 = vunpack.c.l.b16 %v104
    %v300 = vunpack.c.h.b16 %v104
    %v301 = vunpack.c.l.b16 %v105
    %v302 = vunpack.c.h.b16 %v105
    %v303 = vunpack.c.l.b16 %v106
    %v304 = vunpack.c.h.b16 %v106
    %v305 = vunpack.c.l.b16 %v107
    %v306 = vunpack.c.h.b16 %v107
    %v307 = vunpack.c.l.b16 %v108
    %v308 = vunpack.c.h.b16 %v108
    %v309 = vunpack.c.l.b16 %v109
    %v310 = vunpack.c.h.b16 %v109
    %v311 = vunpack.c.l.b16 %v110
    %v312 = vunpack.c.h.b16 %v110
    %v313 = vunpack.c.l.b16 %v111
    %v314 = vunpack.c.h.b16 %v111
    %v315 = vunpack.c.l.b16 %v112
    %v316 = vunpack.c.h.b16 %v112
    %v317 = vunpack.c.l.b16 %v113
    %v318 = vunpack.c.h.b16 %v113
    %v319 = vunpack.c.l.b16 %v114
    %v320 = vunpack.c.h.b16 %v114
    %v321 = vunpack.c.l.b16 %v115
    %v322 = vunpack.c.h.b16 %v115
    %v323 = vunpack.c.l.b16 %v116
    %v324 = vunpack.c.h.b16 %v116
    %v325 = vunpack.c.l.b16 %v117
    %v326 = vunpack.c.h.b16 %v117
    %v327 = vunpack.c.l.b16 %v118
    %v328 = vunpack.c.h.b16 %v118
    %v329 = vpack.c.b16 %v203, %v201
    %v330 = vpack.c.b16 %v204, %v202
    %v331 = vpack.c.b16 %v207, %v205
    %v332 = vpack.c.b16 %v208, %v206
    %v333 = vpack.c.b16 %v211, %v209
    %v334 = vpack.c.b16 %v212, %v210
    %v335 = vpack.c.b16 %v215, %v213
    %v336 = vpack.c.b16 %v216, %v214
    %v337 = vpack.c.b16 %v219, %v217
    %v338 = vpack.c.b16 %v220, %v218
    %v339 = vpack.c.b16 %v223, %v221
    %v340 = vpack.c.b16 %v224, %v222
    %v341 = vpack.c.b16 %v227, %v225
    %v342 = vpack.c.b16 %v228, %v226
    %v343 = vpack.c.b16 %v231, %v229
    %v344 = vpack.c.b16 %v232, %v230
    %v345 = vpack.c.b16 %v235, %v233
    %v346 = vpack.c.b16 %v236, %v234
    %v347 = vpack.c.b16 %v239, %v237
    %v348 = vpack.c.b16 %v240, %v238
    %v349 = vpack.c.b16 %v243, %v241
    %v350 = vpack.c.b16 %v244, %v242
    %v351 = vpack.c.b16 %v247, %v245
    %v352 = vpack.c.b16 %v248, %v246
    %v353 = vpack.c.b16 %v251, %v249
    %v354 = vpack.c.b16 %v252, %v250
    %v355 = vpack.c.b16 %v255, %v253
    %v356 = vpack.c.b16 %v256, %v254
    %v357 = vpack.c.b16 %v259, %v257
    %v358 = vpack.c.b16 %v260, %v258
    %v359 = vpack.c.b16 %v263, %v261
    %v360 = vpack.c.b16 %v264, %v262
    %v361 = vpack.c.b16 %v267, %v265
    %v362 = vpack.c.b16 %v268, %v266
    %v363 = vpack.c.b16 %v271, %v269
    %v364 = vpack.c.b16 %v272, %v270
    %v365 = vpack.c.b16 %v275, %v273
    %v366 = vpack.c.b16 %v276, %v274
    %v367 = vpack.c.b16 %v279, %v277
    %v368 = vpack.c.b16 %v280, %v278
    %v369 = vpack.c.b16 %v283, %v281
    %v370 = vpack.c.b16 %v284, %v282
    %v371 = vpack.c.b16 %v287, %v285
    %v372 = vpack.c.b16 %v288, %v286
    %v373 = vpack.c.b16 %v291, %v289
    %v374 = vpack.c.b16 %v292, %v290
    %v375 = vpack.c.b16 %v295, %v293
    %v376 = vpack.c.b16 %v296, %v294
    %v377 = vpack.c.b16 %v299, %v297
    %v378 = vpack.c.b16 %v300, %v298
    %v379 = vpack.c.b16 %v303, %v301
    %v380 = vpack.c.b16 %v304, %v302
    %v381 = vpack.c.b16 %v307, %v305
    %v382 = vpack.c.b16 %v308, %v306
    %v383 = vpack.c.b16 %v311, %v309
    %v384 = vpack.c.b16 %v312, %v310
    %v385 = vpack.c.b16 %v315, %v313
    %v386 = vpack.c.b16 %v316, %v314
    %v387 = vpack.c.b16 %v319, %v317
    %v388 = vpack.c.b16 %v320, %v318
    %v389 = vpack.c.b16 %v323, %v321
    %v390 = vpack.c.b16 %v324, %v322
    %v391 = vpack.c.b16 %v327, %v325
    %v392 = vpack.c.b16 %v328, %v326
    %v443 = vunpack.c.l.b16 %v119
    %v444 = vunpack.c.l.b16 %v120
    %v445 = vunpack.c.l.b16 %v121
    %v446 = vunpack.c.l.b16 %v122
    %v447 = vunpack.c.l.b16 %v123
    %v448 = vunpack.c.l.b16 %v124
    %v449 = vunpack.c.l.b16 %v125
    %v450 = vunpack.c.l.b16 %v126
    %v451 = vunpack.c.l.b16 %v127
    %v452 = vunpack.c.l.b16 %v128
    %v453 = vunpack.c.l.b16 %v129
    %v454 = vunpack.c.l.b16 %v130
    %v455 = vunpack.c.l.b16 %v131
    %v456 = vunpack.c.l.b16 %v132
    %v457 = vunpack.c.l.b16 %v133
    %v458 = vunpack.c.l.b16 %v134
    %v459 = vunpack.c.l.b16 %v135
    %v460 = vunpack.c.l.b16 %v136
    %v461 = vpack.c.b16 %v444, %v443
    %v462 = vpack.c.b16 %v446, %v445
    %v463 = vpack.c.b16 %v448, %v447
    %v464 = vpack.c.b16 %v450, %v449
    %v465 = vpack.c.b16 %v452, %v451
    %v466 = vpack.c.b16 %v454, %v453
    %v467 = vpack.c.b16 %v456, %v455
    %v468 = vpack.c.b16 %v458, %v457
    %v469 = vpack.c.b16 %v460, %v459
    %vm479 = vcmask 130048
    %v481 = vsel %vm479, %v330, 0
    %v484 = vsel %vm479, %v332, 0
    %v487 = vsel %vm479, %v334, 0
    %v490 = vsel %vm479, %v336, 0
    %v493 = vsel %vm479, %v338, 0
    %v496 = vsel %vm479, %v340, 0
    %v499 = vsel %vm479, %v342, 0
    %v502 = vsel %vm479, %v344, 0
    %v505 = vsel %vm479, %v346, 0
    %v508 = vsel %vm479, %v348, 0
    %v511 = vsel %vm479, %v350, 0
    %v514 = vsel %vm479, %v352, 0
    %v517 = vsel %vm479, %v354, 0
    %v520 = vsel %vm479, %v356, 0
    %v523 = vsel %vm479, %v358, 0
    %v526 = vsel %vm479, %v360, 0
    %v529 = vsel %vm479, %v362, 0
    %v532 = vsel %vm479, %v364, 0
    %v535 = vsel %vm479, %v366, 0
    %v538 = vsel %vm479, %v368, 0
    %v541 = vsel %vm479, %v370, 0
    %v544 = vsel %vm479, %v372, 0
    %v547 = vsel %vm479, %v374, 0
    %v550 = vsel %vm479, %v376, 0
    %v553 = vsel %vm479, %v378, 0
    %v556 = vsel %vm479, %v380, 0
    %v559 = vsel %vm479, %v382, 0
    %v562 = vsel %vm479, %v384, 0
    %v565 = vsel %vm479, %v386, 0
    %v568 = vsel %vm479, %v388, 0
    %v571 = vsel %vm479, %v390, 0
    %v574 = vsel %vm479, %v392, 0
    %576 = vmatprep.subr.bf16.mxu0 0
    %577 = vmatpush1.bf16.msra.mxu0 %v468
    %578 = vmatprep.subr.bf16.mxu0 0
    %579 = vmatpush1.bf16.msra.mxu0 %v467
    %580 = vmatprep.subr.bf16.mxu0 0
    %581 = vmatpush1.bf16.msra.mxu0 %v466
    %582 = vmatprep.subr.bf16.mxu0 0
    %583 = vmatpush1.bf16.msra.mxu0 %v465
    %584 = vmatprep.subr.bf16.mxu0 0
    %585 = vmatpush1.bf16.msra.mxu0 %v464
    %586 = vmatprep.subr.bf16.mxu0 0
    %587 = vmatpush1.bf16.msra.mxu0 %v463
    %588 = vmatprep.subr.bf16.mxu0 0
    %589 = vmatpush1.bf16.msra.mxu0 %v462
    %590 = vmatprep.subr.bf16.mxu0 0
    %591 = vmatpush1.bf16.msra.mxu0 %v461
    %592 = vmatprep.subr.bf16.mxu0 0
    %593 = vmatpush2.bf16.msra.mxu0 0
    %594 = vmatprep.subr.bf16.mxu0 0
    %595 = vmatpush2.bf16.msra.mxu0 0
    %596 = vmatprep.subr.bf16.mxu0 0
    %597 = vmatpush2.bf16.msra.mxu0 0
    %598 = vmatprep.subr.bf16.mxu0 0
    %599 = vmatpush2.bf16.msra.mxu0 0
    %600 = vmatprep.subr.bf16.mxu0 0
    %601 = vmatpush2.bf16.msra.mxu0 0
    %602 = vmatprep.subr.bf16.mxu0 0
    %603 = vmatpush2.bf16.msra.mxu0 0
    %604 = vmatprep.subr.bf16.mxu0 0
    %605 = vmatpush2.bf16.msra.mxu0 0
    %606 = vmatprep.subr.bf16.mxu0 0
    %607 = vmatpush2.bf16.msra.mxu0 %v469
    %608 = vmatprep.mubr.bf16.mxu0 %v481
    %609 = vmatmul.mubr.bf16.gmra.mxu0 %v329
    %v610 = vpop.f32.mrf.mxu0
    %v611 = vadd.f32 0.0, %v610
    %v612 = vpop.f32.mrf.mxu0
    %v613 = vpop.f32.mrf.mxu0
    %v614 = vadd.f32 0.0, %v613
    %v615 = vpop.f32.mrf.mxu0
    %616 = vmatprep.mubr.bf16.mxu0 %v484
    %617 = vmatmul.mubr.bf16.gmra.mxu0 %v331
    %v618 = vpop.f32.mrf.mxu0
    %v619 = vadd.f32 0.0, %v618
    %v620 = vpop.f32.mrf.mxu0
    %v621 = vpop.f32.mrf.mxu0
    %v622 = vadd.f32 0.0, %v621
    %v623 = vpop.f32.mrf.mxu0
    %624 = vmatprep.mubr.bf16.mxu0 %v487
    %625 = vmatmul.mubr.bf16.gmra.mxu0 %v333
    %v626 = vpop.f32.mrf.mxu0
    %v627 = vadd.f32 0.0, %v626
    %v628 = vpop.f32.mrf.mxu0
    %v629 = vpop.f32.mrf.mxu0
    %v630 = vadd.f32 0.0, %v629
    %v631 = vpop.f32.mrf.mxu0
    %632 = vmatprep.mubr.bf16.mxu0 %v490
    %633 = vmatmul.mubr.bf16.gmra.mxu0 %v335
    %v634 = vpop.f32.mrf.mxu0
    %v635 = vadd.f32 0.0, %v634
    %v636 = vpop.f32.mrf.mxu0
    %v637 = vpop.f32.mrf.mxu0
    %v638 = vadd.f32 0.0, %v637
    %v639 = vpop.f32.mrf.mxu0
    %640 = vmatprep.mubr.bf16.mxu0 %v493
    %641 = vmatmul.mubr.bf16.gmra.mxu0 %v337
    %v642 = vpop.f32.mrf.mxu0
    %v643 = vadd.f32 0.0, %v642
    %v644 = vpop.f32.mrf.mxu0
    %v645 = vpop.f32.mrf.mxu0
    %v646 = vadd.f32 0.0, %v645
    %v647 = vpop.f32.mrf.mxu0
    %648 = vmatprep.mubr.bf16.mxu0 %v496
    %649 = vmatmul.mubr.bf16.gmra.mxu0 %v339
    %v650 = vpop.f32.mrf.mxu0
    %v651 = vadd.f32 0.0, %v650
    %v652 = vpop.f32.mrf.mxu0
    %v653 = vpop.f32.mrf.mxu0
    %v654 = vadd.f32 0.0, %v653
    %v655 = vpop.f32.mrf.mxu0
    %656 = vmatprep.mubr.bf16.mxu0 %v499
    %657 = vmatmul.mubr.bf16.gmra.mxu0 %v341
    %v658 = vpop.f32.mrf.mxu0
    %v659 = vadd.f32 0.0, %v658
    %v660 = vpop.f32.mrf.mxu0
    %v661 = vpop.f32.mrf.mxu0
    %v662 = vadd.f32 0.0, %v661
    %v663 = vpop.f32.mrf.mxu0
    %664 = vmatprep.mubr.bf16.mxu0 %v502
    %665 = vmatmul.mubr.bf16.gmra.mxu0 %v343
    %v666 = vpop.f32.mrf.mxu0
    %v667 = vadd.f32 0.0, %v666
    %v668 = vpop.f32.mrf.mxu0
    %v669 = vpop.f32.mrf.mxu0
    %v670 = vadd.f32 0.0, %v669
    %v671 = vpop.f32.mrf.mxu0
    %672 = vmatprep.mubr.bf16.mxu0 %v505
    %673 = vmatmul.mubr.bf16.gmra.mxu0 %v345
    %v674 = vpop.f32.mrf.mxu0
    %v675 = vadd.f32 0.0, %v674
    %v676 = vpop.f32.mrf.mxu0
    %v677 = vpop.f32.mrf.mxu0
    %v678 = vadd.f32 0.0, %v677
    %v679 = vpop.f32.mrf.mxu0
    %680 = vmatprep.mubr.bf16.mxu0 %v508
    %681 = vmatmul.mubr.bf16.gmra.mxu0 %v347
    %v682 = vpop.f32.mrf.mxu0
    %v683 = vadd.f32 0.0, %v682
    %v684 = vpop.f32.mrf.mxu0
    %v685 = vpop.f32.mrf.mxu0
    %v686 = vadd.f32 0.0, %v685
    %v687 = vpop.f32.mrf.mxu0
    %688 = vmatprep.mubr.bf16.mxu0 %v511
    %689 = vmatmul.mubr.bf16.gmra.mxu0 %v349
    %v690 = vpop.f32.mrf.mxu0
    %v691 = vadd.f32 0.0, %v690
    %v692 = vpop.f32.mrf.mxu0
    %v693 = vpop.f32.mrf.mxu0
    %v694 = vadd.f32 0.0, %v693
    %v695 = vpop.f32.mrf.mxu0
    %696 = vmatprep.mubr.bf16.mxu0 %v514
    %697 = vmatmul.mubr.bf16.gmra.mxu0 %v351
    %v698 = vpop.f32.mrf.mxu0
    %v699 = vadd.f32 0.0, %v698
    %v700 = vpop.f32.mrf.mxu0
    %v701 = vpop.f32.mrf.mxu0
    %v702 = vadd.f32 0.0, %v701
    %v703 = vpop.f32.mrf.mxu0
    %704 = vmatprep.mubr.bf16.mxu0 %v517
    %705 = vmatmul.mubr.bf16.gmra.mxu0 %v353
    %v706 = vpop.f32.mrf.mxu0
    %v707 = vadd.f32 0.0, %v706
    %v708 = vpop.f32.mrf.mxu0
    %v709 = vpop.f32.mrf.mxu0
    %v710 = vadd.f32 0.0, %v709
    %v711 = vpop.f32.mrf.mxu0
    %712 = vmatprep.mubr.bf16.mxu0 %v520
    %713 = vmatmul.mubr.bf16.gmra.mxu0 %v355
    %v714 = vpop.f32.mrf.mxu0
    %v715 = vadd.f32 0.0, %v714
    %v716 = vpop.f32.mrf.mxu0
    %v717 = vpop.f32.mrf.mxu0
    %v718 = vadd.f32 0.0, %v717
    %v719 = vpop.f32.mrf.mxu0
    %720 = vmatprep.mubr.bf16.mxu0 %v523
    %721 = vmatmul.mubr.bf16.gmra.mxu0 %v357
    %v722 = vpop.f32.mrf.mxu0
    %v723 = vadd.f32 0.0, %v722
    %v724 = vpop.f32.mrf.mxu0
    %v725 = vpop.f32.mrf.mxu0
    %v726 = vadd.f32 0.0, %v725
    %v727 = vpop.f32.mrf.mxu0
    %728 = vmatprep.mubr.bf16.mxu0 %v526
    %729 = vmatmul.mubr.bf16.gmra.mxu0 %v359
    %v730 = vpop.f32.mrf.mxu0
    %v731 = vadd.f32 0.0, %v730
    %v732 = vpop.f32.mrf.mxu0
    %v733 = vpop.f32.mrf.mxu0
    %v734 = vadd.f32 0.0, %v733
    %v735 = vpop.f32.mrf.mxu0
    %736 = vmatprep.mubr.bf16.mxu0 %v529
    %737 = vmatmul.mubr.bf16.gmra.mxu0 %v361
    %v738 = vpop.f32.mrf.mxu0
    %v739 = vadd.f32 0.0, %v738
    %v740 = vpop.f32.mrf.mxu0
    %v741 = vpop.f32.mrf.mxu0
    %v742 = vadd.f32 0.0, %v741
    %v743 = vpop.f32.mrf.mxu0
    %744 = vmatprep.mubr.bf16.mxu0 %v532
    %745 = vmatmul.mubr.bf16.gmra.mxu0 %v363
    %v746 = vpop.f32.mrf.mxu0
    %v747 = vadd.f32 0.0, %v746
    %v748 = vpop.f32.mrf.mxu0
    %v749 = vpop.f32.mrf.mxu0
    %v750 = vadd.f32 0.0, %v749
    %v751 = vpop.f32.mrf.mxu0
    %752 = vmatprep.mubr.bf16.mxu0 %v535
    %753 = vmatmul.mubr.bf16.gmra.mxu0 %v365
    %v754 = vpop.f32.mrf.mxu0
    %v755 = vadd.f32 0.0, %v754
    %v756 = vpop.f32.mrf.mxu0
    %v757 = vpop.f32.mrf.mxu0
    %v758 = vadd.f32 0.0, %v757
    %v759 = vpop.f32.mrf.mxu0
    %760 = vmatprep.mubr.bf16.mxu0 %v538
    %761 = vmatmul.mubr.bf16.gmra.mxu0 %v367
    %v762 = vpop.f32.mrf.mxu0
    %v763 = vadd.f32 0.0, %v762
    %v764 = vpop.f32.mrf.mxu0
    %v765 = vpop.f32.mrf.mxu0
    %v766 = vadd.f32 0.0, %v765
    %v767 = vpop.f32.mrf.mxu0
    %768 = vmatprep.mubr.bf16.mxu0 %v541
    %769 = vmatmul.mubr.bf16.gmra.mxu0 %v369
    %v770 = vpop.f32.mrf.mxu0
    %v771 = vadd.f32 0.0, %v770
    %v772 = vpop.f32.mrf.mxu0
    %v773 = vpop.f32.mrf.mxu0
    %v774 = vadd.f32 0.0, %v773
    %v775 = vpop.f32.mrf.mxu0
    %776 = vmatprep.mubr.bf16.mxu0 %v544
    %777 = vmatmul.mubr.bf16.gmra.mxu0 %v371
    %v778 = vpop.f32.mrf.mxu0
    %v779 = vadd.f32 0.0, %v778
    %v780 = vpop.f32.mrf.mxu0
    %v781 = vpop.f32.mrf.mxu0
    %v782 = vadd.f32 0.0, %v781
    %v783 = vpop.f32.mrf.mxu0
    %784 = vmatprep.mubr.bf16.mxu0 %v547
    %785 = vmatmul.mubr.bf16.gmra.mxu0 %v373
    %v786 = vpop.f32.mrf.mxu0
    %v787 = vadd.f32 0.0, %v786
    %v788 = vpop.f32.mrf.mxu0
    %v789 = vpop.f32.mrf.mxu0
    %v790 = vadd.f32 0.0, %v789
    %v791 = vpop.f32.mrf.mxu0
    %792 = vmatprep.mubr.bf16.mxu0 %v550
    %793 = vmatmul.mubr.bf16.gmra.mxu0 %v375
    %v794 = vpop.f32.mrf.mxu0
    %v795 = vadd.f32 0.0, %v794
    %v796 = vpop.f32.mrf.mxu0
    %v797 = vpop.f32.mrf.mxu0
    %v798 = vadd.f32 0.0, %v797
    %v799 = vpop.f32.mrf.mxu0
    %800 = vmatprep.mubr.bf16.mxu0 %v553
    %801 = vmatmul.mubr.bf16.gmra.mxu0 %v377
    %v802 = vpop.f32.mrf.mxu0
    %v803 = vadd.f32 0.0, %v802
    %v804 = vpop.f32.mrf.mxu0
    %v805 = vpop.f32.mrf.mxu0
    %v806 = vadd.f32 0.0, %v805
    %v807 = vpop.f32.mrf.mxu0
    %808 = vmatprep.mubr.bf16.mxu0 %v556
    %809 = vmatmul.mubr.bf16.gmra.mxu0 %v379
    %v810 = vpop.f32.mrf.mxu0
    %v811 = vadd.f32 0.0, %v810
    %v812 = vpop.f32.mrf.mxu0
    %v813 = vpop.f32.mrf.mxu0
    %v814 = vadd.f32 0.0, %v813
    %v815 = vpop.f32.mrf.mxu0
    %816 = vmatprep.mubr.bf16.mxu0 %v559
    %817 = vmatmul.mubr.bf16.gmra.mxu0 %v381
    %v818 = vpop.f32.mrf.mxu0
    %v819 = vadd.f32 0.0, %v818
    %v820 = vpop.f32.mrf.mxu0
    %v821 = vpop.f32.mrf.mxu0
    %v822 = vadd.f32 0.0, %v821
    %v823 = vpop.f32.mrf.mxu0
    %824 = vmatprep.mubr.bf16.mxu0 %v562
    %825 = vmatmul.mubr.bf16.gmra.mxu0 %v383
    %v826 = vpop.f32.mrf.mxu0
    %v827 = vadd.f32 0.0, %v826
    %v828 = vpop.f32.mrf.mxu0
    %v829 = vpop.f32.mrf.mxu0
    %v830 = vadd.f32 0.0, %v829
    %v831 = vpop.f32.mrf.mxu0
    %832 = vmatprep.mubr.bf16.mxu0 %v565
    %833 = vmatmul.mubr.bf16.gmra.mxu0 %v385
    %v834 = vpop.f32.mrf.mxu0
    %v835 = vadd.f32 0.0, %v834
    %v836 = vpop.f32.mrf.mxu0
    %v837 = vpop.f32.mrf.mxu0
    %v838 = vadd.f32 0.0, %v837
    %v839 = vpop.f32.mrf.mxu0
    %840 = vmatprep.mubr.bf16.mxu0 %v568
    %841 = vmatmul.mubr.bf16.gmra.mxu0 %v387
    %v842 = vpop.f32.mrf.mxu0
    %v843 = vadd.f32 0.0, %v842
    %v844 = vpop.f32.mrf.mxu0
    %v845 = vpop.f32.mrf.mxu0
    %v846 = vadd.f32 0.0, %v845
    %v847 = vpop.f32.mrf.mxu0
    %848 = vmatprep.mubr.bf16.mxu0 %v571
    %849 = vmatmul.mubr.bf16.gmra.mxu0 %v389
    %v850 = vpop.f32.mrf.mxu0
    %v851 = vadd.f32 0.0, %v850
    %v852 = vpop.f32.mrf.mxu0
    %v853 = vpop.f32.mrf.mxu0
    %v854 = vadd.f32 0.0, %v853
    %v855 = vpop.f32.mrf.mxu0
    %856 = vmatprep.mubr.bf16.mxu0 %v574
    %857 = vmatmul.mubr.bf16.gmra.mxu0 %v391
    %v858 = vpop.f32.mrf.mxu0
    %v859 = vadd.f32 0.0, %v858
    %v860 = vpop.f32.mrf.mxu0
    %v861 = vpop.f32.mrf.mxu0
    %v862 = vadd.f32 0.0, %v861
    %v863 = vpop.f32.mrf.mxu0
    %864 = vdwg.mxu0
    %v865 = vadd.f32 %v611, %v614
    %v866 = vadd.f32 %v865, %v619
    %v867 = vadd.f32 %v866, %v622
    %v868 = vadd.f32 %v867, %v627
    %v869 = vadd.f32 %v868, %v630
    %v870 = vadd.f32 %v869, %v635
    %v871 = vadd.f32 %v870, %v638
    %v872 = vadd.f32 %v871, %v643
    %v873 = vadd.f32 %v872, %v646
    %v874 = vadd.f32 %v873, %v651
    %v875 = vadd.f32 %v874, %v654
    %v876 = vadd.f32 %v875, %v659
    %v877 = vadd.f32 %v876, %v662
    %v878 = vadd.f32 %v877, %v667
    %v879 = vadd.f32 %v878, %v670
    %v880 = vadd.f32 %v879, %v675
    %v881 = vadd.f32 %v880, %v678
    %v882 = vadd.f32 %v881, %v683
    %v883 = vadd.f32 %v882, %v686
    %v884 = vadd.f32 %v883, %v691
    %v885 = vadd.f32 %v884, %v694
    %v886 = vadd.f32 %v885, %v699
    %v887 = vadd.f32 %v886, %v702
    %v888 = vadd.f32 %v887, %v707
    %v889 = vadd.f32 %v888, %v710
    %v890 = vadd.f32 %v889, %v715
    %v891 = vadd.f32 %v890, %v718
    %v892 = vadd.f32 %v891, %v723
    %v893 = vadd.f32 %v892, %v726
    %v894 = vadd.f32 %v893, %v731
    %v895 = vadd.f32 %v894, %v734
    %v896 = vadd.f32 %v895, %v739
    %v897 = vadd.f32 %v896, %v742
    %v898 = vadd.f32 %v897, %v747
    %v899 = vadd.f32 %v898, %v750
    %v900 = vadd.f32 %v899, %v755
    %v901 = vadd.f32 %v900, %v758
    %v902 = vadd.f32 %v901, %v763
    %v903 = vadd.f32 %v902, %v766
    %v904 = vadd.f32 %v903, %v771
    %v905 = vadd.f32 %v904, %v774
    %v906 = vadd.f32 %v905, %v779
    %v907 = vadd.f32 %v906, %v782
    %v908 = vadd.f32 %v907, %v787
    %v909 = vadd.f32 %v908, %v790
    %v910 = vadd.f32 %v909, %v795
    %v911 = vadd.f32 %v910, %v798
    %v912 = vadd.f32 %v911, %v803
    %v913 = vadd.f32 %v912, %v806
    %v914 = vadd.f32 %v913, %v811
    %v915 = vadd.f32 %v914, %v814
    %v916 = vadd.f32 %v915, %v819
    %v917 = vadd.f32 %v916, %v822
    %v918 = vadd.f32 %v917, %v827
    %v919 = vadd.f32 %v918, %v830
    %v920 = vadd.f32 %v919, %v835
    %v921 = vadd.f32 %v920, %v838
    %v922 = vadd.f32 %v921, %v843
    %v923 = vadd.f32 %v922, %v846
    %v924 = vadd.f32 %v923, %v851
    %v925 = vadd.f32 %v924, %v854
    %v926 = vadd.f32 %v925, %v859
    %v927 = vadd.f32 %v926, %v862
    %v928 = vrot.slane %v927, 4
    %v929 = vadd.f32 %v927, %v928
    %v930 = vrot.slane %v929, 2
    %v931 = vadd.f32 %v929, %v930
    %v932 = vrot.slane %v931, 1
    %v933 = vadd.f32 %v931, %v932
    %v934 = vmul.f32 %v611, %v611
    %v935 = vmul.f32 %v614, %v614
    %v936 = vmul.f32 %v619, %v619
    %v937 = vmul.f32 %v622, %v622
    %v938 = vmul.f32 %v627, %v627
    %v939 = vmul.f32 %v630, %v630
    %v940 = vmul.f32 %v635, %v635
    %v941 = vmul.f32 %v638, %v638
    %v942 = vmul.f32 %v643, %v643
    %v943 = vmul.f32 %v646, %v646
    %v944 = vmul.f32 %v651, %v651
    %v945 = vmul.f32 %v654, %v654
    %v946 = vmul.f32 %v659, %v659
    %v947 = vmul.f32 %v662, %v662
    %v948 = vmul.f32 %v667, %v667
    %v949 = vmul.f32 %v670, %v670
    %v950 = vmul.f32 %v675, %v675
    %v951 = vmul.f32 %v678, %v678
    %v952 = vmul.f32 %v683, %v683
    %v953 = vmul.f32 %v686, %v686
    %v954 = vmul.f32 %v691, %v691
    %v955 = vmul.f32 %v694, %v694
    %v956 = vmul.f32 %v699, %v699
    %v957 = vmul.f32 %v702, %v702
    %v958 = vmul.f32 %v707, %v707
    %v959 = vmul.f32 %v710, %v710
    %v960 = vmul.f32 %v715, %v715
    %v961 = vmul.f32 %v718, %v718
    %v962 = vmul.f32 %v723, %v723
    %v963 = vmul.f32 %v726, %v726
    %v964 = vmul.f32 %v731, %v731
    %v965 = vmul.f32 %v734, %v734
    %v966 = vmul.f32 %v739, %v739
    %v967 = vmul.f32 %v742, %v742
    %v968 = vmul.f32 %v747, %v747
    %v969 = vmul.f32 %v750, %v750
    %v970 = vmul.f32 %v755, %v755
    %v971 = vmul.f32 %v758, %v758
    %v972 = vmul.f32 %v763, %v763
    %v973 = vmul.f32 %v766, %v766
    %v974 = vmul.f32 %v771, %v771
    %v975 = vmul.f32 %v774, %v774
    %v976 = vmul.f32 %v779, %v779
    %v977 = vmul.f32 %v782, %v782
    %v978 = vmul.f32 %v787, %v787
    %v979 = vmul.f32 %v790, %v790
    %v980 = vmul.f32 %v795, %v795
    %v981 = vmul.f32 %v798, %v798
    %v982 = vmul.f32 %v803, %v803
    %v983 = vmul.f32 %v806, %v806
    %v984 = vmul.f32 %v811, %v811
    %v985 = vmul.f32 %v814, %v814
    %v986 = vmul.f32 %v819, %v819
    %v987 = vmul.f32 %v822, %v822
    %v988 = vmul.f32 %v827, %v827
    %v989 = vmul.f32 %v830, %v830
    %v990 = vmul.f32 %v835, %v835
    %v991 = vmul.f32 %v838, %v838
    %v992 = vmul.f32 %v843, %v843
    %v993 = vmul.f32 %v846, %v846
    %v994 = vmul.f32 %v851, %v851
    %v995 = vmul.f32 %v854, %v854
    %v996 = vmul.f32 %v859, %v859
    %v997 = vmul.f32 %v862, %v862
    %v998 = vadd.f32 %v934, %v935
    %v999 = vadd.f32 %v998, %v936
    %v1000 = vadd.f32 %v999, %v937
    %v1001 = vadd.f32 %v1000, %v938
    %v1002 = vadd.f32 %v1001, %v939
    %v1003 = vadd.f32 %v1002, %v940
    %v1004 = vadd.f32 %v1003, %v941
    %v1005 = vadd.f32 %v1004, %v942
    %v1006 = vadd.f32 %v1005, %v943
    %v1007 = vadd.f32 %v1006, %v944
    %v1008 = vadd.f32 %v1007, %v945
    %v1009 = vadd.f32 %v1008, %v946
    %v1010 = vadd.f32 %v1009, %v947
    %v1011 = vadd.f32 %v1010, %v948
    %v1012 = vadd.f32 %v1011, %v949
    %v1013 = vadd.f32 %v1012, %v950
    %v1014 = vadd.f32 %v1013, %v951
    %v1015 = vadd.f32 %v1014, %v952
    %v1016 = vadd.f32 %v1015, %v953
    %v1017 = vadd.f32 %v1016, %v954
    %v1018 = vadd.f32 %v1017, %v955
    %v1019 = vadd.f32 %v1018, %v956
    %v1020 = vadd.f32 %v1019, %v957
    %v1021 = vadd.f32 %v1020, %v958
    %v1022 = vadd.f32 %v1021, %v959
    %v1023 = vadd.f32 %v1022, %v960
    %v1024 = vadd.f32 %v1023, %v961
    %v1025 = vadd.f32 %v1024, %v962
    %v1026 = vadd.f32 %v1025, %v963
    %v1027 = vadd.f32 %v1026, %v964
    %v1028 = vadd.f32 %v1027, %v965
    %v1029 = vadd.f32 %v1028, %v966
    %v1030 = vadd.f32 %v1029, %v967
    %v1031 = vadd.f32 %v1030, %v968
    %v1032 = vadd.f32 %v1031, %v969
    %v1033 = vadd.f32 %v1032, %v970
    %v1034 = vadd.f32 %v1033, %v971
    %v1035 = vadd.f32 %v1034, %v972
    %v1036 = vadd.f32 %v1035, %v973
    %v1037 = vadd.f32 %v1036, %v974
    %v1038 = vadd.f32 %v1037, %v975
    %v1039 = vadd.f32 %v1038, %v976
    %v1040 = vadd.f32 %v1039, %v977
    %v1041 = vadd.f32 %v1040, %v978
    %v1042 = vadd.f32 %v1041, %v979
    %v1043 = vadd.f32 %v1042, %v980
    %v1044 = vadd.f32 %v1043, %v981
    %v1045 = vadd.f32 %v1044, %v982
    %v1046 = vadd.f32 %v1045, %v983
    %v1047 = vadd.f32 %v1046, %v984
    %v1048 = vadd.f32 %v1047, %v985
    %v1049 = vadd.f32 %v1048, %v986
    %v1050 = vadd.f32 %v1049, %v987
    %v1051 = vadd.f32 %v1050, %v988
    %v1052 = vadd.f32 %v1051, %v989
    %v1053 = vadd.f32 %v1052, %v990
    %v1054 = vadd.f32 %v1053, %v991
    %v1055 = vadd.f32 %v1054, %v992
    %v1056 = vadd.f32 %v1055, %v993
    %v1057 = vadd.f32 %v1056, %v994
    %v1058 = vadd.f32 %v1057, %v995
    %v1059 = vadd.f32 %v1058, %v996
    %v1060 = vadd.f32 %v1059, %v997
    %v1061 = vrot.slane %v1060, 4
    %v1062 = vadd.f32 %v1060, %v1061
    %v1063 = vrot.slane %v1062, 2
    %v1064 = vadd.f32 %v1062, %v1063
    %v1065 = vrot.slane %v1064, 1
    %v1066 = vadd.f32 %v1064, %v1065
    %1068 = vrot.lane.b32.xlu0 %v933, 120
    %v1069 = vpop.permute.xlu0 %1068
    %v1071 = vadd.f32 %v933, %v1069
    %1073 = vrot.lane.b32.xlu0 %v1066, 120
    %v1074 = vpop.permute.xlu0 %1073
    %v1076 = vadd.f32 %v1066, %v1074
    %1077 = vrot.lane.b32.xlu0 %v933, 112
    %v1078 = vpop.permute.xlu0 %1077
    %v1080 = vadd.f32 %v1071, %v1078
    %1081 = vrot.lane.b32.xlu0 %v1066, 112
    %v1082 = vpop.permute.xlu0 %1081
    %v1084 = vadd.f32 %v1076, %v1082
    %1085 = vrot.lane.b32.xlu0 %v933, 104
    %v1086 = vpop.permute.xlu0 %1085
    %v1088 = vadd.f32 %v1080, %v1086
    %1089 = vrot.lane.b32.xlu0 %v1066, 104
    %v1090 = vpop.permute.xlu0 %1089
    %v1092 = vadd.f32 %v1084, %v1090
    %v1093 = vmul.f32 %v1088, 0.00048828125
    %v1094 = vmul.f32 %v1092, 0.00048828125
    %v1095 = vmul.f32 %v1093, %v1093
    %v1096 = vsub.f32 %v1094, %v1095
    %v1097 = vld [vmem:[#allocation4] sm:$0x1]
    %v1098 = vadd.f32 %v1096, 1e-05
    %v1099 = vrsqrt.pop %v1098
    %v1100 = vmul.f32 %v1097, %v1099
    %v1101 = vld [vmem:[#allocation6] sm:$0x1]
    %v1102 = vmul.f32 %v1093, %v1100
    %v1103 = vsub.f32 %v1101, %v1102
    %v1105 = vlaneseq
    %v1106 = vshrl.u32 %v1105, 7
    %v1107 = vsub.s32 0, %v1106
    %v1108 = vrot.slane %v1100, %v1107
    %1109 = vrot.lane.b32.xlu0 %v1108, 8
    %v1110 = vpop.permute.xlu0 %1109
    %1112 = vrot.lane.b32.xlu0 %v1108, 16
    %v1113 = vpop.permute.xlu0 %1112
    %1115 = vrot.lane.b32.xlu0 %v1108, 24
    %v1116 = vpop.permute.xlu0 %1115
    %vm1118 = vcmask 64512
    %v1119 = vsel %vm1118, %v1100, %v1110
    %v1120 = vsel %vm479, %v1119, %v1113
    %vm1121 = vcmask 195584
    %v1122 = vsel %vm1121, %v1120, %v1116
    %vm1123 = vcmask 261120
    %v1124 = vsel %vm1123, %v1122, 0.0
    %v1126 = vlaneseq
    %v1127 = vshrl.u32 %v1126, 7
    %v1128 = vsub.s32 0, %v1127
    %v1129 = vrot.slane %v1103, %v1128
    %1130 = vrot.lane.b32.xlu0 %v1129, 8
    %v1131 = vpop.permute.xlu0 %1130
    %1133 = vrot.lane.b32.xlu0 %v1129, 16
    %v1134 = vpop.permute.xlu0 %1133
    %1136 = vrot.lane.b32.xlu0 %v1129, 24
    %v1137 = vpop.permute.xlu0 %1136
    %v1139 = vsel %vm1118, %v1103, %v1131
    %v1140 = vsel %vm479, %v1139, %v1134
    %v1141 = vsel %vm1121, %v1140, %v1137
    %v1142 = vsel %vm1123, %v1141, 0.0
    %v1143 = vlaneseq
    %v1144 = vshrl.u32 %v1143, 7
    %v1145 = vsub.s32 0, %v1144
    %v1146 = vrot.slane %v1124, %v1145
    %v1147 = vmul.f32 %v611, %v1146
    %v1148 = vmul.f32 %v614, %v1146
    %v1149 = vmul.f32 %v619, %v1146
    %v1150 = vmul.f32 %v622, %v1146
    %v1151 = vmul.f32 %v627, %v1146
    %v1152 = vmul.f32 %v630, %v1146
    %v1153 = vmul.f32 %v635, %v1146
    %v1154 = vmul.f32 %v638, %v1146
    %v1155 = vmul.f32 %v643, %v1146
    %v1156 = vmul.f32 %v646, %v1146
    %v1157 = vmul.f32 %v651, %v1146
    %v1158 = vmul.f32 %v654, %v1146
    %v1159 = vmul.f32 %v659, %v1146
    %v1160 = vmul.f32 %v662, %v1146
    %v1161 = vmul.f32 %v667, %v1146
    %v1162 = vmul.f32 %v670, %v1146
    %v1163 = vmul.f32 %v675, %v1146
    %v1164 = vmul.f32 %v678, %v1146
    %v1165 = vmul.f32 %v683, %v1146
    %v1166 = vmul.f32 %v686, %v1146
    %v1167 = vmul.f32 %v691, %v1146
    %v1168 = vmul.f32 %v694, %v1146
    %v1169 = vmul.f32 %v699, %v1146
    %v1170 = vmul.f32 %v702, %v1146
    %v1171 = vmul.f32 %v707, %v1146
    %v1172 = vmul.f32 %v710, %v1146
    %v1173 = vmul.f32 %v715, %v1146
    %v1174 = vmul.f32 %v718, %v1146
    %v1175 = vmul.f32 %v723, %v1146
    %v1176 = vmul.f32 %v726, %v1146
    %v1177 = vmul.f32 %v731, %v1146
    %v1178 = vmul.f32 %v734, %v1146
    %v1179 = vmul.f32 %v739, %v1146
    %v1180 = vmul.f32 %v742, %v1146
    %v1181 = vmul.f32 %v747, %v1146
    %v1182 = vmul.f32 %v750, %v1146
    %v1183 = vmul.f32 %v755, %v1146
    %v1184 = vmul.f32 %v758, %v1146
    %v1185 = vmul.f32 %v763, %v1146
    %v1186 = vmul.f32 %v766, %v1146
    %v1187 = vmul.f32 %v771, %v1146
    %v1188 = vmul.f32 %v774, %v1146
    %v1189 = vmul.f32 %v779, %v1146
    %v1190 = vmul.f32 %v782, %v1146
    %v1191 = vmul.f32 %v787, %v1146
    %v1192 = vmul.f32 %v790, %v1146
    %v1193 = vmul.f32 %v795, %v1146
    %v1194 = vmul.f32 %v798, %v1146
    %v1195 = vmul.f32 %v803, %v1146
    %v1196 = vmul.f32 %v806, %v1146
    %v1197 = vmul.f32 %v811, %v1146
    %v1198 = vmul.f32 %v814, %v1146
    %v1199 = vmul.f32 %v819, %v1146
    %v1200 = vmul.f32 %v822, %v1146
    %v1201 = vmul.f32 %v827, %v1146
    %v1202 = vmul.f32 %v830, %v1146
    %v1203 = vmul.f32 %v835, %v1146
    %v1204 = vmul.f32 %v838, %v1146
    %v1205 = vmul.f32 %v843, %v1146
    %v1206 = vmul.f32 %v846, %v1146
    %v1207 = vmul.f32 %v851, %v1146
    %v1208 = vmul.f32 %v854, %v1146
    %v1209 = vmul.f32 %v859, %v1146
    %v1210 = vmul.f32 %v862, %v1146
    %v1211 = vlaneseq
    %v1212 = vshrl.u32 %v1211, 7
    %v1213 = vsub.s32 0, %v1212
    %v1214 = vrot.slane %v1142, %v1213
    %v1215 = vadd.f32 %v1147, %v1214
    %v1216 = vadd.f32 %v1148, %v1214
    %v1217 = vadd.f32 %v1149, %v1214
    %v1218 = vadd.f32 %v1150, %v1214
    %v1219 = vadd.f32 %v1151, %v1214
    %v1220 = vadd.f32 %v1152, %v1214
    %v1221 = vadd.f32 %v1153, %v1214
    %v1222 = vadd.f32 %v1154, %v1214
    %v1223 = vadd.f32 %v1155, %v1214
    %v1224 = vadd.f32 %v1156, %v1214
    %v1225 = vadd.f32 %v1157, %v1214
    %v1226 = vadd.f32 %v1158, %v1214
    %v1227 = vadd.f32 %v1159, %v1214
    %v1228 = vadd.f32 %v1160, %v1214
    %v1229 = vadd.f32 %v1161, %v1214
    %v1230 = vadd.f32 %v1162, %v1214
    %v1231 = vadd.f32 %v1163, %v1214
    %v1232 = vadd.f32 %v1164, %v1214
    %v1233 = vadd.f32 %v1165, %v1214
    %v1234 = vadd.f32 %v1166, %v1214
    %v1235 = vadd.f32 %v1167, %v1214
    %v1236 = vadd.f32 %v1168, %v1214
    %v1237 = vadd.f32 %v1169, %v1214
    %v1238 = vadd.f32 %v1170, %v1214
    %v1239 = vadd.f32 %v1171, %v1214
    %v1240 = vadd.f32 %v1172, %v1214
    %v1241 = vadd.f32 %v1173, %v1214
    %v1242 = vadd.f32 %v1174, %v1214
    %v1243 = vadd.f32 %v1175, %v1214
    %v1244 = vadd.f32 %v1176, %v1214
    %v1245 = vadd.f32 %v1177, %v1214
    %v1246 = vadd.f32 %v1178, %v1214
    %v1247 = vadd.f32 %v1179, %v1214
    %v1248 = vadd.f32 %v1180, %v1214
    %v1249 = vadd.f32 %v1181, %v1214
    %v1250 = vadd.f32 %v1182, %v1214
    %v1251 = vadd.f32 %v1183, %v1214
    %v1252 = vadd.f32 %v1184, %v1214
    %v1253 = vadd.f32 %v1185, %v1214
    %v1254 = vadd.f32 %v1186, %v1214
    %v1255 = vadd.f32 %v1187, %v1214
    %v1256 = vadd.f32 %v1188, %v1214
    %v1257 = vadd.f32 %v1189, %v1214
    %v1258 = vadd.f32 %v1190, %v1214
    %v1259 = vadd.f32 %v1191, %v1214
    %v1260 = vadd.f32 %v1192, %v1214
    %v1261 = vadd.f32 %v1193, %v1214
    %v1262 = vadd.f32 %v1194, %v1214
    %v1263 = vadd.f32 %v1195, %v1214
    %v1264 = vadd.f32 %v1196, %v1214
    %v1265 = vadd.f32 %v1197, %v1214
    %v1266 = vadd.f32 %v1198, %v1214
    %v1267 = vadd.f32 %v1199, %v1214
    %v1268 = vadd.f32 %v1200, %v1214
    %v1269 = vadd.f32 %v1201, %v1214
    %v1270 = vadd.f32 %v1202, %v1214
    %v1271 = vadd.f32 %v1203, %v1214
    %v1272 = vadd.f32 %v1204, %v1214
    %v1273 = vadd.f32 %v1205, %v1214
    %v1274 = vadd.f32 %v1206, %v1214
    %v1275 = vadd.f32 %v1207, %v1214
    %v1276 = vadd.f32 %v1208, %v1214
    %v1277 = vadd.f32 %v1209, %v1214
    %v1278 = vadd.f32 %v1210, %v1214
    %v1279 = vmax.f32 %v1215, 0.0
    %v1280 = vmax.f32 %v1216, 0.0
    %v1281 = vmax.f32 %v1217, 0.0
    %v1282 = vmax.f32 %v1218, 0.0
    %v1283 = vmax.f32 %v1219, 0.0
    %v1284 = vmax.f32 %v1220, 0.0
    %v1285 = vmax.f32 %v1221, 0.0
    %v1286 = vmax.f32 %v1222, 0.0
    %v1287 = vmax.f32 %v1223, 0.0
    %v1288 = vmax.f32 %v1224, 0.0
    %v1289 = vmax.f32 %v1225, 0.0
    %v1290 = vmax.f32 %v1226, 0.0
    %v1291 = vmax.f32 %v1227, 0.0
    %v1292 = vmax.f32 %v1228, 0.0
    %v1293 = vmax.f32 %v1229, 0.0
    %v1294 = vmax.f32 %v1230, 0.0
    %v1295 = vmax.f32 %v1231, 0.0
    %v1296 = vmax.f32 %v1232, 0.0
    %v1297 = vmax.f32 %v1233, 0.0
    %v1298 = vmax.f32 %v1234, 0.0
    %v1299 = vmax.f32 %v1235, 0.0
    %v1300 = vmax.f32 %v1236, 0.0
    %v1301 = vmax.f32 %v1237, 0.0
    %v1302 = vmax.f32 %v1238, 0.0
    %v1303 = vmax.f32 %v1239, 0.0
    %v1304 = vmax.f32 %v1240, 0.0
    %v1305 = vmax.f32 %v1241, 0.0
    %v1306 = vmax.f32 %v1242, 0.0
    %v1307 = vmax.f32 %v1243, 0.0
    %v1308 = vmax.f32 %v1244, 0.0
    %v1309 = vmax.f32 %v1245, 0.0
    %v1310 = vmax.f32 %v1246, 0.0
    %v1311 = vmax.f32 %v1247, 0.0
    %v1312 = vmax.f32 %v1248, 0.0
    %v1313 = vmax.f32 %v1249, 0.0
    %v1314 = vmax.f32 %v1250, 0.0
    %v1315 = vmax.f32 %v1251, 0.0
    %v1316 = vmax.f32 %v1252, 0.0
    %v1317 = vmax.f32 %v1253, 0.0
    %v1318 = vmax.f32 %v1254, 0.0
    %v1319 = vmax.f32 %v1255, 0.0
    %v1320 = vmax.f32 %v1256, 0.0
    %v1321 = vmax.f32 %v1257, 0.0
    %v1322 = vmax.f32 %v1258, 0.0
    %v1323 = vmax.f32 %v1259, 0.0
    %v1324 = vmax.f32 %v1260, 0.0
    %v1325 = vmax.f32 %v1261, 0.0
    %v1326 = vmax.f32 %v1262, 0.0
    %v1327 = vmax.f32 %v1263, 0.0
    %v1328 = vmax.f32 %v1264, 0.0
    %v1329 = vmax.f32 %v1265, 0.0
    %v1330 = vmax.f32 %v1266, 0.0
    %v1331 = vmax.f32 %v1267, 0.0
    %v1332 = vmax.f32 %v1268, 0.0
    %v1333 = vmax.f32 %v1269, 0.0
    %v1334 = vmax.f32 %v1270, 0.0
    %v1335 = vmax.f32 %v1271, 0.0
    %v1336 = vmax.f32 %v1272, 0.0
    %v1337 = vmax.f32 %v1273, 0.0
    %v1338 = vmax.f32 %v1274, 0.0
    %v1339 = vmax.f32 %v1275, 0.0
    %v1340 = vmax.f32 %v1276, 0.0
    %v1341 = vmax.f32 %v1277, 0.0
    %v1342 = vmax.f32 %v1278, 0.0
    %v1343 = vpack.c.bf16 %v1280, %v1279
    %v1344 = vpack.c.bf16 %v1282, %v1281
    %v1345 = vpack.c.bf16 %v1284, %v1283
    %v1346 = vpack.c.bf16 %v1286, %v1285
    %v1347 = vpack.c.bf16 %v1288, %v1287
    %v1348 = vpack.c.bf16 %v1290, %v1289
    %v1349 = vpack.c.bf16 %v1292, %v1291
    %v1350 = vpack.c.bf16 %v1294, %v1293
    %v1351 = vpack.c.bf16 %v1296, %v1295
    %v1352 = vpack.c.bf16 %v1298, %v1297
    %v1353 = vpack.c.bf16 %v1300, %v1299
    %v1354 = vpack.c.bf16 %v1302, %v1301
    %v1355 = vpack.c.bf16 %v1304, %v1303
    %v1356 = vpack.c.bf16 %v1306, %v1305
    %v1357 = vpack.c.bf16 %v1308, %v1307
    %v1358 = vpack.c.bf16 %v1310, %v1309
    %v1359 = vpack.c.bf16 %v1312, %v1311
    %v1360 = vpack.c.bf16 %v1314, %v1313
    %v1361 = vpack.c.bf16 %v1316, %v1315
    %v1362 = vpack.c.bf16 %v1318, %v1317
    %v1363 = vpack.c.bf16 %v1320, %v1319
    %v1364 = vpack.c.bf16 %v1322, %v1321
    %v1365 = vpack.c.bf16 %v1324, %v1323
    %v1366 = vpack.c.bf16 %v1326, %v1325
    %v1367 = vpack.c.bf16 %v1328, %v1327
    %v1368 = vpack.c.bf16 %v1330, %v1329
    %v1369 = vpack.c.bf16 %v1332, %v1331
    %v1370 = vpack.c.bf16 %v1334, %v1333
    %v1371 = vpack.c.bf16 %v1336, %v1335
    %v1372 = vpack.c.bf16 %v1338, %v1337
    %v1373 = vpack.c.bf16 %v1340, %v1339
    %v1374 = vpack.c.bf16 %v1342, %v1341
    %v1407 = vunpack.c.l.b16 %v1343
    %v1408 = vunpack.c.h.b16 %v1343
    %v1409 = vunpack.c.l.b16 %v1344
    %v1410 = vunpack.c.h.b16 %v1344
    %v1411 = vunpack.c.l.b16 %v1345
    %v1412 = vunpack.c.h.b16 %v1345
    %v1413 = vunpack.c.l.b16 %v1346
    %v1414 = vunpack.c.h.b16 %v1346
    %v1415 = vunpack.c.l.b16 %v1347
    %v1416 = vunpack.c.h.b16 %v1347
    %v1417 = vunpack.c.l.b16 %v1348
    %v1418 = vunpack.c.h.b16 %v1348
    %v1419 = vunpack.c.l.b16 %v1349
    %v1420 = vunpack.c.h.b16 %v1349
    %v1421 = vunpack.c.l.b16 %v1350
    %v1422 = vunpack.c.h.b16 %v1350
    %v1423 = vunpack.c.l.b16 %v1351
    %v1424 = vunpack.c.h.b16 %v1351
    %v1425 = vunpack.c.l.b16 %v1352
    %v1426 = vunpack.c.h.b16 %v1352
    %v1427 = vunpack.c.l.b16 %v1353
    %v1428 = vunpack.c.h.b16 %v1353
    %v1429 = vunpack.c.l.b16 %v1354
    %v1430 = vunpack.c.h.b16 %v1354
    %v1431 = vunpack.c.l.b16 %v1355
    %v1432 = vunpack.c.h.b16 %v1355
    %v1433 = vunpack.c.l.b16 %v1356
    %v1434 = vunpack.c.h.b16 %v1356
    %v1435 = vunpack.c.l.b16 %v1357
    %v1436 = vunpack.c.h.b16 %v1357
    %v1437 = vunpack.c.l.b16 %v1358
    %v1438 = vunpack.c.h.b16 %v1358
    %v1439 = vunpack.c.l.b16 %v1359
    %v1440 = vunpack.c.h.b16 %v1359
    %v1441 = vunpack.c.l.b16 %v1360
    %v1442 = vunpack.c.h.b16 %v1360
    %v1443 = vunpack.c.l.b16 %v1361
    %v1444 = vunpack.c.h.b16 %v1361
    %v1445 = vunpack.c.l.b16 %v1362
    %v1446 = vunpack.c.h.b16 %v1362
    %v1447 = vunpack.c.l.b16 %v1363
    %v1448 = vunpack.c.h.b16 %v1363
    %v1449 = vunpack.c.l.b16 %v1364
    %v1450 = vunpack.c.h.b16 %v1364
    %v1451 = vunpack.c.l.b16 %v1365
    %v1452 = vunpack.c.h.b16 %v1365
    %v1453 = vunpack.c.l.b16 %v1366
    %v1454 = vunpack.c.h.b16 %v1366
    %v1455 = vunpack.c.l.b16 %v1367
    %v1456 = vunpack.c.h.b16 %v1367
    %v1457 = vunpack.c.l.b16 %v1368
    %v1458 = vunpack.c.h.b16 %v1368
    %v1459 = vunpack.c.l.b16 %v1369
    %v1460 = vunpack.c.h.b16 %v1369
    %v1461 = vunpack.c.l.b16 %v1370
    %v1462 = vunpack.c.h.b16 %v1370
    %v1463 = vunpack.c.l.b16 %v1371
    %v1464 = vunpack.c.h.b16 %v1371
    %v1465 = vunpack.c.l.b16 %v1372
    %v1466 = vunpack.c.h.b16 %v1372
    %v1467 = vunpack.c.l.b16 %v1373
    %v1468 = vunpack.c.h.b16 %v1373
    %v1469 = vunpack.c.l.b16 %v1374
    %v1470 = vunpack.c.h.b16 %v1374
    %v1471 = vpack.c.b16 %v1407, %v1407
    %v1472 = vpack.c.b16 %v1408, %v1408
    %v1473 = vpack.c.b16 %v1409, %v1409
    %v1474 = vpack.c.b16 %v1410, %v1410
    %v1475 = vpack.c.b16 %v1411, %v1411
    %v1476 = vpack.c.b16 %v1412, %v1412
    %v1477 = vpack.c.b16 %v1413, %v1413
    %v1478 = vpack.c.b16 %v1414, %v1414
    %v1479 = vpack.c.b16 %v1415, %v1415
    %v1480 = vpack.c.b16 %v1416, %v1416
    %v1481 = vpack.c.b16 %v1417, %v1417
    %v1482 = vpack.c.b16 %v1418, %v1418
    %v1483 = vpack.c.b16 %v1419, %v1419
    %v1484 = vpack.c.b16 %v1420, %v1420
    %v1485 = vpack.c.b16 %v1421, %v1421
    %v1486 = vpack.c.b16 %v1422, %v1422
    %v1487 = vpack.c.b16 %v1423, %v1423
    %v1488 = vpack.c.b16 %v1424, %v1424
    %v1489 = vpack.c.b16 %v1425, %v1425
    %v1490 = vpack.c.b16 %v1426, %v1426
    %v1491 = vpack.c.b16 %v1427, %v1427
    %v1492 = vpack.c.b16 %v1428, %v1428
    %v1493 = vpack.c.b16 %v1429, %v1429
    %v1494 = vpack.c.b16 %v1430, %v1430
    %v1495 = vpack.c.b16 %v1431, %v1431
    %v1496 = vpack.c.b16 %v1432, %v1432
    %v1497 = vpack.c.b16 %v1433, %v1433
    %v1498 = vpack.c.b16 %v1434, %v1434
    %v1499 = vpack.c.b16 %v1435, %v1435
    %v1500 = vpack.c.b16 %v1436, %v1436
    %v1501 = vpack.c.b16 %v1437, %v1437
    %v1502 = vpack.c.b16 %v1438, %v1438
    %v1503 = vpack.c.b16 %v1439, %v1439
    %v1504 = vpack.c.b16 %v1440, %v1440
    %v1505 = vpack.c.b16 %v1441, %v1441
    %v1506 = vpack.c.b16 %v1442, %v1442
    %v1507 = vpack.c.b16 %v1443, %v1443
    %v1508 = vpack.c.b16 %v1444, %v1444
    %v1509 = vpack.c.b16 %v1445, %v1445
    %v1510 = vpack.c.b16 %v1446, %v1446
    %v1511 = vpack.c.b16 %v1447, %v1447
    %v1512 = vpack.c.b16 %v1448, %v1448
    %v1513 = vpack.c.b16 %v1449, %v1449
    %v1514 = vpack.c.b16 %v1450, %v1450
    %v1515 = vpack.c.b16 %v1451, %v1451
    %v1516 = vpack.c.b16 %v1452, %v1452
    %v1517 = vpack.c.b16 %v1453, %v1453
    %v1518 = vpack.c.b16 %v1454, %v1454
    %v1519 = vpack.c.b16 %v1455, %v1455
    %v1520 = vpack.c.b16 %v1456, %v1456
    %v1521 = vpack.c.b16 %v1457, %v1457
    %v1522 = vpack.c.b16 %v1458, %v1458
    %v1523 = vpack.c.b16 %v1459, %v1459
    %v1524 = vpack.c.b16 %v1460, %v1460
    %v1525 = vpack.c.b16 %v1461, %v1461
    %v1526 = vpack.c.b16 %v1462, %v1462
    %v1527 = vpack.c.b16 %v1463, %v1463
    %v1528 = vpack.c.b16 %v1464, %v1464
    %v1529 = vpack.c.b16 %v1465, %v1465
    %v1530 = vpack.c.b16 %v1466, %v1466
    %v1531 = vpack.c.b16 %v1467, %v1467
    %v1532 = vpack.c.b16 %v1468, %v1468
    %v1533 = vpack.c.b16 %v1469, %v1469
    %v1534 = vpack.c.b16 %v1470, %v1470
    %1599 = vst [vmem:[%s4] sm:$0xf] %v1471
    %1600 = vst [vmem:[%s4 + $0x4] sm:$0xf] %v1472
    %1601 = vst [vmem:[%s4 + $0x8] sm:$0xf] %v1473
    %1602 = vst [vmem:[%s4 + $0xc] sm:$0xf] %v1474
    %1603 = vst [vmem:[%s4 + $0x10] sm:$0xf] %v1475
    %1604 = vst [vmem:[%s4 + $0x14] sm:$0xf] %v1476
    %1605 = vst [vmem:[%s4 + $0x18] sm:$0xf] %v1477
    %1606 = vst [vmem:[%s4 + $0x1c] sm:$0xf] %v1478
    %1607 = vst [vmem:[%s4 + $0x20] sm:$0xf] %v1479
    %1608 = vst [vmem:[%s4 + $0x24] sm:$0xf] %v1480
    %1609 = vst [vmem:[%s4 + $0x28] sm:$0xf] %v1481
    %1610 = vst [vmem:[%s4 + $0x2c] sm:$0xf] %v1482
    %1611 = vst [vmem:[%s4 + $0x30] sm:$0xf] %v1483
    %1612 = vst [vmem:[%s4 + $0x34] sm:$0xf] %v1484
    %1613 = vst [vmem:[%s4 + $0x38] sm:$0xf] %v1485
    %1614 = vst [vmem:[%s4 + $0x3c] sm:$0xf] %v1486
    %1615 = vst [vmem:[%s4 + $0x40] sm:$0xf] %v1487
    %1616 = vst [vmem:[%s4 + $0x44] sm:$0xf] %v1488
    %1617 = vst [vmem:[%s4 + $0x48] sm:$0xf] %v1489
    %1618 = vst [vmem:[%s4 + $0x4c] sm:$0xf] %v1490
    %1619 = vst [vmem:[%s4 + $0x50] sm:$0xf] %v1491
    %1620 = vst [vmem:[%s4 + $0x54] sm:$0xf] %v1492
    %1621 = vst [vmem:[%s4 + $0x58] sm:$0xf] %v1493
    %1622 = vst [vmem:[%s4 + $0x5c] sm:$0xf] %v1494
    %1623 = vst [vmem:[%s4 + $0x60] sm:$0xf] %v1495
    %1624 = vst [vmem:[%s4 + $0x64] sm:$0xf] %v1496
    %1625 = vst [vmem:[%s4 + $0x68] sm:$0xf] %v1497
    %1626 = vst [vmem:[%s4 + $0x6c] sm:$0xf] %v1498
    %1627 = vst [vmem:[%s4 + $0x70] sm:$0xf] %v1499
    %1628 = vst [vmem:[%s4 + $0x74] sm:$0xf] %v1500
    %1629 = vst [vmem:[%s4 + $0x78] sm:$0xf] %v1501
    %1630 = vst [vmem:[%s4 + $0x7c] sm:$0xf] %v1502
    %1631 = vst [vmem:[%s4 + $0x80] sm:$0xf] %v1503
    %1632 = vst [vmem:[%s4 + $0x84] sm:$0xf] %v1504
    %1633 = vst [vmem:[%s4 + $0x88] sm:$0xf] %v1505
    %1634 = vst [vmem:[%s4 + $0x8c] sm:$0xf] %v1506
    %1635 = vst [vmem:[%s4 + $0x90] sm:$0xf] %v1507
    %1636 = vst [vmem:[%s4 + $0x94] sm:$0xf] %v1508
    %1637 = vst [vmem:[%s4 + $0x98] sm:$0xf] %v1509
    %1638 = vst [vmem:[%s4 + $0x9c] sm:$0xf] %v1510
    %1639 = vst [vmem:[%s4 + $0xa0] sm:$0xf] %v1511
    %1640 = vst [vmem:[%s4 + $0xa4] sm:$0xf] %v1512
    %1641 = vst [vmem:[%s4 + $0xa8] sm:$0xf] %v1513
    %1642 = vst [vmem:[%s4 + $0xac] sm:$0xf] %v1514
    %1643 = vst [vmem:[%s4 + $0xb0] sm:$0xf] %v1515
    %1644 = vst [vmem:[%s4 + $0xb4] sm:$0xf] %v1516
    %1645 = vst [vmem:[%s4 + $0xb8] sm:$0xf] %v1517
    %1646 = vst [vmem:[%s4 + $0xbc] sm:$0xf] %v1518
    %1647 = vst [vmem:[%s4 + $0xc0] sm:$0xf] %v1519
    %1648 = vst [vmem:[%s4 + $0xc4] sm:$0xf] %v1520
    %1649 = vst [vmem:[%s4 + $0xc8] sm:$0xf] %v1521
    %1650 = vst [vmem:[%s4 + $0xcc] sm:$0xf] %v1522
    %1651 = vst [vmem:[%s4 + $0xd0] sm:$0xf] %v1523
    %1652 = vst [vmem:[%s4 + $0xd4] sm:$0xf] %v1524
    %1653 = vst [vmem:[%s4 + $0xd8] sm:$0xf] %v1525
    %1654 = vst [vmem:[%s4 + $0xdc] sm:$0xf] %v1526
    %1655 = vst [vmem:[%s4 + $0xe0] sm:$0xf] %v1527
    %1656 = vst [vmem:[%s4 + $0xe4] sm:$0xf] %v1528
    %1657 = vst [vmem:[%s4 + $0xe8] sm:$0xf] %v1529
    %1658 = vst [vmem:[%s4 + $0xec] sm:$0xf] %v1530
    %1659 = vst [vmem:[%s4 + $0xf0] sm:$0xf] %v1531
    %1660 = vst [vmem:[%s4 + $0xf4] sm:$0xf] %v1532
    %1661 = vst [vmem:[%s4 + $0xf8] sm:$0xf] %v1533
    %1662 = vst [vmem:[%s4 + $0xfc] sm:$0xf] %v1534
    // Predicated region
    $region30: #{generator_forward.8} parent=1 // pred_check
      _
    $region31: #{generator_forward.8} parent=1 // pred_check_branch
      %1664 = sbr.rel (0) target = $region33
    $region32: #{generator_forward.8} parent=1 // pred_region
      _
    $region33: #{generator_forward.8} parent=1 // pred_fallthru
      _
    // Predicated region
    $region34: #{generator_forward.8} parent=1 // pred_check
      _
    $region35: #{generator_forward.8} parent=1 // pred_check_branch
      %1666 = sbr.rel (0) target = $region37
    $region36: #{generator_forward.8} parent=1 // pred_region
      _
    $region37: #{generator_forward.8} parent=1 // pred_fallthru
      _
    %1667 = vsyncpa [#allocation3], 1
    %1668 = vsyncpa [#allocation5], 1

// kernel: generator_forward.9
$region0: #{generator_forward.9}
  #allocation0 [shape = 'u32[]', space=smem, size = 0x4, offset = 0x4, fixed_abs, tag = 'smem constant byte address 0x4 - core index']
  #allocation1 [shape = 'u32[144,128]{1,0:T(1,128)}', space=vmem, size = 0x12000, scoped, tag = 'internal scratch']
  %s0 = inlined_call_operand.vmem [shape: bf16[2048,72], index: 0, kind: input, shape index: {}]
  %s1 = inlined_call_operand.vmem [shape: bf16[72,128], index: 1, kind: input, shape index: {}]
  %s2 = inlined_call_operand.vmem [shape: f32[2048,128], index: 2, kind: output, shape index: {}]
  %s3 = sld [smem:[#allocation0]]
  $region41: #{generator_forward.9} parent=0
    _
  %s5 = ssub.s32 1, %s3
  %s6 = scalar_select 0, %s5, %s3
  loop: start=0, step=1, limit=6
  $region2: #{generator_forward.9} parent=0 // loop_pre_header
    _
  $region3: #{generator_forward.9} parent=0 // loop_header
    %s8 = sphi 0, %s12
    %p9 = scmp.ge.s32.totalorder %s8, 6
    %s18 = sphi 0, %s20
    %s21 = sphi 0, %s18
    %s22 = sphi 0, %s21
    %s38 = sphi 0, %s22
    %s42 = sphi 0, %s42
    %s44 = sphi 0, %s42
    %s45 = sphi 0, %s44
    %s59 = sphi 0, %s45
    %s65 = sphi 0, %s67
    %s68 = sphi 0, %s65
    %s69 = sphi 0, %s68
    %s85 = sphi 0, %s69
  $region4: #{generator_forward.9} parent=0 // loop_header_branch
    %11 = sbr.rel (%p9) target = $region8
  $region5: #{generator_forward.9} parent=0 // loop_body
    %s13 = ssub.s32 %s8, 1
    %s14 = ssub.s32 %s8, 2
    %s15 = sadd.s32 %s8, 1
    %s16 = ssub.s32 %s8, %s15
    %p17 = scmp.eq.s32.totalorder %s16, 0
    %s19 = sadd.s32 %s18, 1
    %s20 = scalar_select %p17, %s18, %s19
    %p23 = pneg %p17
    %p24 = scmp.eq.s32.totalorder %s8, 3
    %p25 = por %p23, %p24
    %p26 = scmp.ne.s32.totalorder %s18, %s21
    %p27 = scmp.eq.s32.totalorder %s8, 0
    %p28 = por %p26, %p27
    %p29 = scmp.ne.s32.totalorder %s18, %s21
    %p30 = scmp.eq.s32.totalorder %s13, 3
    %p31 = por %p29, %p30
    %p32 = scmp.ne.s32.totalorder %s21, %s22
    %p33 = scmp.eq.s32.totalorder %s13, 0
    %p34 = por %p32, %p33
    %p35 = scmp.ne.s32.totalorder %s21, %s22
    %p36 = scmp.eq.s32.totalorder %s14, 3
    %p37 = por %p35, %p36
    %p39 = scmp.ne.s32.totalorder %s22, %s38
    %p40 = scmp.eq.s32.totalorder %s14, 0
    %p41 = por %p39, %p40
    %s43 = sadd.s32 %s42, 1
    %p46 = scmp.eq.s32.totalorder %s8, 3
    %p47 = scmp.ne.s32.totalorder %s42, %s44
    %p48 = scmp.eq.s32.totalorder %s8, 0
    %p49 = por %p47, %p48
    %p50 = scmp.ne.s32.totalorder %s42, %s44
    %p51 = scmp.eq.s32.totalorder %s13, 3
    %p52 = por %p50, %p51
    %p53 = scmp.ne.s32.totalorder %s44, %s45
    %p54 = scmp.eq.s32.totalorder %s13, 0
    %p55 = por %p53, %p54
    %p56 = scmp.ne.s32.totalorder %s44, %s45
    %p57 = scmp.eq.s32.totalorder %s14, 3
    %p58 = por %p56, %p57
    %p60 = scmp.ne.s32.totalorder %s45, %s59
    %p61 = scmp.eq.s32.totalorder %s14, 0
    %p62 = por %p60, %p61
    %s63 = ssub.s32 %s8, %s15
    %p64 = scmp.eq.s32.totalorder %s63, 0
    %s66 = sadd.s32 %s65, 1
    %s67 = scalar_select %p64, %s65, %s66
    %p70 = pneg %p64
    %p71 = scmp.eq.s32.totalorder %s8, 3
    %p72 = por %p70, %p71
    %p73 = scmp.ne.s32.totalorder %s65, %s68
    %p74 = scmp.eq.s32.totalorder %s8, 0
    %p75 = por %p73, %p74
    %p76 = scmp.ne.s32.totalorder %s65, %s68
    %p77 = scmp.eq.s32.totalorder %s13, 3
    %p78 = por %p76, %p77
    %p79 = scmp.ne.s32.totalorder %s68, %s69
    %p80 = scmp.eq.s32.totalorder %s13, 0
    %p81 = por %p79, %p80
    %p82 = scmp.ne.s32.totalorder %s68, %s69
    %p83 = scmp.eq.s32.totalorder %s14, 3
    %p84 = por %p82, %p83
    %p86 = scmp.ne.s32.totalorder %s69, %s85
    %p87 = scmp.eq.s32.totalorder %s14, 0
    %p88 = por %p86, %p87
    %p89 = scmp.le.s32.totalorder 1, %s8
    %p90 = scmp.lt.s32.totalorder %s8, 5
    %p91 = pnand %p89, %p90
    %p92 = pneg %p91
    // Predicated region
    $region9: #{generator_forward.9} parent=5 // pred_check
      _
    $region10: #{generator_forward.9} parent=5 // pred_check_branch
      %94 = sbr.rel (%p91) target = $region12
    $region11: #{generator_forward.9} parent=5 // pred_region
      %s95 = ssub.s32 %s8, 1
      // Predicated region
      $region13: #{generator_forward.9} parent=11 // pred_check
        %p96 = pneg %p55
      $region14: #{generator_forward.9} parent=11 // pred_check_branch
        %98 = sbr.rel (%p96) target = $region16
      $region15: #{generator_forward.9} parent=11 // pred_region
        _
      $region16: #{generator_forward.9} parent=11 // pred_fallthru
        _
    $region12: #{generator_forward.9} parent=5 // pred_fallthru
      _
    %p99 = scmp.lt.s32.totalorder %s8, 4
    // Predicated region
    $region17: #{generator_forward.9} parent=5 // pred_check
      %p100 = pneg %p99
    $region18: #{generator_forward.9} parent=5 // pred_check_branch
      %102 = sbr.rel (%p100) target = $region20
    $region19: #{generator_forward.9} parent=5 // pred_region
      // Predicated region
      $region21: #{generator_forward.9} parent=19 // pred_check
        %p103 = pneg %p28
      $region22: #{generator_forward.9} parent=19 // pred_check_branch
        %105 = sbr.rel (%p103) target = $region24
      $region23: #{generator_forward.9} parent=19 // pred_region
        %s106 = smul.u32 64, %s8
        %p107 = scmp.lt.s32.totalorder %s106, 255
        %s108 = scalar_select %p107, %s106, 255
        %s109 = smul.addr %s108, 4
        %s110 = scalar_lea.vmem %s0, %s109
        %s111 = smul.u32 64, %s8
      $region24: #{generator_forward.9} parent=19 // pred_fallthru
        _
    $region20: #{generator_forward.9} parent=5 // pred_fallthru
      _
    %p112 = scmp.le.s32.totalorder 1, %s8
    %p113 = scmp.lt.s32.totalorder %s8, 5
    %p114 = pnand %p112, %p113
    %p115 = pneg %p114
    // Predicated region
    $region25: #{generator_forward.9} parent=5 // pred_check
      _
    $region26: #{generator_forward.9} parent=5 // pred_check_branch
      %117 = sbr.rel (%p114) target = $region28
    $region27: #{generator_forward.9} parent=5 // pred_region
      %s118 = ssub.s32 %s8, 1
      %s119 = smul.u32 64, %s13
      %p120 = scmp.lt.s32.totalorder %s119, 255
      %s121 = scalar_select %p120, %s119, 255
      %s122 = smul.addr %s121, 4
      %s123 = scalar_lea.vmem %s0, %s122
      %p124 = pneg %p34
      %p125 = pneg %p31
      %p126 = pneg %p55
      %p127 = pneg %p52
      %p128 = pneg %p81
      %p129 = pneg %p78
      %s130 = smul.u32 64, %s13
      %p131 = scmp.lt.s32.totalorder %s130, 255
      %s132 = scalar_select %p131, %s130, 255
      %s133 = smul.addr %s132, 8
      %s134 = scalar_lea.vmem %s2, %s133
      %s135 = smul.u32 64, %s13
      %p136 = scmp.lt.s32.totalorder %s135, 255
      %s137 = scalar_select %p136, %s135, 255
      %s138 = smul.addr %s137, 4
      %s139 = scalar_lea.vmem %s0, %s138
      %s140 = smul.u32 64, %s13
      %s141 = smul.u32 64, %s13
      %p142 = scmp.lt.s32.totalorder %s141, 255
      %s143 = scalar_select %p142, %s141, 255
      %s144 = smul.addr %s143, 8
      %s145 = scalar_lea.vmem %s2, %s144
      %s146 = smul.u32 64, %s13
      %v148 = vld [vmem:[%s139] sm:$0xf]
      %v149 = vld [vmem:[%s139 + $0x4] sm:$0xf]
      %v150 = vld [vmem:[%s139 + $0x8] sm:$0xf]
      %v151 = vld [vmem:[%s139 + $0xc] sm:$0xf]
      %v152 = vld [vmem:[%s139 + $0x10] sm:$0xf]
      %v153 = vld [vmem:[%s139 + $0x14] sm:$0xf]
      %v154 = vld [vmem:[%s139 + $0x18] sm:$0xf]
      %v155 = vld [vmem:[%s139 + $0x1c] sm:$0xf]
      %v156 = vld [vmem:[%s139 + $0x20] sm:$0xf]
      %v157 = vld [vmem:[%s139 + $0x24] sm:$0xf]
      %v158 = vld [vmem:[%s139 + $0x28] sm:$0xf]
      %v159 = vld [vmem:[%s139 + $0x2c] sm:$0xf]
      %v160 = vld [vmem:[%s139 + $0x30] sm:$0xf]
      %v161 = vld [vmem:[%s139 + $0x34] sm:$0xf]
      %v162 = vld [vmem:[%s139 + $0x38] sm:$0xf]
      %v163 = vld [vmem:[%s139 + $0x3c] sm:$0xf]
      %v164 = vld [vmem:[%s139 + $0x40] sm:$0xf]
      %v165 = vld [vmem:[%s139 + $0x44] sm:$0xf]
      %v166 = vld [vmem:[%s139 + $0x48] sm:$0xf]
      %v167 = vld [vmem:[%s139 + $0x4c] sm:$0xf]
      %v168 = vld [vmem:[%s139 + $0x50] sm:$0xf]
      %v169 = vld [vmem:[%s139 + $0x54] sm:$0xf]
      %v170 = vld [vmem:[%s139 + $0x58] sm:$0xf]
      %v171 = vld [vmem:[%s139 + $0x5c] sm:$0xf]
      %v172 = vld [vmem:[%s139 + $0x60] sm:$0xf]
      %v173 = vld [vmem:[%s139 + $0x64] sm:$0xf]
      %v174 = vld [vmem:[%s139 + $0x68] sm:$0xf]
      %v175 = vld [vmem:[%s139 + $0x6c] sm:$0xf]
      %v176 = vld [vmem:[%s139 + $0x70] sm:$0xf]
      %v177 = vld [vmem:[%s139 + $0x74] sm:$0xf]
      %v178 = vld [vmem:[%s139 + $0x78] sm:$0xf]
      %v179 = vld [vmem:[%s139 + $0x7c] sm:$0xf]
      %v180 = vld [vmem:[%s139 + $0x80] sm:$0xf]
      %v181 = vld [vmem:[%s139 + $0x84] sm:$0xf]
      %v182 = vld [vmem:[%s139 + $0x88] sm:$0xf]
      %v183 = vld [vmem:[%s139 + $0x8c] sm:$0xf]
      %v184 = vld [vmem:[%s139 + $0x90] sm:$0xf]
      %v185 = vld [vmem:[%s139 + $0x94] sm:$0xf]
      %v186 = vld [vmem:[%s139 + $0x98] sm:$0xf]
      %v187 = vld [vmem:[%s139 + $0x9c] sm:$0xf]
      %v188 = vld [vmem:[%s139 + $0xa0] sm:$0xf]
      %v189 = vld [vmem:[%s139 + $0xa4] sm:$0xf]
      %v190 = vld [vmem:[%s139 + $0xa8] sm:$0xf]
      %v191 = vld [vmem:[%s139 + $0xac] sm:$0xf]
      %v192 = vld [vmem:[%s139 + $0xb0] sm:$0xf]
      %v193 = vld [vmem:[%s139 + $0xb4] sm:$0xf]
      %v194 = vld [vmem:[%s139 + $0xb8] sm:$0xf]
      %v195 = vld [vmem:[%s139 + $0xbc] sm:$0xf]
      %v196 = vld [vmem:[%s139 + $0xc0] sm:$0xf]
      %v197 = vld [vmem:[%s139 + $0xc4] sm:$0xf]
      %v198 = vld [vmem:[%s139 + $0xc8] sm:$0xf]
      %v199 = vld [vmem:[%s139 + $0xcc] sm:$0xf]
      %v200 = vld [vmem:[%s139 + $0xd0] sm:$0xf]
      %v201 = vld [vmem:[%s139 + $0xd4] sm:$0xf]
      %v202 = vld [vmem:[%s139 + $0xd8] sm:$0xf]
      %v203 = vld [vmem:[%s139 + $0xdc] sm:$0xf]
      %v204 = vld [vmem:[%s139 + $0xe0] sm:$0xf]
      %v205 = vld [vmem:[%s139 + $0xe4] sm:$0xf]
      %v206 = vld [vmem:[%s139 + $0xe8] sm:$0xf]
      %v207 = vld [vmem:[%s139 + $0xec] sm:$0xf]
      %v208 = vld [vmem:[%s139 + $0xf0] sm:$0xf]
      %v209 = vld [vmem:[%s139 + $0xf4] sm:$0xf]
      %v210 = vld [vmem:[%s139 + $0xf8] sm:$0xf]
      %v211 = vld [vmem:[%s139 + $0xfc] sm:$0xf]
      %v212 = vld [vmem:[%s1] sm:$0xf]
      %v213 = vld [vmem:[%s1 + $0x4] sm:$0xf]
      %v214 = vld [vmem:[%s1 + $0x8] sm:$0xf]
      %v215 = vld [vmem:[%s1 + $0xc] sm:$0xf]
      %v216 = vld [vmem:[%s1 + $0x10] sm:$0xf]
      %v217 = vld [vmem:[%s1 + $0x14] sm:$0xf]
      %v218 = vld [vmem:[%s1 + $0x18] sm:$0xf]
      %v219 = vld [vmem:[%s1 + $0x1c] sm:$0xf]
      %v220 = vld [vmem:[%s1 + $0x20] sm:$0xf]
      %v285 = vunpack.c.l.b16 %v148
      %v286 = vunpack.c.l.b16 %v149
      %v287 = vunpack.c.l.b16 %v150
      %v288 = vunpack.c.l.b16 %v151
      %v289 = vunpack.c.l.b16 %v152
      %v290 = vunpack.c.l.b16 %v153
      %v291 = vunpack.c.l.b16 %v154
      %v292 = vunpack.c.l.b16 %v155
      %v293 = vunpack.c.l.b16 %v156
      %v294 = vunpack.c.l.b16 %v157
      %v295 = vunpack.c.l.b16 %v158
      %v296 = vunpack.c.l.b16 %v159
      %v297 = vunpack.c.l.b16 %v160
      %v298 = vunpack.c.l.b16 %v161
      %v299 = vunpack.c.l.b16 %v162
      %v300 = vunpack.c.l.b16 %v163
      %v301 = vunpack.c.l.b16 %v164
      %v302 = vunpack.c.l.b16 %v165
      %v303 = vunpack.c.l.b16 %v166
      %v304 = vunpack.c.l.b16 %v167
      %v305 = vunpack.c.l.b16 %v168
      %v306 = vunpack.c.l.b16 %v169
      %v307 = vunpack.c.l.b16 %v170
      %v308 = vunpack.c.l.b16 %v171
      %v309 = vunpack.c.l.b16 %v172
      %v310 = vunpack.c.l.b16 %v173
      %v311 = vunpack.c.l.b16 %v174
      %v312 = vunpack.c.l.b16 %v175
      %v313 = vunpack.c.l.b16 %v176
      %v314 = vunpack.c.l.b16 %v177
      %v315 = vunpack.c.l.b16 %v178
      %v316 = vunpack.c.l.b16 %v179
      %v317 = vunpack.c.l.b16 %v180
      %v318 = vunpack.c.l.b16 %v181
      %v319 = vunpack.c.l.b16 %v182
      %v320 = vunpack.c.l.b16 %v183
      %v321 = vunpack.c.l.b16 %v184
      %v322 = vunpack.c.l.b16 %v185
      %v323 = vunpack.c.l.b16 %v186
      %v324 = vunpack.c.l.b16 %v187
      %v325 = vunpack.c.l.b16 %v188
      %v326 = vunpack.c.l.b16 %v189
      %v327 = vunpack.c.l.b16 %v190
      %v328 = vunpack.c.l.b16 %v191
      %v329 = vunpack.c.l.b16 %v192
      %v330 = vunpack.c.l.b16 %v193
      %v331 = vunpack.c.l.b16 %v194
      %v332 = vunpack.c.l.b16 %v195
      %v333 = vunpack.c.l.b16 %v196
      %v334 = vunpack.c.l.b16 %v197
      %v335 = vunpack.c.l.b16 %v198
      %v336 = vunpack.c.l.b16 %v199
      %v337 = vunpack.c.l.b16 %v200
      %v338 = vunpack.c.l.b16 %v201
      %v339 = vunpack.c.l.b16 %v202
      %v340 = vunpack.c.l.b16 %v203
      %v341 = vunpack.c.l.b16 %v204
      %v342 = vunpack.c.l.b16 %v205
      %v343 = vunpack.c.l.b16 %v206
      %v344 = vunpack.c.l.b16 %v207
      %v345 = vunpack.c.l.b16 %v208
      %v346 = vunpack.c.l.b16 %v209
      %v347 = vunpack.c.l.b16 %v210
      %v348 = vunpack.c.l.b16 %v211
      %v349 = vpack.c.b16 %v286, %v285
      %v350 = vpack.c.b16 %v288, %v287
      %v351 = vpack.c.b16 %v290, %v289
      %v352 = vpack.c.b16 %v292, %v291
      %v353 = vpack.c.b16 %v294, %v293
      %v354 = vpack.c.b16 %v296, %v295
      %v355 = vpack.c.b16 %v298, %v297
      %v356 = vpack.c.b16 %v300, %v299
      %v357 = vpack.c.b16 %v302, %v301
      %v358 = vpack.c.b16 %v304, %v303
      %v359 = vpack.c.b16 %v306, %v305
      %v360 = vpack.c.b16 %v308, %v307
      %v361 = vpack.c.b16 %v310, %v309
      %v362 = vpack.c.b16 %v312, %v311
      %v363 = vpack.c.b16 %v314, %v313
      %v364 = vpack.c.b16 %v316, %v315
      %v365 = vpack.c.b16 %v318, %v317
      %v366 = vpack.c.b16 %v320, %v319
      %v367 = vpack.c.b16 %v322, %v321
      %v368 = vpack.c.b16 %v324, %v323
      %v369 = vpack.c.b16 %v326, %v325
      %v370 = vpack.c.b16 %v328, %v327
      %v371 = vpack.c.b16 %v330, %v329
      %v372 = vpack.c.b16 %v332, %v331
      %v373 = vpack.c.b16 %v334, %v333
      %v374 = vpack.c.b16 %v336, %v335
      %v375 = vpack.c.b16 %v338, %v337
      %v376 = vpack.c.b16 %v340, %v339
      %v377 = vpack.c.b16 %v342, %v341
      %v378 = vpack.c.b16 %v344, %v343
      %v379 = vpack.c.b16 %v346, %v345
      %v380 = vpack.c.b16 %v348, %v347
      %v390 = vunpack.c.l.b16 %v212
      %v391 = vunpack.c.l.b16 %v213
      %v392 = vunpack.c.l.b16 %v214
      %v393 = vunpack.c.l.b16 %v215
      %v394 = vunpack.c.l.b16 %v216
      %v395 = vunpack.c.l.b16 %v217
      %v396 = vunpack.c.l.b16 %v218
      %v397 = vunpack.c.l.b16 %v219
      %v398 = vunpack.c.l.b16 %v220
      %v399 = vpack.c.b16 %v391, %v390
      %v400 = vpack.c.b16 %v393, %v392
      %v401 = vpack.c.b16 %v395, %v394
      %v402 = vpack.c.b16 %v397, %v396
      %v403 = vpack.c.b16 %v398, %v398
      %vm408 = vcmask 588800
      %v410 = vsel %vm408, %v349, 0
      %v413 = vsel %vm408, %v350, 0
      %v416 = vsel %vm408, %v351, 0
      %v419 = vsel %vm408, %v352, 0
      %v422 = vsel %vm408, %v353, 0
      %v425 = vsel %vm408, %v354, 0
      %v428 = vsel %vm408, %v355, 0
      %v431 = vsel %vm408, %v356, 0
      %v434 = vsel %vm408, %v357, 0
      %v437 = vsel %vm408, %v358, 0
      %v440 = vsel %vm408, %v359, 0
      %v443 = vsel %vm408, %v360, 0
      %v446 = vsel %vm408, %v361, 0
      %v449 = vsel %vm408, %v362, 0
      %v452 = vsel %vm408, %v363, 0
      %v455 = vsel %vm408, %v364, 0
      %v458 = vsel %vm408, %v365, 0
      %v461 = vsel %vm408, %v366, 0
      %v464 = vsel %vm408, %v367, 0
      %v467 = vsel %vm408, %v368, 0
      %v470 = vsel %vm408, %v369, 0
      %v473 = vsel %vm408, %v370, 0
      %v476 = vsel %vm408, %v371, 0
      %v479 = vsel %vm408, %v372, 0
      %v482 = vsel %vm408, %v373, 0
      %v485 = vsel %vm408, %v374, 0
      %v488 = vsel %vm408, %v375, 0
      %v491 = vsel %vm408, %v376, 0
      %v494 = vsel %vm408, %v377, 0
      %v497 = vsel %vm408, %v378, 0
      %v500 = vsel %vm408, %v379, 0
      %v503 = vsel %vm408, %v380, 0
      %vm505 = vcmask 1043456
      %v507 = vsel %vm505, %v403, 0
      %509 = vmatprep.subr.bf16.mxu0 0
      %510 = vmatpush1.bf16.msra.mxu0 0
      %511 = vmatprep.subr.bf16.mxu0 0
      %512 = vmatpush1.bf16.msra.mxu0 0
      %513 = vmatprep.subr.bf16.mxu0 0
      %514 = vmatpush1.bf16.msra.mxu0 0
      %515 = vmatprep.subr.bf16.mxu0 0
      %516 = vmatpush1.bf16.msra.mxu0 %v507
      %517 = vmatprep.subr.bf16.mxu0 0
      %518 = vmatpush1.bf16.msra.mxu0 %v402
      %519 = vmatprep.subr.bf16.mxu0 0
      %520 = vmatpush1.bf16.msra.mxu0 %v401
      %521 = vmatprep.subr.bf16.mxu0 0
      %522 = vmatpush1.bf16.msra.mxu0 %v400
      %523 = vmatprep.subr.bf16.mxu0 0
      %524 = vmatpush1.bf16.msra.mxu0 %v399
      %525 = vmatprep.subr.bf16.mxu0 0
      %526 = vmatpush2.bf16.msra.mxu0 0
      %527 = vmatprep.subr.bf16.mxu0 0
      %528 = vmatpush2.bf16.msra.mxu0 0
      %529 = vmatprep.subr.bf16.mxu0 0
      %530 = vmatpush2.bf16.msra.mxu0 0
      %531 = vmatprep.subr.bf16.mxu0 0
      %532 = vmatpush2.bf16.msra.mxu0 0
      %533 = vmatprep.subr.bf16.mxu0 0
      %534 = vmatpush2.bf16.msra.mxu0 0
      %535 = vmatprep.subr.bf16.mxu0 0
      %536 = vmatpush2.bf16.msra.mxu0 0
      %537 = vmatprep.subr.bf16.mxu0 0
      %538 = vmatpush2.bf16.msra.mxu0 0
      %539 = vmatprep.subr.bf16.mxu0 0
      %540 = vmatpush2.bf16.msra.mxu0 0
      %541 = vmatprep.mubr.bf16.mxu0 0
      %542 = vmatmul.mubr.bf16.gmra.mxu0 %v410
      %v543 = vpop.f32.mrf.mxu0
      %v544 = vadd.f32 0.0, %v543
      %v545 = vpop.f32.mrf.mxu0
      %v546 = vpop.f32.mrf.mxu0
      %v547 = vadd.f32 0.0, %v546
      %v548 = vpop.f32.mrf.mxu0
      %549 = vmatprep.mubr.bf16.mxu0 0
      %550 = vmatmul.mubr.bf16.gmra.mxu0 %v413
      %v551 = vpop.f32.mrf.mxu0
      %v552 = vadd.f32 0.0, %v551
      %v553 = vpop.f32.mrf.mxu0
      %v554 = vpop.f32.mrf.mxu0
      %v555 = vadd.f32 0.0, %v554
      %v556 = vpop.f32.mrf.mxu0
      %557 = vmatprep.mubr.bf16.mxu0 0
      %558 = vmatmul.mubr.bf16.gmra.mxu0 %v416
      %v559 = vpop.f32.mrf.mxu0
      %v560 = vadd.f32 0.0, %v559
      %v561 = vpop.f32.mrf.mxu0
      %v562 = vpop.f32.mrf.mxu0
      %v563 = vadd.f32 0.0, %v562
      %v564 = vpop.f32.mrf.mxu0
      %565 = vmatprep.mubr.bf16.mxu0 0
      %566 = vmatmul.mubr.bf16.gmra.mxu0 %v419
      %v567 = vpop.f32.mrf.mxu0
      %v568 = vadd.f32 0.0, %v567
      %v569 = vpop.f32.mrf.mxu0
      %v570 = vpop.f32.mrf.mxu0
      %v571 = vadd.f32 0.0, %v570
      %v572 = vpop.f32.mrf.mxu0
      %573 = vmatprep.mubr.bf16.mxu0 0
      %574 = vmatmul.mubr.bf16.gmra.mxu0 %v422
      %v575 = vpop.f32.mrf.mxu0
      %v576 = vadd.f32 0.0, %v575
      %v577 = vpop.f32.mrf.mxu0
      %v578 = vpop.f32.mrf.mxu0
      %v579 = vadd.f32 0.0, %v578
      %v580 = vpop.f32.mrf.mxu0
      %581 = vmatprep.mubr.bf16.mxu0 0
      %582 = vmatmul.mubr.bf16.gmra.mxu0 %v425
      %v583 = vpop.f32.mrf.mxu0
      %v584 = vadd.f32 0.0, %v583
      %v585 = vpop.f32.mrf.mxu0
      %v586 = vpop.f32.mrf.mxu0
      %v587 = vadd.f32 0.0, %v586
      %v588 = vpop.f32.mrf.mxu0
      %589 = vmatprep.mubr.bf16.mxu0 0
      %590 = vmatmul.mubr.bf16.gmra.mxu0 %v428
      %v591 = vpop.f32.mrf.mxu0
      %v592 = vadd.f32 0.0, %v591
      %v593 = vpop.f32.mrf.mxu0
      %v594 = vpop.f32.mrf.mxu0
      %v595 = vadd.f32 0.0, %v594
      %v596 = vpop.f32.mrf.mxu0
      %597 = vmatprep.mubr.bf16.mxu0 0
      %598 = vmatmul.mubr.bf16.gmra.mxu0 %v431
      %v599 = vpop.f32.mrf.mxu0
      %v600 = vadd.f32 0.0, %v599
      %v601 = vpop.f32.mrf.mxu0
      %v602 = vpop.f32.mrf.mxu0
      %v603 = vadd.f32 0.0, %v602
      %v604 = vpop.f32.mrf.mxu0
      %605 = vmatprep.mubr.bf16.mxu0 0
      %606 = vmatmul.mubr.bf16.gmra.mxu0 %v434
      %v607 = vpop.f32.mrf.mxu0
      %v608 = vadd.f32 0.0, %v607
      %v609 = vpop.f32.mrf.mxu0
      %v610 = vpop.f32.mrf.mxu0
      %v611 = vadd.f32 0.0, %v610
      %v612 = vpop.f32.mrf.mxu0
      %613 = vmatprep.mubr.bf16.mxu0 0
      %614 = vmatmul.mubr.bf16.gmra.mxu0 %v437
      %v615 = vpop.f32.mrf.mxu0
      %v616 = vadd.f32 0.0, %v615
      %v617 = vpop.f32.mrf.mxu0
      %v618 = vpop.f32.mrf.mxu0
      %v619 = vadd.f32 0.0, %v618
      %v620 = vpop.f32.mrf.mxu0
      %621 = vmatprep.mubr.bf16.mxu0 0
      %622 = vmatmul.mubr.bf16.gmra.mxu0 %v440
      %v623 = vpop.f32.mrf.mxu0
      %v624 = vadd.f32 0.0, %v623
      %v625 = vpop.f32.mrf.mxu0
      %v626 = vpop.f32.mrf.mxu0
      %v627 = vadd.f32 0.0, %v626
      %v628 = vpop.f32.mrf.mxu0
      %629 = vmatprep.mubr.bf16.mxu0 0
      %630 = vmatmul.mubr.bf16.gmra.mxu0 %v443
      %v631 = vpop.f32.mrf.mxu0
      %v632 = vadd.f32 0.0, %v631
      %v633 = vpop.f32.mrf.mxu0
      %v634 = vpop.f32.mrf.mxu0
      %v635 = vadd.f32 0.0, %v634
      %v636 = vpop.f32.mrf.mxu0
      %637 = vmatprep.mubr.bf16.mxu0 0
      %638 = vmatmul.mubr.bf16.gmra.mxu0 %v446
      %v639 = vpop.f32.mrf.mxu0
      %v640 = vadd.f32 0.0, %v639
      %v641 = vpop.f32.mrf.mxu0
      %v642 = vpop.f32.mrf.mxu0
      %v643 = vadd.f32 0.0, %v642
      %v644 = vpop.f32.mrf.mxu0
      %645 = vmatprep.mubr.bf16.mxu0 0
      %646 = vmatmul.mubr.bf16.gmra.mxu0 %v449
      %v647 = vpop.f32.mrf.mxu0
      %v648 = vadd.f32 0.0, %v647
      %v649 = vpop.f32.mrf.mxu0
      %v650 = vpop.f32.mrf.mxu0
      %v651 = vadd.f32 0.0, %v650
      %v652 = vpop.f32.mrf.mxu0
      %653 = vmatprep.mubr.bf16.mxu0 0
      %654 = vmatmul.mubr.bf16.gmra.mxu0 %v452
      %v655 = vpop.f32.mrf.mxu0
      %v656 = vadd.f32 0.0, %v655
      %v657 = vpop.f32.mrf.mxu0
      %v658 = vpop.f32.mrf.mxu0
      %v659 = vadd.f32 0.0, %v658
      %v660 = vpop.f32.mrf.mxu0
      %661 = vmatprep.mubr.bf16.mxu0 0
      %662 = vmatmul.mubr.bf16.gmra.mxu0 %v455
      %v663 = vpop.f32.mrf.mxu0
      %v664 = vadd.f32 0.0, %v663
      %v665 = vpop.f32.mrf.mxu0
      %v666 = vpop.f32.mrf.mxu0
      %v667 = vadd.f32 0.0, %v666
      %v668 = vpop.f32.mrf.mxu0
      %669 = vmatprep.mubr.bf16.mxu0 0
      %670 = vmatmul.mubr.bf16.gmra.mxu0 %v458
      %v671 = vpop.f32.mrf.mxu0
      %v672 = vadd.f32 0.0, %v671
      %v673 = vpop.f32.mrf.mxu0
      %v674 = vpop.f32.mrf.mxu0
      %v675 = vadd.f32 0.0, %v674
      %v676 = vpop.f32.mrf.mxu0
      %677 = vmatprep.mubr.bf16.mxu0 0
      %678 = vmatmul.mubr.bf16.gmra.mxu0 %v461
      %v679 = vpop.f32.mrf.mxu0
      %v680 = vadd.f32 0.0, %v679
      %v681 = vpop.f32.mrf.mxu0
      %v682 = vpop.f32.mrf.mxu0
      %v683 = vadd.f32 0.0, %v682
      %v684 = vpop.f32.mrf.mxu0
      %685 = vmatprep.mubr.bf16.mxu0 0
      %686 = vmatmul.mubr.bf16.gmra.mxu0 %v464
      %v687 = vpop.f32.mrf.mxu0
      %v688 = vadd.f32 0.0, %v687
      %v689 = vpop.f32.mrf.mxu0
      %v690 = vpop.f32.mrf.mxu0
      %v691 = vadd.f32 0.0, %v690
      %v692 = vpop.f32.mrf.mxu0
      %693 = vmatprep.mubr.bf16.mxu0 0
      %694 = vmatmul.mubr.bf16.gmra.mxu0 %v467
      %v695 = vpop.f32.mrf.mxu0
      %v696 = vadd.f32 0.0, %v695
      %v697 = vpop.f32.mrf.mxu0
      %v698 = vpop.f32.mrf.mxu0
      %v699 = vadd.f32 0.0, %v698
      %v700 = vpop.f32.mrf.mxu0
      %701 = vmatprep.mubr.bf16.mxu0 0
      %702 = vmatmul.mubr.bf16.gmra.mxu0 %v470
      %v703 = vpop.f32.mrf.mxu0
      %v704 = vadd.f32 0.0, %v703
      %v705 = vpop.f32.mrf.mxu0
      %v706 = vpop.f32.mrf.mxu0
      %v707 = vadd.f32 0.0, %v706
      %v708 = vpop.f32.mrf.mxu0
      %709 = vmatprep.mubr.bf16.mxu0 0
      %710 = vmatmul.mubr.bf16.gmra.mxu0 %v473
      %v711 = vpop.f32.mrf.mxu0
      %v712 = vadd.f32 0.0, %v711
      %v713 = vpop.f32.mrf.mxu0
      %v714 = vpop.f32.mrf.mxu0
      %v715 = vadd.f32 0.0, %v714
      %v716 = vpop.f32.mrf.mxu0
      %717 = vmatprep.mubr.bf16.mxu0 0
      %718 = vmatmul.mubr.bf16.gmra.mxu0 %v476
      %v719 = vpop.f32.mrf.mxu0
      %v720 = vadd.f32 0.0, %v719
      %v721 = vpop.f32.mrf.mxu0
      %v722 = vpop.f32.mrf.mxu0
      %v723 = vadd.f32 0.0, %v722
      %v724 = vpop.f32.mrf.mxu0
      %725 = vmatprep.mubr.bf16.mxu0 0
      %726 = vmatmul.mubr.bf16.gmra.mxu0 %v479
      %v727 = vpop.f32.mrf.mxu0
      %v728 = vadd.f32 0.0, %v727
      %v729 = vpop.f32.mrf.mxu0
      %v730 = vpop.f32.mrf.mxu0
      %v731 = vadd.f32 0.0, %v730
      %v732 = vpop.f32.mrf.mxu0
      %733 = vmatprep.mubr.bf16.mxu0 0
      %734 = vmatmul.mubr.bf16.gmra.mxu0 %v482
      %v735 = vpop.f32.mrf.mxu0
      %v736 = vadd.f32 0.0, %v735
      %v737 = vpop.f32.mrf.mxu0
      %v738 = vpop.f32.mrf.mxu0
      %v739 = vadd.f32 0.0, %v738
      %v740 = vpop.f32.mrf.mxu0
      %741 = vmatprep.mubr.bf16.mxu0 0
      %742 = vmatmul.mubr.bf16.gmra.mxu0 %v485
      %v743 = vpop.f32.mrf.mxu0
      %v744 = vadd.f32 0.0, %v743
      %v745 = vpop.f32.mrf.mxu0
      %v746 = vpop.f32.mrf.mxu0
      %v747 = vadd.f32 0.0, %v746
      %v748 = vpop.f32.mrf.mxu0
      %749 = vmatprep.mubr.bf16.mxu0 0
      %750 = vmatmul.mubr.bf16.gmra.mxu0 %v488
      %v751 = vpop.f32.mrf.mxu0
      %v752 = vadd.f32 0.0, %v751
      %v753 = vpop.f32.mrf.mxu0
      %v754 = vpop.f32.mrf.mxu0
      %v755 = vadd.f32 0.0, %v754
      %v756 = vpop.f32.mrf.mxu0
      %757 = vmatprep.mubr.bf16.mxu0 0
      %758 = vmatmul.mubr.bf16.gmra.mxu0 %v491
      %v759 = vpop.f32.mrf.mxu0
      %v760 = vadd.f32 0.0, %v759
      %v761 = vpop.f32.mrf.mxu0
      %v762 = vpop.f32.mrf.mxu0
      %v763 = vadd.f32 0.0, %v762
      %v764 = vpop.f32.mrf.mxu0
      %765 = vmatprep.mubr.bf16.mxu0 0
      %766 = vmatmul.mubr.bf16.gmra.mxu0 %v494
      %v767 = vpop.f32.mrf.mxu0
      %v768 = vadd.f32 0.0, %v767
      %v769 = vpop.f32.mrf.mxu0
      %v770 = vpop.f32.mrf.mxu0
      %v771 = vadd.f32 0.0, %v770
      %v772 = vpop.f32.mrf.mxu0
      %773 = vmatprep.mubr.bf16.mxu0 0
      %774 = vmatmul.mubr.bf16.gmra.mxu0 %v497
      %v775 = vpop.f32.mrf.mxu0
      %v776 = vadd.f32 0.0, %v775
      %v777 = vpop.f32.mrf.mxu0
      %v778 = vpop.f32.mrf.mxu0
      %v779 = vadd.f32 0.0, %v778
      %v780 = vpop.f32.mrf.mxu0
      %781 = vmatprep.mubr.bf16.mxu0 0
      %782 = vmatmul.mubr.bf16.gmra.mxu0 %v500
      %v783 = vpop.f32.mrf.mxu0
      %v784 = vadd.f32 0.0, %v783
      %v785 = vpop.f32.mrf.mxu0
      %v786 = vpop.f32.mrf.mxu0
      %v787 = vadd.f32 0.0, %v786
      %v788 = vpop.f32.mrf.mxu0
      %789 = vmatprep.mubr.bf16.mxu0 0
      %790 = vmatmul.mubr.bf16.gmra.mxu0 %v503
      %v791 = vpop.f32.mrf.mxu0
      %v792 = vadd.f32 0.0, %v791
      %v793 = vpop.f32.mrf.mxu0
      %v794 = vpop.f32.mrf.mxu0
      %v795 = vadd.f32 0.0, %v794
      %v796 = vpop.f32.mrf.mxu0
      %797 = vdwg.mxu0
      %v798 = vtanh.pop %v544
      %v799 = vtanh.pop %v547
      %v800 = vtanh.pop %v552
      %v801 = vtanh.pop %v555
      %v802 = vtanh.pop %v560
      %v803 = vtanh.pop %v563
      %v804 = vtanh.pop %v568
      %v805 = vtanh.pop %v571
      %v806 = vtanh.pop %v576
      %v807 = vtanh.pop %v579
      %v808 = vtanh.pop %v584
      %v809 = vtanh.pop %v587
      %v810 = vtanh.pop %v592
      %v811 = vtanh.pop %v595
      %v812 = vtanh.pop %v600
      %v813 = vtanh.pop %v603
      %v814 = vtanh.pop %v608
      %v815 = vtanh.pop %v611
      %v816 = vtanh.pop %v616
      %v817 = vtanh.pop %v619
      %v818 = vtanh.pop %v624
      %v819 = vtanh.pop %v627
      %v820 = vtanh.pop %v632
      %v821 = vtanh.pop %v635
      %v822 = vtanh.pop %v640
      %v823 = vtanh.pop %v643
      %v824 = vtanh.pop %v648
      %v825 = vtanh.pop %v651
      %v826 = vtanh.pop %v656
      %v827 = vtanh.pop %v659
      %v828 = vtanh.pop %v664
      %v829 = vtanh.pop %v667
      %v830 = vtanh.pop %v672
      %v831 = vtanh.pop %v675
      %v832 = vtanh.pop %v680
      %v833 = vtanh.pop %v683
      %v834 = vtanh.pop %v688
      %v835 = vtanh.pop %v691
      %v836 = vtanh.pop %v696
      %v837 = vtanh.pop %v699
      %v838 = vtanh.pop %v704
      %v839 = vtanh.pop %v707
      %v840 = vtanh.pop %v712
      %v841 = vtanh.pop %v715
      %v842 = vtanh.pop %v720
      %v843 = vtanh.pop %v723
      %v844 = vtanh.pop %v728
      %v845 = vtanh.pop %v731
      %v846 = vtanh.pop %v736
      %v847 = vtanh.pop %v739
      %v848 = vtanh.pop %v744
      %v849 = vtanh.pop %v747
      %v850 = vtanh.pop %v752
      %v851 = vtanh.pop %v755
      %v852 = vtanh.pop %v760
      %v853 = vtanh.pop %v763
      %v854 = vtanh.pop %v768
      %v855 = vtanh.pop %v771
      %v856 = vtanh.pop %v776
      %v857 = vtanh.pop %v779
      %v858 = vtanh.pop %v784
      %v859 = vtanh.pop %v787
      %v860 = vtanh.pop %v792
      %v861 = vtanh.pop %v795
      %862 = vst [vmem:[%s145] sm:$0xff] %v798
      %863 = vst [vmem:[%s145 + $0x8] sm:$0xff] %v799
      %864 = vst [vmem:[%s145 + $0x10] sm:$0xff] %v800
      %865 = vst [vmem:[%s145 + $0x18] sm:$0xff] %v801
      %866 = vst [vmem:[%s145 + $0x20] sm:$0xff] %v802
      %867 = vst [vmem:[%s145 + $0x28] sm:$0xff] %v803
      %868 = vst [vmem:[%s145 + $0x30] sm:$0xff] %v804
      %869 = vst [vmem:[%s145 + $0x38] sm:$0xff] %v805
      %870 = vst [vmem:[%s145 + $0x40] sm:$0xff] %v806
      %871 = vst [vmem:[%s145 + $0x48] sm:$0xff] %v807
      %872 = vst [vmem:[%s145 + $0x50] sm:$0xff] %v808
      %873 = vst [vmem:[%s145 + $0x58] sm:$0xff] %v809
      %874 = vst [vmem:[%s145 + $0x60] sm:$0xff] %v810
      %875 = vst [vmem:[%s145 + $0x68] sm:$0xff] %v811
      %876 = vst [vmem:[%s145 + $0x70] sm:$0xff] %v812
      %877 = vst [vmem:[%s145 + $0x78] sm:$0xff] %v813
      %878 = vst [vmem:[%s145 + $0x80] sm:$0xff] %v814
      %879 = vst [vmem:[%s145 + $0x88] sm:$0xff] %v815
      %880 = vst [vmem:[%s145 + $0x90] sm:$0xff] %v816
      %881 = vst [vmem:[%s145 + $0x98] sm:$0xff] %v817
      %882 = vst [vmem:[%s145 + $0xa0] sm:$0xff] %v818
      %883 = vst [vmem:[%s145 + $0xa8] sm:$0xff] %v819
      %884 = vst [vmem:[%s145 + $0xb0] sm:$0xff] %v820
      %885 = vst [vmem:[%s145 + $0xb8] sm:$0xff] %v821
      %886 = vst [vmem:[%s145 + $0xc0] sm:$0xff] %v822
      %887 = vst [vmem:[%s145 + $0xc8] sm:$0xff] %v823
      %888 = vst [vmem:[%s145 + $0xd0] sm:$0xff] %v824
      %889 = vst [vmem:[%s145 + $0xd8] sm:$0xff] %v825
      %890 = vst [vmem:[%s145 + $0xe0] sm:$0xff] %v826
      %891 = vst [vmem:[%s145 + $0xe8] sm:$0xff] %v827
      %892 = vst [vmem:[%s145 + $0xf0] sm:$0xff] %v828
      %893 = vst [vmem:[%s145 + $0xf8] sm:$0xff] %v829
      %894 = vst [vmem:[%s145 + $0x100] sm:$0xff] %v830
      %895 = vst [vmem:[%s145 + $0x108] sm:$0xff] %v831
      %896 = vst [vmem:[%s145 + $0x110] sm:$0xff] %v832
      %897 = vst [vmem:[%s145 + $0x118] sm:$0xff] %v833
      %898 = vst [vmem:[%s145 + $0x120] sm:$0xff] %v834
      %899 = vst [vmem:[%s145 + $0x128] sm:$0xff] %v835
      %900 = vst [vmem:[%s145 + $0x130] sm:$0xff] %v836
      %901 = vst [vmem:[%s145 + $0x138] sm:$0xff] %v837
      %902 = vst [vmem:[%s145 + $0x140] sm:$0xff] %v838
      %903 = vst [vmem:[%s145 + $0x148] sm:$0xff] %v839
      %904 = vst [vmem:[%s145 + $0x150] sm:$0xff] %v840
      %905 = vst [vmem:[%s145 + $0x158] sm:$0xff] %v841
      %906 = vst [vmem:[%s145 + $0x160] sm:$0xff] %v842
      %907 = vst [vmem:[%s145 + $0x168] sm:$0xff] %v843
      %908 = vst [vmem:[%s145 + $0x170] sm:$0xff] %v844
      %909 = vst [vmem:[%s145 + $0x178] sm:$0xff] %v845
      %910 = vst [vmem:[%s145 + $0x180] sm:$0xff] %v846
      %911 = vst [vmem:[%s145 + $0x188] sm:$0xff] %v847
      %912 = vst [vmem:[%s145 + $0x190] sm:$0xff] %v848
      %913 = vst [vmem:[%s145 + $0x198] sm:$0xff] %v849
      %914 = vst [vmem:[%s145 + $0x1a0] sm:$0xff] %v850
      %915 = vst [vmem:[%s145 + $0x1a8] sm:$0xff] %v851
      %916 = vst [vmem:[%s145 + $0x1b0] sm:$0xff] %v852
      %917 = vst [vmem:[%s145 + $0x1b8] sm:$0xff] %v853
      %918 = vst [vmem:[%s145 + $0x1c0] sm:$0xff] %v854
      %919 = vst [vmem:[%s145 + $0x1c8] sm:$0xff] %v855
      %920 = vst [vmem:[%s145 + $0x1d0] sm:$0xff] %v856
      %921 = vst [vmem:[%s145 + $0x1d8] sm:$0xff] %v857
      %922 = vst [vmem:[%s145 + $0x1e0] sm:$0xff] %v858
      %923 = vst [vmem:[%s145 + $0x1e8] sm:$0xff] %v859
      %924 = vst [vmem:[%s145 + $0x1f0] sm:$0xff] %v860
      %925 = vst [vmem:[%s145 + $0x1f8] sm:$0xff] %v861
      %s926 = smul.u32 64, %s13
      %p927 = scmp.lt.s32.totalorder %s926, 255
      %s928 = scalar_select %p927, %s926, 255
      %s929 = smul.addr %s928, 8
      %s930 = scalar_lea.vmem %s2, %s929
      // Predicated region
      $region29: #{generator_forward.9} parent=27 // pred_check
        %p931 = pneg %p78
      $region30: #{generator_forward.9} parent=27 // pred_check_branch
        %933 = sbr.rel (%p931) target = $region32
      $region31: #{generator_forward.9} parent=27 // pred_region
        %s934 = smul.u32 64, %s13
      $region32: #{generator_forward.9} parent=27 // pred_fallthru
        _
    $region28: #{generator_forward.9} parent=5 // pred_fallthru
      _
    %p935 = scmp.le.s32.totalorder 2, %s8
    // Predicated region
    $region33: #{generator_forward.9} parent=5 // pred_check
      %p936 = pneg %p935
    $region34: #{generator_forward.9} parent=5 // pred_check_branch
      %938 = sbr.rel (%p936) target = $region36
    $region35: #{generator_forward.9} parent=5 // pred_region
      %s939 = ssub.s32 %s8, 2
      // Predicated region
      $region37: #{generator_forward.9} parent=35 // pred_check
        %p940 = pneg %p84
      $region38: #{generator_forward.9} parent=35 // pred_check_branch
        %942 = sbr.rel (%p940) target = $region40
      $region39: #{generator_forward.9} parent=35 // pred_region
        %s943 = smul.u32 64, %s14
        %p944 = scmp.lt.s32.totalorder %s943, 255
        %s945 = scalar_select %p944, %s943, 255
        %s946 = smul.addr %s945, 8
        %s947 = scalar_lea.vmem %s2, %s946
      $region40: #{generator_forward.9} parent=35 // pred_fallthru
        _
    $region36: #{generator_forward.9} parent=5 // pred_fallthru
      _
  $region6: #{generator_forward.9} parent=0 // loop_footer
    %s12 = sadd.s32 1, %s8
  $region7: #{generator_forward.9} parent=0 // loop_footer_branch
    %7 = sbr.rel target = $region3
  $region8: #{generator_forward.9} parent=0 // loop_exit
    _

</llo_original>
